<compile_context>
chip_gen: v7x
topology: tpu7x:2x2x1
jax: 0.10.0
libtpu: 0.0.40
codegen_flags: <defaults>
</compile_context>

<pallas_src>
import functools

import jax
import jax.numpy as jnp
from jax import lax
from jax.experimental import pallas as pl
from jax.experimental.pallas import tpu as pltpu


CFG = dict(
    n_out_channels=32,
    num_conv_layers=2,            # all conv kernels are width-3, 'same' padded
    fc_dims=(32, 16, 4),          # f0 == n_out_channels, last == 4 classes
    n_bu=16, n_td=8, n_mid=16, num_att_layers=3, n_att=2, alpha=0.5,
)

SLAB_WIDTH = 32                   # >= widest fan_out of any packed parameter


def _ceil8(n):
    return -(-n // 8) * 8


# -----------------------------------------------------------------------------
# Parameter slab: every weight/bias packed into one (R, 32) f32 array with
# 8-aligned row offsets, so the fused kernel gets a single constant operand.
# -----------------------------------------------------------------------------
def build_layout(cfg, feat_h):
    C = cfg["n_out_channels"]
    entries = []
    cin = feat_h
    for l in range(cfg["num_conv_layers"]):
        for k in range(3):
            entries.append((f"conv{l}_w{k}", cin, C))
        entries.append((f"conv{l}_b", 1, C))
        cin = C
    entries += [
        ("att_bu_w", C, cfg["n_bu"]), ("att_bu_b", 1, cfg["n_bu"]),
        ("att_td_w", 4, cfg["n_td"]), ("att_td_b", 1, cfg["n_td"]),
        ("tdbu0_wbu", cfg["n_bu"], cfg["n_mid"]),
        ("tdbu0_wtd", cfg["n_td"], cfg["n_mid"]),
        ("tdbu0_b", 1, cfg["n_mid"]),
    ]
    for i in range(cfg["num_att_layers"] - 2):
        entries += [(f"tdbu_mid{i}_w", cfg["n_mid"], cfg["n_mid"]),
                    (f"tdbu_mid{i}_b", 1, cfg["n_mid"])]
    entries += [("tdbu_last_w", cfg["n_mid"], C), ("tdbu_last_b", 1, C)]
    fc = cfg["fc_dims"]
    for i in range(len(fc) - 1):
        entries += [(f"fc{i}_w", fc[i], fc[i + 1]), (f"fc{i}_b", 1, fc[i + 1])]
    entries.append(("p0", 1, 4))

    layout, off = {}, 0
    for name, r, c in entries:
        assert c <= SLAB_WIDTH
        layout[name] = (off, r, c)
        off += _ceil8(r)
    return layout, off


def pack_params(params, cfg, feat_h):
    """One-time packing (call OUTSIDE jit) of all weights/biases + class
    priors into a single f32 slab."""
    layout, total = build_layout(cfg, feat_h)
    slab = jnp.zeros((total, SLAB_WIDTH), jnp.float32)

    def put(s, name, arr):
        off, r, c = layout[name]
        return s.at[off:off + r, :c].set(jnp.asarray(arr, jnp.float32).reshape(r, c))

    for l, (w3, b) in enumerate(params["conv"]):
        for k in range(3):
            slab = put(slab, f"conv{l}_w{k}", w3[k])
        slab = put(slab, f"conv{l}_b", b)
    wbu, bbu = params["att_bu"]
    slab = put(slab, "att_bu_w", wbu)
    slab = put(slab, "att_bu_b", bbu)
    wtd, btd = params["att_td"]
    slab = put(slab, "att_td_w", wtd)
    slab = put(slab, "att_td_b", btd)
    tdbu = params["att_tdbu"]
    w0, b0 = tdbu[0]
    n_bu = cfg["n_bu"]
    slab = put(slab, "tdbu0_wbu", w0[:n_bu])     # split so the x_bu half can be
    slab = put(slab, "tdbu0_wtd", w0[n_bu:])     # hoisted out of the n_att loop
    slab = put(slab, "tdbu0_b", b0)
    for i, (wm, bm) in enumerate(tdbu[1:-1]):
        slab = put(slab, f"tdbu_mid{i}_w", wm)
        slab = put(slab, f"tdbu_mid{i}_b", bm)
    wl, bl = tdbu[-1]
    slab = put(slab, "tdbu_last_w", wl)
    slab = put(slab, "tdbu_last_b", bl)
    for i, (wf, bf) in enumerate(params["fc"]):
        slab = put(slab, f"fc{i}_w", wf)
        slab = put(slab, f"fc{i}_b", bf)
    counts = jnp.array([[1490.0, 1561.0, 1151.0, 1027.0]], jnp.float32)
    slab = put(slab, "p0", counts / jnp.sum(counts))
    return slab


# -----------------------------------------------------------------------------
# The single fused forward kernel.
# -----------------------------------------------------------------------------
def conv_att_forward(melspec, slab, cfg):
    B, F_dim, T = melspec.shape
    C = cfg["n_out_channels"]
    n_att = int(cfg["n_att"])
    alpha = float(cfg["alpha"])
    num_conv = int(cfg["num_conv_layers"])
    num_mid = int(cfg["num_att_layers"]) - 2
    num_fc = len(cfg["fc_dims"]) - 1
    layout, total_rows = build_layout(cfg, F_dim)
    assert slab.shape == (total_rows, SLAB_WIDTH)

    widths = [T]
    for _ in range(num_conv):
        widths.append(widths[-1] // 2)      # MaxPool2d((1,2)) floor semantics
    L = widths[-1]

    x_cl = jnp.transpose(melspec, (0, 2, 1))        # (B, T, F) channels-last

    def get(ref, name):                             # free static ref slice
        off, r, c = layout[name]
        return ref[off:off + r, :c]

    def kernel(x_ref, slab_ref, o_ref):
        f32 = jnp.float32
        dot = lambda a, b: jnp.dot(a, b, preferred_element_type=f32)

        def conv_pool_relu(x, l):
            # x: (W, Cin) -> relu(maxpool2(conv3_same(x) + b)) : (W//2, C).
            # Width-3 taps are three matmuls; the shift-by-{-1,0,1,2} and the
            # stride-2 pooling gather are folded into six tiny 0/1 selection
            # matmuls built from iota (boundary zeros fall out automatically).
            W = x.shape[0]
            Wout = W // 2
            w0 = get(slab_ref, f"conv{l}_w0")
            w1 = get(slab_ref, f"conv{l}_w1")
            w2 = get(slab_ref, f"conv{l}_w2")
            b = get(slab_ref, f"conv{l}_b")
            a0, a1, a2 = dot(x, w0), dot(x, w1), dot(x, w2)        # (W, C)
            jj = lax.broadcasted_iota(jnp.int32, (Wout, W), 0)
            tt = lax.broadcasted_iota(jnp.int32, (Wout, W), 1)
            sel = lambda k: (tt == 2 * jj + k).astype(f32)          # (Wout, W)
            s_m1, s_0, s_1, s_2 = sel(-1), sel(0), sel(1), sel(2)
            even = dot(s_m1, a0) + dot(s_0, a1) + dot(s_1, a2)      # conv[2j]
            odd = dot(s_0, a0) + dot(s_1, a1) + dot(s_2, a2)        # conv[2j+1]
            # maxpool commutes with +bias and relu
            return jnp.maximum(jnp.maximum(even, odd) + b, 0.0)

        x = x_ref[0]                                # (T, F)
        for l in range(num_conv):
            x = conv_pool_relu(x, l)                # -> (L, C)

        # ---- attention block: hoist every weight/bias load (and the p0
        # broadcast) out of the statically unrolled n_att loop.
        w_bu, b_bu = get(slab_ref, "att_bu_w"), get(slab_ref, "att_bu_b")
        w_td, b_td = get(slab_ref, "att_td_w"), get(slab_ref, "att_td_b")
        w0_bu = get(slab_ref, "tdbu0_wbu")
        w0_td = get(slab_ref, "tdbu0_wtd")
        b0 = get(slab_ref, "tdbu0_b")
        mids = [(get(slab_ref, f"tdbu_mid{i}_w"), get(slab_ref, f"tdbu_mid{i}_b"))
                for i in range(num_mid)]
        w_last, b_last = get(slab_ref, "tdbu_last_w"), get(slab_ref, "tdbu_last_b")
        fcs = [(get(slab_ref, f"fc{i}_w"), get(slab_ref, f"fc{i}_b"))
               for i in range(num_fc)]

        # loop-invariant: x_bu and its contribution to the first tdbu layer
        # (the concat(x_bu, td) @ W0 is split in two, so the concat vanishes).
        x_bu = dot(x, w_bu) + b_bu                  # (L, n_bu)
        pre0 = dot(x_bu, w0_bu) + b0                # (L, n_mid)
        p = jnp.broadcast_to(get(slab_ref, "p0"), (L, 4))     # class priors

        attended = None
        for it in range(n_att):                     # static unroll
            td = dot(p, w_td) + b_td
            a = jnp.tanh(pre0 + dot(td, w0_td))
            for wm, bm in mids:
                a = jnp.tanh(dot(a, wm) + bm)
            a = jnp.tanh(dot(a, w_last) + b_last)               # (L, C)
            y = x * (alpha * a + 1.0)                            # fused residual
            for i, (wf, bf) in enumerate(fcs):
                y = dot(y, wf) + bf
                if i != num_fc - 1:
                    y = jnp.maximum(y, 0.0)
            attended = y                                         # (L, 4)
            if it != n_att - 1:
                # softmax over the sequence axis (dim=1 of (B, L, 4)); exact
                # divide so the value fed back into the next iteration matches
                # the PyTorch reference (last iteration's p_labels is dead).
                m = jnp.max(attended, axis=0, keepdims=True)
                e = jnp.exp(attended - m)
                p = e / jnp.sum(e, axis=0, keepdims=True)

        # transpose + AvgPool1d(L) + squeeze  ==  mean over the L axis
        o_ref[0] = (jnp.sum(attended, axis=0, keepdims=True)
                    * (1.0 / L)).astype(o_ref.dtype)

    # advisory cost estimate
    n_bu, n_td, n_mid = cfg["n_bu"], cfg["n_td"], cfg["n_mid"]
    fc_dims = list(cfg["fc_dims"])
    conv_flops = 0
    cin = F_dim
    for l in range(num_conv):
        W, Wout = widths[l], widths[l + 1]
        conv_flops += 2 * (3 * W * cin * C + 6 * Wout * W * C)
        cin = C
    att_cols = (C * n_bu + n_bu * n_mid) + n_att * (
        4 * n_td + n_td * n_mid + num_mid * n_mid * n_mid + n_mid * C
        + sum(fc_dims[i] * fc_dims[i + 1] for i in range(num_fc)))
    cost = pl.CostEstimate(
        flops=int(B * (conv_flops + 2 * L * att_cols)),
        transcendentals=int(B * L * (n_att * ((1 + num_mid) * n_mid + C)
                                     + (n_att - 1) * 4)),
        bytes_accessed=int(4 * (x_cl.size + slab.size + B * 4)),
    )

    out = pl.pallas_call(
        kernel,
        out_shape=jax.ShapeDtypeStruct((B, 1, 4), jnp.float32),
        grid=(B,),
        in_specs=[
            pl.BlockSpec((1, T, F_dim), lambda i: (i, 0, 0)),
            pl.BlockSpec((total_rows, SLAB_WIDTH), lambda i: (0, 0)),
        ],
        out_specs=pl.BlockSpec((1, 1, 4), lambda i: (i, 0, 0)),
        compiler_params=pltpu.CompilerParams(dimension_semantics=("parallel",)),
        cost_estimate=cost,
    )(x_cl, slab)
    return out.reshape(B, 4)


def bert_conv_att_forward(melspec, slab, cfg):
    # x = transpose(melspec); feature = mockingjay(x); feature = transpose(feature)
    # TODO(synk): the Mockingjay BERT encoder needs an external checkpoint ->
    # identity, so the two transposes cancel and feature == melspec.
    return conv_att_forward(melspec, slab, cfg)


# -----------------------------------------------------------------------------
# Deterministic parameter init (PyTorch-style uniform bounds)
# -----------------------------------------------------------------------------
def _uniform(key, shape, bound):
    return jax.random.uniform(key, shape, minval=-bound, maxval=bound,
                              dtype=jnp.float32)


def _init_linear(key, fan_in, fan_out):
    kw, kb = jax.random.split(key)
    bound = 1.0 / float(fan_in) ** 0.5
    return _uniform(kw, (fan_in, fan_out), bound), _uniform(kb, (fan_out,), bound)


def _init_conv(key, cin, cout):
    # Conv2d(., cout, kernel (., 3)) weights stored kw-major as (3, cin, cout)
    kw, kb = jax.random.split(key)
    bound = 1.0 / float(cin * 3) ** 0.5
    return _uniform(kw, (3, cin, cout), bound), _uniform(kb, (cout,), bound)


def init_params(key, cfg, feature_height):
    keys = iter(jax.random.split(key, 32))
    C = cfg["n_out_channels"]
    params = {}
    conv = []
    cin = feature_height
    for _ in range(cfg["num_conv_layers"]):
        conv.append(_init_conv(next(keys), cin, C))
        cin = C
    params["conv"] = conv
    params["att_bu"] = _init_linear(next(keys), C, cfg["n_bu"])
    params["att_td"] = _init_linear(next(keys), 4, cfg["n_td"])
    tdbu = [_init_linear(next(keys), cfg["n_bu"] + cfg["n_td"], cfg["n_mid"])]
    for _ in range(cfg["num_att_layers"] - 2):
        tdbu.append(_init_linear(next(keys), cfg["n_mid"], cfg["n_mid"]))
    tdbu.append(_init_linear(next(keys), cfg["n_mid"], C))
    params["att_tdbu"] = tdbu
    fc_dims = cfg["fc_dims"]
    params["fc"] = [_init_linear(next(keys), fc_dims[i], fc_dims[i + 1])
                    for i in range(len(fc_dims) - 1)]
    return params


# -----------------------------------------------------------------------------
# Pure-JAX reference (exact PyTorch op order) used as a correctness check.
# -----------------------------------------------------------------------------
def reference_forward(params, melspec, cfg):
    x = jnp.transpose(melspec, (0, 2, 1))                    # (B, T, F)
    for w3, b in params["conv"]:
        Bb, W, _ = x.shape
        xp = jnp.pad(x, ((0, 0), (1, 1), (0, 0)))
        conv = xp[:, :-2] @ w3[0] + xp[:, 1:-1] @ w3[1] + xp[:, 2:] @ w3[2] + b
        Wout = W // 2
        pooled = jnp.max(conv[:, :2 * Wout].reshape(Bb, Wout, 2, -1), axis=2)
        x = jax.nn.relu(pooled)
    alpha = cfg["alpha"]
    w_bu, b_bu = params["att_bu"]
    w_td, b_td = params["att_td"]
    counts = jnp.array([1490.0, 1561.0, 1151.0, 1027.0], jnp.float32)
    p = jnp.broadcast_to(counts / counts.sum(), x.shape[:2] + (4,))
    x_bu = x @ w_bu + b_bu
    attended = None
    for _ in range(cfg["n_att"]):
        a = jnp.concatenate([x_bu, p @ w_td + b_td], axis=-1)
        for w, bb in params["att_tdbu"]:
            a = jnp.tanh(a @ w + bb)
        y = x * (alpha * a + 1.0)
        for i, (w, bb) in enumerate(params["fc"]):
            y = y @ w + bb
            if i != len(params["fc"]) - 1:
                y = jax.nn.relu(y)
        attended = y
        p = jax.nn.softmax(attended, axis=1)
    return jnp.mean(attended, axis=1)


# -----------------------------------------------------------------------------
if __name__ == "__main__":
    key = jax.random.PRNGKey(0)
    k_mel, k_par = jax.random.split(key)

    B, F_mel, T = 2, 16, 32                                  # small synthetic shapes
    melspec = jax.random.normal(k_mel, (B, F_mel, T), dtype=jnp.float32)
    params = init_params(k_par, CFG, feature_height=F_mel)
    slab = pack_params(params, CFG, F_mel)                   # one-time, outside jit

    fwd = jax.jit(functools.partial(bert_conv_att_forward, cfg=CFG))
    pred = jax.block_until_ready(fwd(melspec, slab))

    assert pred.shape == (B, 4), pred.shape
    assert bool(jnp.all(jnp.isfinite(pred)))
    ref = reference_forward(params, melspec, CFG)
    assert bool(jnp.allclose(pred, ref, rtol=1e-3, atol=1e-3)), (pred, ref)
    print("KERNEL_OK")
</pallas_src>

<mosaic_0001>
module attributes {stable_mosaic.version = 11 : i64} {
  func.func @kernel(%arg0: i32, %arg1: memref<1x32x16xf32, #tpu.memory_space<vmem>>, %arg2: memref<368x32xf32, #tpu.memory_space<vmem>>, %arg3: memref<1x1x4xf32, #tpu.memory_space<vmem>>) attributes {dimension_semantics = [#tpu.dimension_semantics<parallel>], iteration_bounds = array<i64: 2>, scalar_prefetch = 0 : i64, scratch_operands = 0 : i64, tpu.core_type = #tpu.core_type<tc>, window_params = [{transform_indices = @transform_0, window_bounds = array<i64: 1, 32, 16>}, {pipeline_mode = #tpu.pipeline_mode<synchronous>, transform_indices = @transform_1, window_bounds = array<i64: 368, 32>}, {transform_indices = @transform_2, window_bounds = array<i64: 1, 1, 4>}]} {
    %c0 = arith.constant 0 : index
    %c0_0 = arith.constant 0 : index
    %c0_1 = arith.constant 0 : index
    %0 = vector.load %arg1[%c0, %c0_0, %c0_1] : memref<1x32x16xf32, #tpu.memory_space<vmem>>, vector<1x32x16xf32>
    %1 = vector.shape_cast %0 : vector<1x32x16xf32> to vector<32x16xf32>
    %c0_2 = arith.constant 0 : index
    %c0_3 = arith.constant 0 : index
    %2 = vector.load %arg2[%c0_2, %c0_3] : memref<368x32xf32, #tpu.memory_space<vmem>>, vector<16x32xf32>
    %c16 = arith.constant 16 : index
    %c0_4 = arith.constant 0 : index
    %3 = vector.load %arg2[%c16, %c0_4] : memref<368x32xf32, #tpu.memory_space<vmem>>, vector<16x32xf32>
    %c32 = arith.constant 32 : index
    %c0_5 = arith.constant 0 : index
    %4 = vector.load %arg2[%c32, %c0_5] : memref<368x32xf32, #tpu.memory_space<vmem>>, vector<16x32xf32>
    %c48 = arith.constant 48 : index
    %c0_6 = arith.constant 0 : index
    %5 = vector.load %arg2[%c48, %c0_6] : memref<368x32xf32, #tpu.memory_space<vmem>>, vector<1x32xf32>
    %cst = arith.constant dense<0.000000e+00> : vector<32x32xf32>
    %6 = tpu.matmul %1, %2, %cst {dimension_numbers = #tpu.dot_dimension_numbers<[1], [0], [0], [1], [0, 0, 1, 1], [], []>} : vector<32x16xf32>, vector<16x32xf32>, vector<32x32xf32> -> vector<32x32xf32>
    %cst_7 = arith.constant dense<0.000000e+00> : vector<32x32xf32>
    %7 = tpu.matmul %1, %3, %cst_7 {dimension_numbers = #tpu.dot_dimension_numbers<[1], [0], [0], [1], [0, 0, 1, 1], [], []>} : vector<32x16xf32>, vector<16x32xf32>, vector<32x32xf32> -> vector<32x32xf32>
    %cst_8 = arith.constant dense<0.000000e+00> : vector<32x32xf32>
    %8 = tpu.matmul %1, %4, %cst_8 {dimension_numbers = #tpu.dot_dimension_numbers<[1], [0], [0], [1], [0, 0, 1, 1], [], []>} : vector<32x16xf32>, vector<16x32xf32>, vector<32x32xf32> -> vector<32x32xf32>
    %9 = tpu.iota {dimensions = array<i32: 0>} : vector<16x32xi32>
    %10 = tpu.iota {dimensions = array<i32: 1>} : vector<16x32xi32>
    %c2_i32 = arith.constant 2 : i32
    %11 = vector.broadcast %c2_i32 : i32 to vector<16x32xi32>
    %12 = arith.muli %11, %9 : vector<16x32xi32>
    %c-1_i32 = arith.constant -1 : i32
    %13 = vector.broadcast %c-1_i32 : i32 to vector<16x32xi32>
    %14 = arith.addi %12, %13 : vector<16x32xi32>
    %15 = arith.cmpi eq, %10, %14 : vector<16x32xi32>
    %16 = arith.extui %15 : vector<16x32xi1> to vector<16x32xi32>
    %17 = arith.sitofp %16 : vector<16x32xi32> to vector<16x32xf32>
    %c2_i32_9 = arith.constant 2 : i32
    %18 = vector.broadcast %c2_i32_9 : i32 to vector<16x32xi32>
    %19 = arith.muli %18, %9 : vector<16x32xi32>
    %c0_i32 = arith.constant 0 : i32
    %20 = vector.broadcast %c0_i32 : i32 to vector<16x32xi32>
    %21 = arith.addi %19, %20 : vector<16x32xi32>
    %22 = arith.cmpi eq, %10, %21 : vector<16x32xi32>
    %23 = arith.extui %22 : vector<16x32xi1> to vector<16x32xi32>
    %24 = arith.sitofp %23 : vector<16x32xi32> to vector<16x32xf32>
    %c2_i32_10 = arith.constant 2 : i32
    %25 = vector.broadcast %c2_i32_10 : i32 to vector<16x32xi32>
    %26 = arith.muli %25, %9 : vector<16x32xi32>
    %c1_i32 = arith.constant 1 : i32
    %27 = vector.broadcast %c1_i32 : i32 to vector<16x32xi32>
    %28 = arith.addi %26, %27 : vector<16x32xi32>
    %29 = arith.cmpi eq, %10, %28 : vector<16x32xi32>
    %30 = arith.extui %29 : vector<16x32xi1> to vector<16x32xi32>
    %31 = arith.sitofp %30 : vector<16x32xi32> to vector<16x32xf32>
    %c2_i32_11 = arith.constant 2 : i32
    %32 = vector.broadcast %c2_i32_11 : i32 to vector<16x32xi32>
    %33 = arith.muli %32, %9 : vector<16x32xi32>
    %c2_i32_12 = arith.constant 2 : i32
    %34 = vector.broadcast %c2_i32_12 : i32 to vector<16x32xi32>
    %35 = arith.addi %33, %34 : vector<16x32xi32>
    %36 = arith.cmpi eq, %10, %35 : vector<16x32xi32>
    %37 = arith.extui %36 : vector<16x32xi1> to vector<16x32xi32>
    %38 = arith.sitofp %37 : vector<16x32xi32> to vector<16x32xf32>
    %cst_13 = arith.constant dense<0.000000e+00> : vector<16x32xf32>
    %39 = tpu.matmul %17, %6, %cst_13 {dimension_numbers = #tpu.dot_dimension_numbers<[1], [0], [0], [1], [0, 0, 1, 1], [], []>} : vector<16x32xf32>, vector<32x32xf32>, vector<16x32xf32> -> vector<16x32xf32>
    %cst_14 = arith.constant dense<0.000000e+00> : vector<16x32xf32>
    %40 = tpu.matmul %24, %7, %cst_14 {dimension_numbers = #tpu.dot_dimension_numbers<[1], [0], [0], [1], [0, 0, 1, 1], [], []>} : vector<16x32xf32>, vector<32x32xf32>, vector<16x32xf32> -> vector<16x32xf32>
    %41 = arith.addf %39, %40 : vector<16x32xf32>
    %cst_15 = arith.constant dense<0.000000e+00> : vector<16x32xf32>
    %42 = tpu.matmul %31, %8, %cst_15 {dimension_numbers = #tpu.dot_dimension_numbers<[1], [0], [0], [1], [0, 0, 1, 1], [], []>} : vector<16x32xf32>, vector<32x32xf32>, vector<16x32xf32> -> vector<16x32xf32>
    %43 = arith.addf %41, %42 : vector<16x32xf32>
    %cst_16 = arith.constant dense<0.000000e+00> : vector<16x32xf32>
    %44 = tpu.matmul %24, %6, %cst_16 {dimension_numbers = #tpu.dot_dimension_numbers<[1], [0], [0], [1], [0, 0, 1, 1], [], []>} : vector<16x32xf32>, vector<32x32xf32>, vector<16x32xf32> -> vector<16x32xf32>
    %cst_17 = arith.constant dense<0.000000e+00> : vector<16x32xf32>
    %45 = tpu.matmul %31, %7, %cst_17 {dimension_numbers = #tpu.dot_dimension_numbers<[1], [0], [0], [1], [0, 0, 1, 1], [], []>} : vector<16x32xf32>, vector<32x32xf32>, vector<16x32xf32> -> vector<16x32xf32>
    %46 = arith.addf %44, %45 : vector<16x32xf32>
    %cst_18 = arith.constant dense<0.000000e+00> : vector<16x32xf32>
    %47 = tpu.matmul %38, %8, %cst_18 {dimension_numbers = #tpu.dot_dimension_numbers<[1], [0], [0], [1], [0, 0, 1, 1], [], []>} : vector<16x32xf32>, vector<32x32xf32>, vector<16x32xf32> -> vector<16x32xf32>
    %48 = arith.addf %46, %47 : vector<16x32xf32>
    %49 = arith.maximumf %43, %48 : vector<16x32xf32>
    %50 = vector.broadcast %5 : vector<1x32xf32> to vector<16x32xf32>
    %51 = arith.addf %49, %50 : vector<16x32xf32>
    %cst_19 = arith.constant 0.000000e+00 : f32
    %52 = vector.broadcast %cst_19 : f32 to vector<16x32xf32>
    %53 = arith.maximumf %51, %52 : vector<16x32xf32>
    %c56 = arith.constant 56 : index
    %c0_20 = arith.constant 0 : index
    %54 = vector.load %arg2[%c56, %c0_20] : memref<368x32xf32, #tpu.memory_space<vmem>>, vector<32x32xf32>
    %c88 = arith.constant 88 : index
    %c0_21 = arith.constant 0 : index
    %55 = vector.load %arg2[%c88, %c0_21] : memref<368x32xf32, #tpu.memory_space<vmem>>, vector<32x32xf32>
    %c120 = arith.constant 120 : index
    %c0_22 = arith.constant 0 : index
    %56 = vector.load %arg2[%c120, %c0_22] : memref<368x32xf32, #tpu.memory_space<vmem>>, vector<32x32xf32>
    %c152 = arith.constant 152 : index
    %c0_23 = arith.constant 0 : index
    %57 = vector.load %arg2[%c152, %c0_23] : memref<368x32xf32, #tpu.memory_space<vmem>>, vector<1x32xf32>
    %cst_24 = arith.constant dense<0.000000e+00> : vector<16x32xf32>
    %58 = tpu.matmul %53, %54, %cst_24 {dimension_numbers = #tpu.dot_dimension_numbers<[1], [0], [0], [1], [0, 0, 1, 1], [], []>} : vector<16x32xf32>, vector<32x32xf32>, vector<16x32xf32> -> vector<16x32xf32>
    %cst_25 = arith.constant dense<0.000000e+00> : vector<16x32xf32>
    %59 = tpu.matmul %53, %55, %cst_25 {dimension_numbers = #tpu.dot_dimension_numbers<[1], [0], [0], [1], [0, 0, 1, 1], [], []>} : vector<16x32xf32>, vector<32x32xf32>, vector<16x32xf32> -> vector<16x32xf32>
    %cst_26 = arith.constant dense<0.000000e+00> : vector<16x32xf32>
    %60 = tpu.matmul %53, %56, %cst_26 {dimension_numbers = #tpu.dot_dimension_numbers<[1], [0], [0], [1], [0, 0, 1, 1], [], []>} : vector<16x32xf32>, vector<32x32xf32>, vector<16x32xf32> -> vector<16x32xf32>
    %61 = tpu.iota {dimensions = array<i32: 0>} : vector<8x16xi32>
    %62 = tpu.iota {dimensions = array<i32: 1>} : vector<8x16xi32>
    %c2_i32_27 = arith.constant 2 : i32
    %63 = vector.broadcast %c2_i32_27 : i32 to vector<8x16xi32>
    %64 = arith.muli %63, %61 : vector<8x16xi32>
    %c-1_i32_28 = arith.constant -1 : i32
    %65 = vector.broadcast %c-1_i32_28 : i32 to vector<8x16xi32>
    %66 = arith.addi %64, %65 : vector<8x16xi32>
    %67 = arith.cmpi eq, %62, %66 : vector<8x16xi32>
    %68 = arith.extui %67 : vector<8x16xi1> to vector<8x16xi32>
    %69 = arith.sitofp %68 : vector<8x16xi32> to vector<8x16xf32>
    %c2_i32_29 = arith.constant 2 : i32
    %70 = vector.broadcast %c2_i32_29 : i32 to vector<8x16xi32>
    %71 = arith.muli %70, %61 : vector<8x16xi32>
    %c0_i32_30 = arith.constant 0 : i32
    %72 = vector.broadcast %c0_i32_30 : i32 to vector<8x16xi32>
    %73 = arith.addi %71, %72 : vector<8x16xi32>
    %74 = arith.cmpi eq, %62, %73 : vector<8x16xi32>
    %75 = arith.extui %74 : vector<8x16xi1> to vector<8x16xi32>
    %76 = arith.sitofp %75 : vector<8x16xi32> to vector<8x16xf32>
    %c2_i32_31 = arith.constant 2 : i32
    %77 = vector.broadcast %c2_i32_31 : i32 to vector<8x16xi32>
    %78 = arith.muli %77, %61 : vector<8x16xi32>
    %c1_i32_32 = arith.constant 1 : i32
    %79 = vector.broadcast %c1_i32_32 : i32 to vector<8x16xi32>
    %80 = arith.addi %78, %79 : vector<8x16xi32>
    %81 = arith.cmpi eq, %62, %80 : vector<8x16xi32>
    %82 = arith.extui %81 : vector<8x16xi1> to vector<8x16xi32>
    %83 = arith.sitofp %82 : vector<8x16xi32> to vector<8x16xf32>
    %c2_i32_33 = arith.constant 2 : i32
    %84 = vector.broadcast %c2_i32_33 : i32 to vector<8x16xi32>
    %85 = arith.muli %84, %61 : vector<8x16xi32>
    %c2_i32_34 = arith.constant 2 : i32
    %86 = vector.broadcast %c2_i32_34 : i32 to vector<8x16xi32>
    %87 = arith.addi %85, %86 : vector<8x16xi32>
    %88 = arith.cmpi eq, %62, %87 : vector<8x16xi32>
    %89 = arith.extui %88 : vector<8x16xi1> to vector<8x16xi32>
    %90 = arith.sitofp %89 : vector<8x16xi32> to vector<8x16xf32>
    %cst_35 = arith.constant dense<0.000000e+00> : vector<8x32xf32>
    %91 = tpu.matmul %69, %58, %cst_35 {dimension_numbers = #tpu.dot_dimension_numbers<[1], [0], [0], [1], [0, 0, 1, 1], [], []>} : vector<8x16xf32>, vector<16x32xf32>, vector<8x32xf32> -> vector<8x32xf32>
    %cst_36 = arith.constant dense<0.000000e+00> : vector<8x32xf32>
    %92 = tpu.matmul %76, %59, %cst_36 {dimension_numbers = #tpu.dot_dimension_numbers<[1], [0], [0], [1], [0, 0, 1, 1], [], []>} : vector<8x16xf32>, vector<16x32xf32>, vector<8x32xf32> -> vector<8x32xf32>
    %93 = arith.addf %91, %92 : vector<8x32xf32>
    %cst_37 = arith.constant dense<0.000000e+00> : vector<8x32xf32>
    %94 = tpu.matmul %83, %60, %cst_37 {dimension_numbers = #tpu.dot_dimension_numbers<[1], [0], [0], [1], [0, 0, 1, 1], [], []>} : vector<8x16xf32>, vector<16x32xf32>, vector<8x32xf32> -> vector<8x32xf32>
    %95 = arith.addf %93, %94 : vector<8x32xf32>
    %cst_38 = arith.constant dense<0.000000e+00> : vector<8x32xf32>
    %96 = tpu.matmul %76, %58, %cst_38 {dimension_numbers = #tpu.dot_dimension_numbers<[1], [0], [0], [1], [0, 0, 1, 1], [], []>} : vector<8x16xf32>, vector<16x32xf32>, vector<8x32xf32> -> vector<8x32xf32>
    %cst_39 = arith.constant dense<0.000000e+00> : vector<8x32xf32>
    %97 = tpu.matmul %83, %59, %cst_39 {dimension_numbers = #tpu.dot_dimension_numbers<[1], [0], [0], [1], [0, 0, 1, 1], [], []>} : vector<8x16xf32>, vector<16x32xf32>, vector<8x32xf32> -> vector<8x32xf32>
    %98 = arith.addf %96, %97 : vector<8x32xf32>
    %cst_40 = arith.constant dense<0.000000e+00> : vector<8x32xf32>
    %99 = tpu.matmul %90, %60, %cst_40 {dimension_numbers = #tpu.dot_dimension_numbers<[1], [0], [0], [1], [0, 0, 1, 1], [], []>} : vector<8x16xf32>, vector<16x32xf32>, vector<8x32xf32> -> vector<8x32xf32>
    %100 = arith.addf %98, %99 : vector<8x32xf32>
    %101 = arith.maximumf %95, %100 : vector<8x32xf32>
    %102 = vector.broadcast %57 : vector<1x32xf32> to vector<8x32xf32>
    %103 = arith.addf %101, %102 : vector<8x32xf32>
    %cst_41 = arith.constant 0.000000e+00 : f32
    %104 = vector.broadcast %cst_41 : f32 to vector<8x32xf32>
    %105 = arith.maximumf %103, %104 : vector<8x32xf32>
    %c160 = arith.constant 160 : index
    %c0_42 = arith.constant 0 : index
    %106 = vector.load %arg2[%c160, %c0_42] : memref<368x32xf32, #tpu.memory_space<vmem>>, vector<32x16xf32>
    %c192 = arith.constant 192 : index
    %c0_43 = arith.constant 0 : index
    %107 = vector.load %arg2[%c192, %c0_43] : memref<368x32xf32, #tpu.memory_space<vmem>>, vector<1x16xf32>
    %c200 = arith.constant 200 : index
    %c0_44 = arith.constant 0 : index
    %108 = vector.load %arg2[%c200, %c0_44] : memref<368x32xf32, #tpu.memory_space<vmem>>, vector<4x8xf32>
    %c208 = arith.constant 208 : index
    %c0_45 = arith.constant 0 : index
    %109 = vector.load %arg2[%c208, %c0_45] : memref<368x32xf32, #tpu.memory_space<vmem>>, vector<1x8xf32>
    %c216 = arith.constant 216 : index
    %c0_46 = arith.constant 0 : index
    %110 = vector.load %arg2[%c216, %c0_46] : memref<368x32xf32, #tpu.memory_space<vmem>>, vector<16x16xf32>
    %c232 = arith.constant 232 : index
    %c0_47 = arith.constant 0 : index
    %111 = vector.load %arg2[%c232, %c0_47] : memref<368x32xf32, #tpu.memory_space<vmem>>, vector<8x16xf32>
    %c240 = arith.constant 240 : index
    %c0_48 = arith.constant 0 : index
    %112 = vector.load %arg2[%c240, %c0_48] : memref<368x32xf32, #tpu.memory_space<vmem>>, vector<1x16xf32>
    %c248 = arith.constant 248 : index
    %c0_49 = arith.constant 0 : index
    %113 = vector.load %arg2[%c248, %c0_49] : memref<368x32xf32, #tpu.memory_space<vmem>>, vector<16x16xf32>
    %c264 = arith.constant 264 : index
    %c0_50 = arith.constant 0 : index
    %114 = vector.load %arg2[%c264, %c0_50] : memref<368x32xf32, #tpu.memory_space<vmem>>, vector<1x16xf32>
    %c272 = arith.constant 272 : index
    %c0_51 = arith.constant 0 : index
    %115 = vector.load %arg2[%c272, %c0_51] : memref<368x32xf32, #tpu.memory_space<vmem>>, vector<16x32xf32>
    %c288 = arith.constant 288 : index
    %c0_52 = arith.constant 0 : index
    %116 = vector.load %arg2[%c288, %c0_52] : memref<368x32xf32, #tpu.memory_space<vmem>>, vector<1x32xf32>
    %c296 = arith.constant 296 : index
    %c0_53 = arith.constant 0 : index
    %117 = vector.load %arg2[%c296, %c0_53] : memref<368x32xf32, #tpu.memory_space<vmem>>, vector<32x16xf32>
    %c328 = arith.constant 328 : index
    %c0_54 = arith.constant 0 : index
    %118 = vector.load %arg2[%c328, %c0_54] : memref<368x32xf32, #tpu.memory_space<vmem>>, vector<1x16xf32>
    %c336 = arith.constant 336 : index
    %c0_55 = arith.constant 0 : index
    %119 = vector.load %arg2[%c336, %c0_55] : memref<368x32xf32, #tpu.memory_space<vmem>>, vector<16x4xf32>
    %c352 = arith.constant 352 : index
    %c0_56 = arith.constant 0 : index
    %120 = vector.load %arg2[%c352, %c0_56] : memref<368x32xf32, #tpu.memory_space<vmem>>, vector<1x4xf32>
    %cst_57 = arith.constant dense<0.000000e+00> : vector<8x16xf32>
    %121 = tpu.matmul %105, %106, %cst_57 {dimension_numbers = #tpu.dot_dimension_numbers<[1], [0], [0], [1], [0, 0, 1, 1], [], []>} : vector<8x32xf32>, vector<32x16xf32>, vector<8x16xf32> -> vector<8x16xf32>
    %122 = vector.broadcast %107 : vector<1x16xf32> to vector<8x16xf32>
    %123 = arith.addf %121, %122 : vector<8x16xf32>
    %cst_58 = arith.constant dense<0.000000e+00> : vector<8x16xf32>
    %124 = tpu.matmul %123, %110, %cst_58 {dimension_numbers = #tpu.dot_dimension_numbers<[1], [0], [0], [1], [0, 0, 1, 1], [], []>} : vector<8x16xf32>, vector<16x16xf32>, vector<8x16xf32> -> vector<8x16xf32>
    %125 = vector.broadcast %112 : vector<1x16xf32> to vector<8x16xf32>
    %126 = arith.addf %124, %125 : vector<8x16xf32>
    %c360 = arith.constant 360 : index
    %c0_59 = arith.constant 0 : index
    %127 = vector.load %arg2[%c360, %c0_59] : memref<368x32xf32, #tpu.memory_space<vmem>>, vector<1x4xf32>
    %128 = vector.shape_cast %127 : vector<1x4xf32> to vector<1x4xf32>
    %129 = vector.broadcast %128 : vector<1x4xf32> to vector<8x4xf32>
    %cst_60 = arith.constant dense<0.000000e+00> : vector<8x8xf32>
    %130 = tpu.matmul %129, %108, %cst_60 {dimension_numbers = #tpu.dot_dimension_numbers<[1], [0], [0], [1], [0, 0, 1, 1], [], []>} : vector<8x4xf32>, vector<4x8xf32>, vector<8x8xf32> -> vector<8x8xf32>
    %131 = vector.broadcast %109 : vector<1x8xf32> to vector<8x8xf32>
    %132 = arith.addf %130, %131 : vector<8x8xf32>
    %cst_61 = arith.constant dense<0.000000e+00> : vector<8x16xf32>
    %133 = tpu.matmul %132, %111, %cst_61 {dimension_numbers = #tpu.dot_dimension_numbers<[1], [0], [0], [1], [0, 0, 1, 1], [], []>} : vector<8x8xf32>, vector<8x16xf32>, vector<8x16xf32> -> vector<8x16xf32>
    %134 = arith.addf %126, %133 : vector<8x16xf32>
    %135 = math.tanh %134 : vector<8x16xf32>
    %cst_62 = arith.constant dense<0.000000e+00> : vector<8x16xf32>
    %136 = tpu.matmul %135, %113, %cst_62 {dimension_numbers = #tpu.dot_dimension_numbers<[1], [0], [0], [1], [0, 0, 1, 1], [], []>} : vector<8x16xf32>, vector<16x16xf32>, vector<8x16xf32> -> vector<8x16xf32>
    %137 = vector.broadcast %114 : vector<1x16xf32> to vector<8x16xf32>
    %138 = arith.addf %136, %137 : vector<8x16xf32>
    %139 = math.tanh %138 : vector<8x16xf32>
    %cst_63 = arith.constant dense<0.000000e+00> : vector<8x32xf32>
    %140 = tpu.matmul %139, %115, %cst_63 {dimension_numbers = #tpu.dot_dimension_numbers<[1], [0], [0], [1], [0, 0, 1, 1], [], []>} : vector<8x16xf32>, vector<16x32xf32>, vector<8x32xf32> -> vector<8x32xf32>
    %141 = vector.broadcast %116 : vector<1x32xf32> to vector<8x32xf32>
    %142 = arith.addf %140, %141 : vector<8x32xf32>
    %143 = math.tanh %142 : vector<8x32xf32>
    %cst_64 = arith.constant 5.000000e-01 : f32
    %144 = vector.broadcast %cst_64 : f32 to vector<8x32xf32>
    %145 = arith.mulf %144, %143 : vector<8x32xf32>
    %cst_65 = arith.constant 1.000000e+00 : f32
    %146 = vector.broadcast %cst_65 : f32 to vector<8x32xf32>
    %147 = arith.addf %145, %146 : vector<8x32xf32>
    %148 = arith.mulf %105, %147 : vector<8x32xf32>
    %cst_66 = arith.constant dense<0.000000e+00> : vector<8x16xf32>
    %149 = tpu.matmul %148, %117, %cst_66 {dimension_numbers = #tpu.dot_dimension_numbers<[1], [0], [0], [1], [0, 0, 1, 1], [], []>} : vector<8x32xf32>, vector<32x16xf32>, vector<8x16xf32> -> vector<8x16xf32>
    %150 = vector.broadcast %118 : vector<1x16xf32> to vector<8x16xf32>
    %151 = arith.addf %149, %150 : vector<8x16xf32>
    %cst_67 = arith.constant 0.000000e+00 : f32
    %152 = vector.broadcast %cst_67 : f32 to vector<8x16xf32>
    %153 = arith.maximumf %151, %152 : vector<8x16xf32>
    %cst_68 = arith.constant dense<0.000000e+00> : vector<8x4xf32>
    %154 = tpu.matmul %153, %119, %cst_68 {dimension_numbers = #tpu.dot_dimension_numbers<[1], [0], [0], [1], [0, 0, 1, 1], [], []>} : vector<8x16xf32>, vector<16x4xf32>, vector<8x4xf32> -> vector<8x4xf32>
    %155 = vector.broadcast %120 : vector<1x4xf32> to vector<8x4xf32>
    %156 = arith.addf %154, %155 : vector<8x4xf32>
    %cst_69 = arith.constant dense<0xFF800000> : vector<4xf32>
    %157 = vector.multi_reduction <maximumf>, %156, %cst_69 [0] : vector<8x4xf32> to vector<4xf32>
    %158 = vector.shape_cast %157 : vector<4xf32> to vector<1x4xf32>
    %159 = vector.broadcast %158 : vector<1x4xf32> to vector<8x4xf32>
    %160 = arith.subf %156, %159 : vector<8x4xf32>
    %161 = math.exp %160 : vector<8x4xf32>
    %cst_70 = arith.constant dense<0.000000e+00> : vector<4xf32>
    %162 = vector.multi_reduction <add>, %161, %cst_70 [0] : vector<8x4xf32> to vector<4xf32>
    %163 = vector.shape_cast %162 : vector<4xf32> to vector<1x4xf32>
    %164 = vector.broadcast %163 : vector<1x4xf32> to vector<8x4xf32>
    %165 = arith.divf %161, %164 : vector<8x4xf32>
    %cst_71 = arith.constant dense<0.000000e+00> : vector<8x8xf32>
    %166 = tpu.matmul %165, %108, %cst_71 {dimension_numbers = #tpu.dot_dimension_numbers<[1], [0], [0], [1], [0, 0, 1, 1], [], []>} : vector<8x4xf32>, vector<4x8xf32>, vector<8x8xf32> -> vector<8x8xf32>
    %167 = vector.broadcast %109 : vector<1x8xf32> to vector<8x8xf32>
    %168 = arith.addf %166, %167 : vector<8x8xf32>
    %cst_72 = arith.constant dense<0.000000e+00> : vector<8x16xf32>
    %169 = tpu.matmul %168, %111, %cst_72 {dimension_numbers = #tpu.dot_dimension_numbers<[1], [0], [0], [1], [0, 0, 1, 1], [], []>} : vector<8x8xf32>, vector<8x16xf32>, vector<8x16xf32> -> vector<8x16xf32>
    %170 = arith.addf %126, %169 : vector<8x16xf32>
    %171 = math.tanh %170 : vector<8x16xf32>
    %cst_73 = arith.constant dense<0.000000e+00> : vector<8x16xf32>
    %172 = tpu.matmul %171, %113, %cst_73 {dimension_numbers = #tpu.dot_dimension_numbers<[1], [0], [0], [1], [0, 0, 1, 1], [], []>} : vector<8x16xf32>, vector<16x16xf32>, vector<8x16xf32> -> vector<8x16xf32>
    %173 = vector.broadcast %114 : vector<1x16xf32> to vector<8x16xf32>
    %174 = arith.addf %172, %173 : vector<8x16xf32>
    %175 = math.tanh %174 : vector<8x16xf32>
    %cst_74 = arith.constant dense<0.000000e+00> : vector<8x32xf32>
    %176 = tpu.matmul %175, %115, %cst_74 {dimension_numbers = #tpu.dot_dimension_numbers<[1], [0], [0], [1], [0, 0, 1, 1], [], []>} : vector<8x16xf32>, vector<16x32xf32>, vector<8x32xf32> -> vector<8x32xf32>
    %177 = vector.broadcast %116 : vector<1x32xf32> to vector<8x32xf32>
    %178 = arith.addf %176, %177 : vector<8x32xf32>
    %179 = math.tanh %178 : vector<8x32xf32>
    %cst_75 = arith.constant 5.000000e-01 : f32
    %180 = vector.broadcast %cst_75 : f32 to vector<8x32xf32>
    %181 = arith.mulf %180, %179 : vector<8x32xf32>
    %cst_76 = arith.constant 1.000000e+00 : f32
    %182 = vector.broadcast %cst_76 : f32 to vector<8x32xf32>
    %183 = arith.addf %181, %182 : vector<8x32xf32>
    %184 = arith.mulf %105, %183 : vector<8x32xf32>
    %cst_77 = arith.constant dense<0.000000e+00> : vector<8x16xf32>
    %185 = tpu.matmul %184, %117, %cst_77 {dimension_numbers = #tpu.dot_dimension_numbers<[1], [0], [0], [1], [0, 0, 1, 1], [], []>} : vector<8x32xf32>, vector<32x16xf32>, vector<8x16xf32> -> vector<8x16xf32>
    %186 = vector.broadcast %118 : vector<1x16xf32> to vector<8x16xf32>
    %187 = arith.addf %185, %186 : vector<8x16xf32>
    %cst_78 = arith.constant 0.000000e+00 : f32
    %188 = vector.broadcast %cst_78 : f32 to vector<8x16xf32>
    %189 = arith.maximumf %187, %188 : vector<8x16xf32>
    %cst_79 = arith.constant dense<0.000000e+00> : vector<8x4xf32>
    %190 = tpu.matmul %189, %119, %cst_79 {dimension_numbers = #tpu.dot_dimension_numbers<[1], [0], [0], [1], [0, 0, 1, 1], [], []>} : vector<8x16xf32>, vector<16x4xf32>, vector<8x4xf32> -> vector<8x4xf32>
    %191 = vector.broadcast %120 : vector<1x4xf32> to vector<8x4xf32>
    %192 = arith.addf %190, %191 : vector<8x4xf32>
    %cst_80 = arith.constant dense<0.000000e+00> : vector<4xf32>
    %193 = vector.multi_reduction <add>, %192, %cst_80 [0] : vector<8x4xf32> to vector<4xf32>
    %194 = vector.shape_cast %193 : vector<4xf32> to vector<1x4xf32>
    %cst_81 = arith.constant 1.250000e-01 : f32
    %195 = vector.broadcast %cst_81 : f32 to vector<1x4xf32>
    %196 = arith.mulf %194, %195 : vector<1x4xf32>
    %c0_82 = arith.constant 0 : index
    %c0_83 = arith.constant 0 : index
    %c0_84 = arith.constant 0 : index
    %197 = vector.load %arg3[%c0_82, %c0_83, %c0_84] : memref<1x1x4xf32, #tpu.memory_space<vmem>>, vector<1x1x4xf32>
    %198 = vector.shape_cast %197 : vector<1x1x4xf32> to vector<1x4xf32>
    %199 = vector.shape_cast %196 : vector<1x4xf32> to vector<1x1x4xf32>
    tpu.vector_store %arg3[%c0_82, %c0_83, %c0_84], %199 {strides = array<i32>} : memref<1x1x4xf32, #tpu.memory_space<vmem>>, vector<1x1x4xf32>,
    return
  }
  func.func @transform_0(%arg0: i32) -> (i32, i32, i32) {
    %c0_i32 = arith.constant 0 : i32
    %c0_i32_0 = arith.constant 0 : i32
    %c0_i32_1 = arith.constant 0 : i32
    return %arg0, %c0_i32, %c0_i32_0 : i32, i32, i32
  }
  func.func @transform_1(%arg0: i32) -> (i32, i32) {
    %c0_i32 = arith.constant 0 : i32
    %c0_i32_0 = arith.constant 0 : i32
    %c0_i32_1 = arith.constant 0 : i32
    return %c0_i32, %c0_i32_0 : i32, i32
  }
  func.func @transform_2(%arg0: i32) -> (i32, i32, i32) {
    %c0_i32 = arith.constant 0 : i32
    %c0_i32_0 = arith.constant 0 : i32
    %c0_i32_1 = arith.constant 0 : i32
    return %arg0, %c0_i32, %c0_i32_0 : i32, i32, i32
  }
}

</mosaic_0001>

<llo_original>
// kernel: bert_conv_att_forward.1
$region0: #{bert_conv_att_forward.1}
  #allocation0 [shape = 'u32[]', space=smem, size = 0x4, offset = 0x4, fixed_abs, tag = 'smem constant byte address 0x4 - core index']
  #allocation1 [shape = 'u32[144,128]{1,0:T(1,128)}', space=vmem, size = 0x12000, scoped, tag = 'internal scratch']
  %s0 = inlined_call_operand.vmem [shape: f32[2,32,16], index: 0, kind: input, shape index: {}]
  %s1 = inlined_call_operand.vmem [shape: f32[368,32], index: 1, kind: input, shape index: {}]
  %s2 = inlined_call_operand.hbm [shape: f32[2,1,4], index: 2, kind: output, shape index: {}]
  %s3 = sld [smem:[#allocation0]]
  $region41: #{bert_conv_att_forward.1} parent=0
    _
  %s5 = ssub.s32 1, %s3
  %s6 = scalar_select 0, %s5, %s3
  $region1: #{bert_conv_att_forward.1} parent=0
    #allocation2 [shape = 'u8[1024]{0}', space=vmem, size = 0x400, scoped, tag = 'output window, operand 0']
    #allocation3 [shape = 's32[2]{0}', space=sflag, size = 0x8, scoped, tag = 'scoped memory for bert_conv_att_forward.1']
    %7 = vsyncpa [#allocation3], 0
    %s8 = scalar_lea.sflag [#allocation3], 1
    %9 = vsyncpa %s8, 0
    loop: start=0, step=1, limit=4
    $region2: #{bert_conv_att_forward.1} parent=1 // loop_pre_header
      _
    $region3: #{bert_conv_att_forward.1} parent=1 // loop_header
      %s11 = sphi 0, %s15
      %p12 = scmp.ge.s32.totalorder %s11, 4
      %s21 = sphi 0, %s23
      %s24 = sphi 0, %s21
      %s25 = sphi 0, %s24
      %s41 = sphi 0, %s25
      %s45 = sphi 0, %s45
      %s47 = sphi 0, %s45
      %s48 = sphi 0, %s47
      %s62 = sphi 0, %s48
      %s68 = sphi 0, %s70
      %s71 = sphi 0, %s68
      %s72 = sphi 0, %s71
      %s88 = sphi 0, %s72
    $region4: #{bert_conv_att_forward.1} parent=1 // loop_header_branch
      %14 = sbr.rel (%p12) target = $region8
    $region5: #{bert_conv_att_forward.1} parent=1 // loop_body
      %s16 = ssub.s32 %s11, 1
      %s17 = ssub.s32 %s11, 2
      %s18 = sadd.s32 %s11, 1
      %s19 = ssub.s32 %s11, %s18
      %p20 = scmp.eq.s32.totalorder %s19, 0
      %s22 = sadd.s32 %s21, 1
      %s23 = scalar_select %p20, %s21, %s22
      %p26 = pneg %p20
      %p27 = scmp.eq.s32.totalorder %s11, 1
      %p28 = por %p26, %p27
      %p29 = scmp.ne.s32.totalorder %s21, %s24
      %p30 = scmp.eq.s32.totalorder %s11, 0
      %p31 = por %p29, %p30
      %p32 = scmp.ne.s32.totalorder %s21, %s24
      %p33 = scmp.eq.s32.totalorder %s16, 1
      %p34 = por %p32, %p33
      %p35 = scmp.ne.s32.totalorder %s24, %s25
      %p36 = scmp.eq.s32.totalorder %s16, 0
      %p37 = por %p35, %p36
      %p38 = scmp.ne.s32.totalorder %s24, %s25
      %p39 = scmp.eq.s32.totalorder %s17, 1
      %p40 = por %p38, %p39
      %p42 = scmp.ne.s32.totalorder %s25, %s41
      %p43 = scmp.eq.s32.totalorder %s17, 0
      %p44 = por %p42, %p43
      %s46 = sadd.s32 %s45, 1
      %p49 = scmp.eq.s32.totalorder %s11, 1
      %p50 = scmp.ne.s32.totalorder %s45, %s47
      %p51 = scmp.eq.s32.totalorder %s11, 0
      %p52 = por %p50, %p51
      %p53 = scmp.ne.s32.totalorder %s45, %s47
      %p54 = scmp.eq.s32.totalorder %s16, 1
      %p55 = por %p53, %p54
      %p56 = scmp.ne.s32.totalorder %s47, %s48
      %p57 = scmp.eq.s32.totalorder %s16, 0
      %p58 = por %p56, %p57
      %p59 = scmp.ne.s32.totalorder %s47, %s48
      %p60 = scmp.eq.s32.totalorder %s17, 1
      %p61 = por %p59, %p60
      %p63 = scmp.ne.s32.totalorder %s48, %s62
      %p64 = scmp.eq.s32.totalorder %s17, 0
      %p65 = por %p63, %p64
      %s66 = ssub.s32 %s11, %s18
      %p67 = scmp.eq.s32.totalorder %s66, 0
      %s69 = sadd.s32 %s68, 1
      %s70 = scalar_select %p67, %s68, %s69
      %p73 = pneg %p67
      %p74 = scmp.eq.s32.totalorder %s11, 1
      %p75 = por %p73, %p74
      %p76 = scmp.ne.s32.totalorder %s68, %s71
      %p77 = scmp.eq.s32.totalorder %s11, 0
      %p78 = por %p76, %p77
      %p79 = scmp.ne.s32.totalorder %s68, %s71
      %p80 = scmp.eq.s32.totalorder %s16, 1
      %p81 = por %p79, %p80
      %p82 = scmp.ne.s32.totalorder %s71, %s72
      %p83 = scmp.eq.s32.totalorder %s16, 0
      %p84 = por %p82, %p83
      %p85 = scmp.ne.s32.totalorder %s71, %s72
      %p86 = scmp.eq.s32.totalorder %s17, 1
      %p87 = por %p85, %p86
      %p89 = scmp.ne.s32.totalorder %s72, %s88
      %p90 = scmp.eq.s32.totalorder %s17, 0
      %p91 = por %p89, %p90
      %p92 = scmp.le.s32.totalorder 1, %s11
      %p93 = scmp.lt.s32.totalorder %s11, 3
      %p94 = pnand %p92, %p93
      %p95 = pneg %p94
      // Predicated region
      $region9: #{bert_conv_att_forward.1} parent=5 // pred_check
        _
      $region10: #{bert_conv_att_forward.1} parent=5 // pred_check_branch
        %97 = sbr.rel (%p94) target = $region12
      $region11: #{bert_conv_att_forward.1} parent=5 // pred_region
        %s98 = ssub.s32 %s11, 1
        // Predicated region
        $region13: #{bert_conv_att_forward.1} parent=11 // pred_check
          %p99 = pneg %p58
        $region14: #{bert_conv_att_forward.1} parent=11 // pred_check_branch
          %101 = sbr.rel (%p99) target = $region16
        $region15: #{bert_conv_att_forward.1} parent=11 // pred_region
          _
        $region16: #{bert_conv_att_forward.1} parent=11 // pred_fallthru
          _
      $region12: #{bert_conv_att_forward.1} parent=5 // pred_fallthru
        _
      %p102 = scmp.lt.s32.totalorder %s11, 2
      // Predicated region
      $region17: #{bert_conv_att_forward.1} parent=5 // pred_check
        %p103 = pneg %p102
      $region18: #{bert_conv_att_forward.1} parent=5 // pred_check_branch
        %105 = sbr.rel (%p103) target = $region20
      $region19: #{bert_conv_att_forward.1} parent=5 // pred_region
        // Predicated region
        $region21: #{bert_conv_att_forward.1} parent=19 // pred_check
          %p106 = pneg %p31
        $region22: #{bert_conv_att_forward.1} parent=19 // pred_check_branch
          %108 = sbr.rel (%p106) target = $region24
        $region23: #{bert_conv_att_forward.1} parent=19 // pred_region
          %p109 = scmp.lt.s32.totalorder %s11, 1
          %s110 = scalar_select %p109, %s11, 1
          %s111 = smul.addr %s110, 4
          %s112 = smul.addr %s111, 8
          %s113 = scalar_lea.vmem %s0, %s112
        $region24: #{bert_conv_att_forward.1} parent=19 // pred_fallthru
          _
      $region20: #{bert_conv_att_forward.1} parent=5 // pred_fallthru
        _
      %p114 = scmp.le.s32.totalorder 1, %s11
      %p115 = scmp.lt.s32.totalorder %s11, 3
      %p116 = pnand %p114, %p115
      %p117 = pneg %p116
      // Predicated region
      $region25: #{bert_conv_att_forward.1} parent=5 // pred_check
        _
      $region26: #{bert_conv_att_forward.1} parent=5 // pred_check_branch
        %119 = sbr.rel (%p116) target = $region28
      $region27: #{bert_conv_att_forward.1} parent=5 // pred_region
        %s120 = ssub.s32 %s11, 1
        %p121 = scmp.lt.s32.totalorder %s16, 1
        %s122 = scalar_select %p121, %s16, 1
        %s123 = smul.addr %s122, 4
        %s124 = smul.addr %s123, 8
        %s125 = scalar_lea.vmem %s0, %s124
        %p126 = pneg %p37
        %p127 = pneg %p34
        %p128 = pneg %p58
        %p129 = pneg %p55
        %p130 = pneg %p84
        %p131 = pneg %p81
        %s132 = sand.u32 %s71, 1
        %s133 = scalar_lea.sflag [#allocation3], %s132
        %s134 = sand.u32 %s71, 1
        %s135 = scalar_lea.vmem [#allocation2], %s134
        %p136 = scmp.lt.s32.totalorder %s16, 1
        %s137 = scalar_select %p136, %s16, 1
        %s138 = smul.addr %s137, 4
        %s139 = smul.addr %s138, 8
        %s140 = scalar_lea.vmem %s0, %s139
        %v141 = vld [vmem:[%s140] sm:$0xff]
        %v142 = vld [vmem:[%s140 + $0x8] sm:$0xff]
        %v143 = vld [vmem:[%s140 + $0x10] sm:$0xff]
        %v144 = vld [vmem:[%s140 + $0x18] sm:$0xff]
        %v145 = vld [vmem:[%s1] sm:$0xff]
        %v146 = vld [vmem:[%s1 + $0x8] sm:$0xff]
        %v147 = vld [vmem:[%s1 + $0x10] sm:$0xff]
        %v148 = vld [vmem:[%s1 + $0x18] sm:$0xff]
        %v149 = vld [vmem:[%s1 + $0x20] sm:$0xff]
        %v150 = vld [vmem:[%s1 + $0x28] sm:$0xff]
        %v151 = vld [vmem:[%s1 + $0x30] sm:$0x1]
        %vm152 = vcmask 130048
        %v154 = vsel %vm152, %v141, 0
        %v157 = vsel %vm152, %v142, 0
        %v160 = vsel %vm152, %v143, 0
        %v163 = vsel %vm152, %v144, 0
        %165 = vmatprep.subr.mxu0 0.0
        %166 = vmatpush1.msra.mxu0 %v145
        %167 = vmatprep.subr.mxu0 0.0
        %168 = vmatpush1.msra.mxu0 %v146
        %169 = vmatprep.subr.mxu0 0.0
        %170 = vmatpush1.msra.mxu0 0.0
        %171 = vmatprep.subr.mxu0 0.0
        %172 = vmatpush1.msra.mxu0 0.0
        %173 = vmatprep.subr.mxu0 0.0
        %174 = vmatpush1.msra.mxu0 0.0
        %175 = vmatprep.subr.mxu0 0.0
        %176 = vmatpush1.msra.mxu0 0.0
        %177 = vmatprep.subr.mxu0 0.0
        %178 = vmatpush1.msra.mxu0 0.0
        %179 = vmatprep.subr.mxu0 0.0
        %180 = vmatpush1.msra.mxu0 0.0
        %181 = vmatprep.subr.mxu0 0.0
        %182 = vmatpush1.msra.mxu0 0.0
        %183 = vmatprep.subr.mxu0 0.0
        %184 = vmatpush1.msra.mxu0 0.0
        %185 = vmatprep.subr.mxu0 0.0
        %186 = vmatpush1.msra.mxu0 0.0
        %187 = vmatprep.subr.mxu0 0.0
        %188 = vmatpush1.msra.mxu0 0.0
        %189 = vmatprep.subr.mxu0 0.0
        %190 = vmatpush1.msra.mxu0 0.0
        %191 = vmatprep.subr.mxu0 0.0
        %192 = vmatpush1.msra.mxu0 0.0
        %193 = vmatprep.subr.mxu0 0.0
        %194 = vmatpush1.msra.mxu0 0.0
        %195 = vmatprep.subr.mxu0 0.0
        %196 = vmatpush1.msra.mxu0 0.0
        %197 = vmatprep.subr.mxu0 0.0
        %198 = vmatpush1.msra.mxu0 0.0
        %199 = vmatprep.subr.mxu0 0.0
        %200 = vmatpush1.msra.mxu0 0.0
        %201 = vmatprep.subr.mxu0 0.0
        %202 = vmatpush1.msra.mxu0 0.0
        %203 = vmatprep.subr.mxu0 0.0
        %204 = vmatpush1.msra.mxu0 0.0
        %205 = vmatprep.subr.mxu0 0.0
        %206 = vmatpush1.msra.mxu0 0.0
        %207 = vmatprep.subr.mxu0 0.0
        %208 = vmatpush1.msra.mxu0 0.0
        %209 = vmatprep.subr.mxu0 0.0
        %210 = vmatpush1.msra.mxu0 0.0
        %211 = vmatprep.subr.mxu0 0.0
        %212 = vmatpush1.msra.mxu0 0.0
        %213 = vmatprep.subr.mxu0 0.0
        %214 = vmatpush1.msra.mxu0 0.0
        %215 = vmatprep.subr.mxu0 0.0
        %216 = vmatpush1.msra.mxu0 0.0
        %217 = vmatprep.subr.mxu0 0.0
        %218 = vmatpush1.msra.mxu0 0.0
        %219 = vmatprep.subr.mxu0 0.0
        %220 = vmatpush1.msra.mxu0 0.0
        %221 = vmatprep.subr.mxu0 0.0
        %222 = vmatpush1.msra.mxu0 0.0
        %223 = vmatprep.subr.mxu0 0.0
        %224 = vmatpush1.msra.mxu0 0.0
        %225 = vmatprep.subr.mxu0 0.0
        %226 = vmatpush1.msra.mxu0 0.0
        %227 = vmatprep.subr.mxu0 0.0
        %228 = vmatpush1.msra.mxu0 0.0
        %229 = vmatprep.mubr.f32.mxu0 0.0
        %230 = vmatmul.mubr.f32.gmra.mrb[0].mxu0 %v154
        %v231 = vpop.f32.mrb[0].mxu0
        %v232 = vadd.f32 0.0, %v231
        %v233 = vpop.f32.mrb[0].mxu0
        %234 = vmatprep.mubr.f32.mxu0 0.0
        %235 = vmatmul.mubr.f32.gmra.mrb[0].mxu0 %v157
        %v236 = vpop.f32.mrb[0].mxu0
        %v237 = vadd.f32 0.0, %v236
        %v238 = vpop.f32.mrb[0].mxu0
        %239 = vmatprep.mubr.f32.mxu0 0.0
        %240 = vmatmul.mubr.f32.gmra.mrb[0].mxu0 %v160
        %v241 = vpop.f32.mrb[0].mxu0
        %v242 = vadd.f32 0.0, %v241
        %v243 = vpop.f32.mrb[0].mxu0
        %244 = vmatprep.mubr.f32.mxu0 0.0
        %245 = vmatmul.mubr.f32.gmra.mrb[0].mxu0 %v163
        %v246 = vpop.f32.mrb[0].mxu0
        %v247 = vadd.f32 0.0, %v246
        %v248 = vpop.f32.mrb[0].mxu0
        %249 = vdwg.mxu0
        %250 = vmatprep.subr.mxu0 0.0
        %251 = vmatpush1.msra.mxu0 %v147
        %252 = vmatprep.subr.mxu0 0.0
        %253 = vmatpush1.msra.mxu0 %v148
        %254 = vmatprep.subr.mxu0 0.0
        %255 = vmatpush1.msra.mxu0 0.0
        %256 = vmatprep.subr.mxu0 0.0
        %257 = vmatpush1.msra.mxu0 0.0
        %258 = vmatprep.subr.mxu0 0.0
        %259 = vmatpush1.msra.mxu0 0.0
        %260 = vmatprep.subr.mxu0 0.0
        %261 = vmatpush1.msra.mxu0 0.0
        %262 = vmatprep.subr.mxu0 0.0
        %263 = vmatpush1.msra.mxu0 0.0
        %264 = vmatprep.subr.mxu0 0.0
        %265 = vmatpush1.msra.mxu0 0.0
        %266 = vmatprep.subr.mxu0 0.0
        %267 = vmatpush1.msra.mxu0 0.0
        %268 = vmatprep.subr.mxu0 0.0
        %269 = vmatpush1.msra.mxu0 0.0
        %270 = vmatprep.subr.mxu0 0.0
        %271 = vmatpush1.msra.mxu0 0.0
        %272 = vmatprep.subr.mxu0 0.0
        %273 = vmatpush1.msra.mxu0 0.0
        %274 = vmatprep.subr.mxu0 0.0
        %275 = vmatpush1.msra.mxu0 0.0
        %276 = vmatprep.subr.mxu0 0.0
        %277 = vmatpush1.msra.mxu0 0.0
        %278 = vmatprep.subr.mxu0 0.0
        %279 = vmatpush1.msra.mxu0 0.0
        %280 = vmatprep.subr.mxu0 0.0
        %281 = vmatpush1.msra.mxu0 0.0
        %282 = vmatprep.subr.mxu0 0.0
        %283 = vmatpush1.msra.mxu0 0.0
        %284 = vmatprep.subr.mxu0 0.0
        %285 = vmatpush1.msra.mxu0 0.0
        %286 = vmatprep.subr.mxu0 0.0
        %287 = vmatpush1.msra.mxu0 0.0
        %288 = vmatprep.subr.mxu0 0.0
        %289 = vmatpush1.msra.mxu0 0.0
        %290 = vmatprep.subr.mxu0 0.0
        %291 = vmatpush1.msra.mxu0 0.0
        %292 = vmatprep.subr.mxu0 0.0
        %293 = vmatpush1.msra.mxu0 0.0
        %294 = vmatprep.subr.mxu0 0.0
        %295 = vmatpush1.msra.mxu0 0.0
        %296 = vmatprep.subr.mxu0 0.0
        %297 = vmatpush1.msra.mxu0 0.0
        %298 = vmatprep.subr.mxu0 0.0
        %299 = vmatpush1.msra.mxu0 0.0
        %300 = vmatprep.subr.mxu0 0.0
        %301 = vmatpush1.msra.mxu0 0.0
        %302 = vmatprep.subr.mxu0 0.0
        %303 = vmatpush1.msra.mxu0 0.0
        %304 = vmatprep.subr.mxu0 0.0
        %305 = vmatpush1.msra.mxu0 0.0
        %306 = vmatprep.subr.mxu0 0.0
        %307 = vmatpush1.msra.mxu0 0.0
        %308 = vmatprep.subr.mxu0 0.0
        %309 = vmatpush1.msra.mxu0 0.0
        %310 = vmatprep.subr.mxu0 0.0
        %311 = vmatpush1.msra.mxu0 0.0
        %312 = vmatprep.subr.mxu0 0.0
        %313 = vmatpush1.msra.mxu0 0.0
        %314 = vmatprep.mubr.f32.mxu0 0.0
        %315 = vmatmul.mubr.f32.gmra.mrb[0].mxu0 %v154
        %v316 = vpop.f32.mrb[0].mxu0
        %v317 = vadd.f32 0.0, %v316
        %v318 = vpop.f32.mrb[0].mxu0
        %319 = vmatprep.mubr.f32.mxu0 0.0
        %320 = vmatmul.mubr.f32.gmra.mrb[0].mxu0 %v157
        %v321 = vpop.f32.mrb[0].mxu0
        %v322 = vadd.f32 0.0, %v321
        %v323 = vpop.f32.mrb[0].mxu0
        %324 = vmatprep.mubr.f32.mxu0 0.0
        %325 = vmatmul.mubr.f32.gmra.mrb[0].mxu0 %v160
        %v326 = vpop.f32.mrb[0].mxu0
        %v327 = vadd.f32 0.0, %v326
        %v328 = vpop.f32.mrb[0].mxu0
        %329 = vmatprep.mubr.f32.mxu0 0.0
        %330 = vmatmul.mubr.f32.gmra.mrb[0].mxu0 %v163
        %v331 = vpop.f32.mrb[0].mxu0
        %v332 = vadd.f32 0.0, %v331
        %v333 = vpop.f32.mrb[0].mxu0
        %334 = vdwg.mxu0
        %335 = vmatprep.subr.mxu0 0.0
        %336 = vmatpush1.msra.mxu0 %v149
        %337 = vmatprep.subr.mxu0 0.0
        %338 = vmatpush1.msra.mxu0 %v150
        %339 = vmatprep.subr.mxu0 0.0
        %340 = vmatpush1.msra.mxu0 0.0
        %341 = vmatprep.subr.mxu0 0.0
        %342 = vmatpush1.msra.mxu0 0.0
        %343 = vmatprep.subr.mxu0 0.0
        %344 = vmatpush1.msra.mxu0 0.0
        %345 = vmatprep.subr.mxu0 0.0
        %346 = vmatpush1.msra.mxu0 0.0
        %347 = vmatprep.subr.mxu0 0.0
        %348 = vmatpush1.msra.mxu0 0.0
        %349 = vmatprep.subr.mxu0 0.0
        %350 = vmatpush1.msra.mxu0 0.0
        %351 = vmatprep.subr.mxu0 0.0
        %352 = vmatpush1.msra.mxu0 0.0
        %353 = vmatprep.subr.mxu0 0.0
        %354 = vmatpush1.msra.mxu0 0.0
        %355 = vmatprep.subr.mxu0 0.0
        %356 = vmatpush1.msra.mxu0 0.0
        %357 = vmatprep.subr.mxu0 0.0
        %358 = vmatpush1.msra.mxu0 0.0
        %359 = vmatprep.subr.mxu0 0.0
        %360 = vmatpush1.msra.mxu0 0.0
        %361 = vmatprep.subr.mxu0 0.0
        %362 = vmatpush1.msra.mxu0 0.0
        %363 = vmatprep.subr.mxu0 0.0
        %364 = vmatpush1.msra.mxu0 0.0
        %365 = vmatprep.subr.mxu0 0.0
        %366 = vmatpush1.msra.mxu0 0.0
        %367 = vmatprep.subr.mxu0 0.0
        %368 = vmatpush1.msra.mxu0 0.0
        %369 = vmatprep.subr.mxu0 0.0
        %370 = vmatpush1.msra.mxu0 0.0
        %371 = vmatprep.subr.mxu0 0.0
        %372 = vmatpush1.msra.mxu0 0.0
        %373 = vmatprep.subr.mxu0 0.0
        %374 = vmatpush1.msra.mxu0 0.0
        %375 = vmatprep.subr.mxu0 0.0
        %376 = vmatpush1.msra.mxu0 0.0
        %377 = vmatprep.subr.mxu0 0.0
        %378 = vmatpush1.msra.mxu0 0.0
        %379 = vmatprep.subr.mxu0 0.0
        %380 = vmatpush1.msra.mxu0 0.0
        %381 = vmatprep.subr.mxu0 0.0
        %382 = vmatpush1.msra.mxu0 0.0
        %383 = vmatprep.subr.mxu0 0.0
        %384 = vmatpush1.msra.mxu0 0.0
        %385 = vmatprep.subr.mxu0 0.0
        %386 = vmatpush1.msra.mxu0 0.0
        %387 = vmatprep.subr.mxu0 0.0
        %388 = vmatpush1.msra.mxu0 0.0
        %389 = vmatprep.subr.mxu0 0.0
        %390 = vmatpush1.msra.mxu0 0.0
        %391 = vmatprep.subr.mxu0 0.0
        %392 = vmatpush1.msra.mxu0 0.0
        %393 = vmatprep.subr.mxu0 0.0
        %394 = vmatpush1.msra.mxu0 0.0
        %395 = vmatprep.subr.mxu0 0.0
        %396 = vmatpush1.msra.mxu0 0.0
        %397 = vmatprep.subr.mxu0 0.0
        %398 = vmatpush1.msra.mxu0 0.0
        %399 = vmatprep.mubr.f32.mxu0 0.0
        %400 = vmatmul.mubr.f32.gmra.mrb[0].mxu0 %v154
        %v401 = vpop.f32.mrb[0].mxu0
        %v402 = vadd.f32 0.0, %v401
        %v403 = vpop.f32.mrb[0].mxu0
        %404 = vmatprep.mubr.f32.mxu0 0.0
        %405 = vmatmul.mubr.f32.gmra.mrb[0].mxu0 %v157
        %v406 = vpop.f32.mrb[0].mxu0
        %v407 = vadd.f32 0.0, %v406
        %v408 = vpop.f32.mrb[0].mxu0
        %409 = vmatprep.mubr.f32.mxu0 0.0
        %410 = vmatmul.mubr.f32.gmra.mrb[0].mxu0 %v160
        %v411 = vpop.f32.mrb[0].mxu0
        %v412 = vadd.f32 0.0, %v411
        %v413 = vpop.f32.mrb[0].mxu0
        %414 = vmatprep.mubr.f32.mxu0 0.0
        %415 = vmatmul.mubr.f32.gmra.mrb[0].mxu0 %v163
        %v416 = vpop.f32.mrb[0].mxu0
        %v417 = vadd.f32 0.0, %v416
        %v418 = vpop.f32.mrb[0].mxu0
        %419 = vdwg.mxu0
        %v420 = vlaneseq
        %v421 = vshrl.u32 %v420, 7
        %v422 = vadd.s32 %v421, 8
        %v423 = vlaneseq
        %v424 = vand.u32 %v423, 127
        %v425 = vmul.u32 %v421, 2
        %v426 = vmul.u32 %v422, 2
        %v427 = vadd.s32 %v425, 4294967295
        %v428 = vadd.s32 %v426, 4294967295
        %vm429 = vcmp.eq.s32.totalorder %v424, %v427
        %vm430 = vcmp.eq.s32.totalorder %v424, %v428
        %v431 = vsel %vm429, 1, 0
        %v432 = vsel %vm430, 1, 0
        %v433 = vcvt.s32.f32 %v431
        %v434 = vcvt.s32.f32 %v432
        %vm435 = vcmp.eq.s32.totalorder %v424, %v425
        %vm436 = vcmp.eq.s32.totalorder %v424, %v426
        %v437 = vsel %vm435, 1, 0
        %v438 = vsel %vm436, 1, 0
        %v439 = vcvt.s32.f32 %v437
        %v440 = vcvt.s32.f32 %v438
        %v441 = vadd.s32 %v425, 1
        %v442 = vadd.s32 %v426, 1
        %vm443 = vcmp.eq.s32.totalorder %v424, %v441
        %vm444 = vcmp.eq.s32.totalorder %v424, %v442
        %v445 = vsel %vm443, 1, 0
        %v446 = vsel %vm444, 1, 0
        %v447 = vcvt.s32.f32 %v445
        %v448 = vcvt.s32.f32 %v446
        %v449 = vadd.s32 %v425, 2
        %v450 = vadd.s32 %v426, 2
        %vm451 = vcmp.eq.s32.totalorder %v424, %v449
        %vm452 = vcmp.eq.s32.totalorder %v424, %v450
        %v453 = vsel %vm451, 1, 0
        %v454 = vsel %vm452, 1, 0
        %v455 = vcvt.s32.f32 %v453
        %v456 = vcvt.s32.f32 %v454
        %vm457 = vcmask 261120
        %v459 = vsel %vm457, %v439, 0
        %v462 = vsel %vm457, %v440, 0
        %464 = vmatprep.subr.mxu0 0.0
        %465 = vmatpush1.msra.mxu0 %v317
        %466 = vmatprep.subr.mxu0 0.0
        %467 = vmatpush1.msra.mxu0 %v322
        %468 = vmatprep.subr.mxu0 0.0
        %469 = vmatpush1.msra.mxu0 %v327
        %470 = vmatprep.subr.mxu0 0.0
        %471 = vmatpush1.msra.mxu0 %v332
        %472 = vmatprep.subr.mxu0 0.0
        %473 = vmatpush1.msra.mxu0 0.0
        %474 = vmatprep.subr.mxu0 0.0
        %475 = vmatpush1.msra.mxu0 0.0
        %476 = vmatprep.subr.mxu0 0.0
        %477 = vmatpush1.msra.mxu0 0.0
        %478 = vmatprep.subr.mxu0 0.0
        %479 = vmatpush1.msra.mxu0 0.0
        %480 = vmatprep.subr.mxu0 0.0
        %481 = vmatpush1.msra.mxu0 0.0
        %482 = vmatprep.subr.mxu0 0.0
        %483 = vmatpush1.msra.mxu0 0.0
        %484 = vmatprep.subr.mxu0 0.0
        %485 = vmatpush1.msra.mxu0 0.0
        %486 = vmatprep.subr.mxu0 0.0
        %487 = vmatpush1.msra.mxu0 0.0
        %488 = vmatprep.subr.mxu0 0.0
        %489 = vmatpush1.msra.mxu0 0.0
        %490 = vmatprep.subr.mxu0 0.0
        %491 = vmatpush1.msra.mxu0 0.0
        %492 = vmatprep.subr.mxu0 0.0
        %493 = vmatpush1.msra.mxu0 0.0
        %494 = vmatprep.subr.mxu0 0.0
        %495 = vmatpush1.msra.mxu0 0.0
        %496 = vmatprep.subr.mxu0 0.0
        %497 = vmatpush1.msra.mxu0 0.0
        %498 = vmatprep.subr.mxu0 0.0
        %499 = vmatpush1.msra.mxu0 0.0
        %500 = vmatprep.subr.mxu0 0.0
        %501 = vmatpush1.msra.mxu0 0.0
        %502 = vmatprep.subr.mxu0 0.0
        %503 = vmatpush1.msra.mxu0 0.0
        %504 = vmatprep.subr.mxu0 0.0
        %505 = vmatpush1.msra.mxu0 0.0
        %506 = vmatprep.subr.mxu0 0.0
        %507 = vmatpush1.msra.mxu0 0.0
        %508 = vmatprep.subr.mxu0 0.0
        %509 = vmatpush1.msra.mxu0 0.0
        %510 = vmatprep.subr.mxu0 0.0
        %511 = vmatpush1.msra.mxu0 0.0
        %512 = vmatprep.subr.mxu0 0.0
        %513 = vmatpush1.msra.mxu0 0.0
        %514 = vmatprep.subr.mxu0 0.0
        %515 = vmatpush1.msra.mxu0 0.0
        %516 = vmatprep.subr.mxu0 0.0
        %517 = vmatpush1.msra.mxu0 0.0
        %518 = vmatprep.subr.mxu0 0.0
        %519 = vmatpush1.msra.mxu0 0.0
        %520 = vmatprep.subr.mxu0 0.0
        %521 = vmatpush1.msra.mxu0 0.0
        %522 = vmatprep.subr.mxu0 0.0
        %523 = vmatpush1.msra.mxu0 0.0
        %524 = vmatprep.subr.mxu0 0.0
        %525 = vmatpush1.msra.mxu0 0.0
        %526 = vmatprep.subr.mxu0 0.0
        %527 = vmatpush1.msra.mxu0 0.0
        %528 = vmatprep.mubr.f32.mxu0 0.0
        %529 = vmatmul.mubr.f32.gmra.mrb[0].mxu0 %v459
        %v530 = vpop.f32.mrb[0].mxu0
        %v531 = vadd.f32 0.0, %v530
        %v532 = vpop.f32.mrb[0].mxu0
        %533 = vmatprep.mubr.f32.mxu0 0.0
        %534 = vmatmul.mubr.f32.gmra.mrb[0].mxu0 %v462
        %v535 = vpop.f32.mrb[0].mxu0
        %v536 = vadd.f32 0.0, %v535
        %v537 = vpop.f32.mrb[0].mxu0
        %538 = vdwg.mxu0
        %v540 = vsel %vm457, %v433, 0
        %v543 = vsel %vm457, %v434, 0
        %545 = vmatprep.subr.mxu0 0.0
        %546 = vmatpush1.msra.mxu0 %v232
        %547 = vmatprep.subr.mxu0 0.0
        %548 = vmatpush1.msra.mxu0 %v237
        %549 = vmatprep.subr.mxu0 0.0
        %550 = vmatpush1.msra.mxu0 %v242
        %551 = vmatprep.subr.mxu0 0.0
        %552 = vmatpush1.msra.mxu0 %v247
        %553 = vmatprep.subr.mxu0 0.0
        %554 = vmatpush1.msra.mxu0 0.0
        %555 = vmatprep.subr.mxu0 0.0
        %556 = vmatpush1.msra.mxu0 0.0
        %557 = vmatprep.subr.mxu0 0.0
        %558 = vmatpush1.msra.mxu0 0.0
        %559 = vmatprep.subr.mxu0 0.0
        %560 = vmatpush1.msra.mxu0 0.0
        %561 = vmatprep.subr.mxu0 0.0
        %562 = vmatpush1.msra.mxu0 0.0
        %563 = vmatprep.subr.mxu0 0.0
        %564 = vmatpush1.msra.mxu0 0.0
        %565 = vmatprep.subr.mxu0 0.0
        %566 = vmatpush1.msra.mxu0 0.0
        %567 = vmatprep.subr.mxu0 0.0
        %568 = vmatpush1.msra.mxu0 0.0
        %569 = vmatprep.subr.mxu0 0.0
        %570 = vmatpush1.msra.mxu0 0.0
        %571 = vmatprep.subr.mxu0 0.0
        %572 = vmatpush1.msra.mxu0 0.0
        %573 = vmatprep.subr.mxu0 0.0
        %574 = vmatpush1.msra.mxu0 0.0
        %575 = vmatprep.subr.mxu0 0.0
        %576 = vmatpush1.msra.mxu0 0.0
        %577 = vmatprep.subr.mxu0 0.0
        %578 = vmatpush1.msra.mxu0 0.0
        %579 = vmatprep.subr.mxu0 0.0
        %580 = vmatpush1.msra.mxu0 0.0
        %581 = vmatprep.subr.mxu0 0.0
        %582 = vmatpush1.msra.mxu0 0.0
        %583 = vmatprep.subr.mxu0 0.0
        %584 = vmatpush1.msra.mxu0 0.0
        %585 = vmatprep.subr.mxu0 0.0
        %586 = vmatpush1.msra.mxu0 0.0
        %587 = vmatprep.subr.mxu0 0.0
        %588 = vmatpush1.msra.mxu0 0.0
        %589 = vmatprep.subr.mxu0 0.0
        %590 = vmatpush1.msra.mxu0 0.0
        %591 = vmatprep.subr.mxu0 0.0
        %592 = vmatpush1.msra.mxu0 0.0
        %593 = vmatprep.subr.mxu0 0.0
        %594 = vmatpush1.msra.mxu0 0.0
        %595 = vmatprep.subr.mxu0 0.0
        %596 = vmatpush1.msra.mxu0 0.0
        %597 = vmatprep.subr.mxu0 0.0
        %598 = vmatpush1.msra.mxu0 0.0
        %599 = vmatprep.subr.mxu0 0.0
        %600 = vmatpush1.msra.mxu0 0.0
        %601 = vmatprep.subr.mxu0 0.0
        %602 = vmatpush1.msra.mxu0 0.0
        %603 = vmatprep.subr.mxu0 0.0
        %604 = vmatpush1.msra.mxu0 0.0
        %605 = vmatprep.subr.mxu0 0.0
        %606 = vmatpush1.msra.mxu0 0.0
        %607 = vmatprep.subr.mxu0 0.0
        %608 = vmatpush1.msra.mxu0 0.0
        %609 = vmatprep.mubr.f32.mxu0 0.0
        %610 = vmatmul.mubr.f32.gmra.mrb[0].mxu0 %v540
        %v611 = vpop.f32.mrb[0].mxu0
        %v612 = vadd.f32 %v531, %v611
        %v613 = vpop.f32.mrb[0].mxu0
        %614 = vmatprep.mubr.f32.mxu0 0.0
        %615 = vmatmul.mubr.f32.gmra.mrb[0].mxu0 %v543
        %v616 = vpop.f32.mrb[0].mxu0
        %v617 = vadd.f32 %v536, %v616
        %v618 = vpop.f32.mrb[0].mxu0
        %619 = vdwg.mxu0
        %v621 = vsel %vm457, %v447, 0
        %v624 = vsel %vm457, %v448, 0
        %626 = vmatprep.subr.mxu0 0.0
        %627 = vmatpush1.msra.mxu0 %v402
        %628 = vmatprep.subr.mxu0 0.0
        %629 = vmatpush1.msra.mxu0 %v407
        %630 = vmatprep.subr.mxu0 0.0
        %631 = vmatpush1.msra.mxu0 %v412
        %632 = vmatprep.subr.mxu0 0.0
        %633 = vmatpush1.msra.mxu0 %v417
        %634 = vmatprep.subr.mxu0 0.0
        %635 = vmatpush1.msra.mxu0 0.0
        %636 = vmatprep.subr.mxu0 0.0
        %637 = vmatpush1.msra.mxu0 0.0
        %638 = vmatprep.subr.mxu0 0.0
        %639 = vmatpush1.msra.mxu0 0.0
        %640 = vmatprep.subr.mxu0 0.0
        %641 = vmatpush1.msra.mxu0 0.0
        %642 = vmatprep.subr.mxu0 0.0
        %643 = vmatpush1.msra.mxu0 0.0
        %644 = vmatprep.subr.mxu0 0.0
        %645 = vmatpush1.msra.mxu0 0.0
        %646 = vmatprep.subr.mxu0 0.0
        %647 = vmatpush1.msra.mxu0 0.0
        %648 = vmatprep.subr.mxu0 0.0
        %649 = vmatpush1.msra.mxu0 0.0
        %650 = vmatprep.subr.mxu0 0.0
        %651 = vmatpush1.msra.mxu0 0.0
        %652 = vmatprep.subr.mxu0 0.0
        %653 = vmatpush1.msra.mxu0 0.0
        %654 = vmatprep.subr.mxu0 0.0
        %655 = vmatpush1.msra.mxu0 0.0
        %656 = vmatprep.subr.mxu0 0.0
        %657 = vmatpush1.msra.mxu0 0.0
        %658 = vmatprep.subr.mxu0 0.0
        %659 = vmatpush1.msra.mxu0 0.0
        %660 = vmatprep.subr.mxu0 0.0
        %661 = vmatpush1.msra.mxu0 0.0
        %662 = vmatprep.subr.mxu0 0.0
        %663 = vmatpush1.msra.mxu0 0.0
        %664 = vmatprep.subr.mxu0 0.0
        %665 = vmatpush1.msra.mxu0 0.0
        %666 = vmatprep.subr.mxu0 0.0
        %667 = vmatpush1.msra.mxu0 0.0
        %668 = vmatprep.subr.mxu0 0.0
        %669 = vmatpush1.msra.mxu0 0.0
        %670 = vmatprep.subr.mxu0 0.0
        %671 = vmatpush1.msra.mxu0 0.0
        %672 = vmatprep.subr.mxu0 0.0
        %673 = vmatpush1.msra.mxu0 0.0
        %674 = vmatprep.subr.mxu0 0.0
        %675 = vmatpush1.msra.mxu0 0.0
        %676 = vmatprep.subr.mxu0 0.0
        %677 = vmatpush1.msra.mxu0 0.0
        %678 = vmatprep.subr.mxu0 0.0
        %679 = vmatpush1.msra.mxu0 0.0
        %680 = vmatprep.subr.mxu0 0.0
        %681 = vmatpush1.msra.mxu0 0.0
        %682 = vmatprep.subr.mxu0 0.0
        %683 = vmatpush1.msra.mxu0 0.0
        %684 = vmatprep.subr.mxu0 0.0
        %685 = vmatpush1.msra.mxu0 0.0
        %686 = vmatprep.subr.mxu0 0.0
        %687 = vmatpush1.msra.mxu0 0.0
        %688 = vmatprep.subr.mxu0 0.0
        %689 = vmatpush1.msra.mxu0 0.0
        %690 = vmatprep.mubr.f32.mxu0 0.0
        %691 = vmatmul.mubr.f32.gmra.mrb[0].mxu0 %v621
        %v692 = vpop.f32.mrb[0].mxu0
        %v693 = vadd.f32 0.0, %v692
        %v694 = vpop.f32.mrb[0].mxu0
        %695 = vmatprep.mubr.f32.mxu0 0.0
        %696 = vmatmul.mubr.f32.gmra.mrb[0].mxu0 %v624
        %v697 = vpop.f32.mrb[0].mxu0
        %v698 = vadd.f32 0.0, %v697
        %v699 = vpop.f32.mrb[0].mxu0
        %700 = vdwg.mxu0
        %v701 = vadd.f32 %v612, %v693
        %v702 = vadd.f32 %v617, %v698
        %703 = vmatprep.subr.mxu0 0.0
        %704 = vmatpush1.msra.mxu0 %v317
        %705 = vmatprep.subr.mxu0 0.0
        %706 = vmatpush1.msra.mxu0 %v322
        %707 = vmatprep.subr.mxu0 0.0
        %708 = vmatpush1.msra.mxu0 %v327
        %709 = vmatprep.subr.mxu0 0.0
        %710 = vmatpush1.msra.mxu0 %v332
        %711 = vmatprep.subr.mxu0 0.0
        %712 = vmatpush1.msra.mxu0 0.0
        %713 = vmatprep.subr.mxu0 0.0
        %714 = vmatpush1.msra.mxu0 0.0
        %715 = vmatprep.subr.mxu0 0.0
        %716 = vmatpush1.msra.mxu0 0.0
        %717 = vmatprep.subr.mxu0 0.0
        %718 = vmatpush1.msra.mxu0 0.0
        %719 = vmatprep.subr.mxu0 0.0
        %720 = vmatpush1.msra.mxu0 0.0
        %721 = vmatprep.subr.mxu0 0.0
        %722 = vmatpush1.msra.mxu0 0.0
        %723 = vmatprep.subr.mxu0 0.0
        %724 = vmatpush1.msra.mxu0 0.0
        %725 = vmatprep.subr.mxu0 0.0
        %726 = vmatpush1.msra.mxu0 0.0
        %727 = vmatprep.subr.mxu0 0.0
        %728 = vmatpush1.msra.mxu0 0.0
        %729 = vmatprep.subr.mxu0 0.0
        %730 = vmatpush1.msra.mxu0 0.0
        %731 = vmatprep.subr.mxu0 0.0
        %732 = vmatpush1.msra.mxu0 0.0
        %733 = vmatprep.subr.mxu0 0.0
        %734 = vmatpush1.msra.mxu0 0.0
        %735 = vmatprep.subr.mxu0 0.0
        %736 = vmatpush1.msra.mxu0 0.0
        %737 = vmatprep.subr.mxu0 0.0
        %738 = vmatpush1.msra.mxu0 0.0
        %739 = vmatprep.subr.mxu0 0.0
        %740 = vmatpush1.msra.mxu0 0.0
        %741 = vmatprep.subr.mxu0 0.0
        %742 = vmatpush1.msra.mxu0 0.0
        %743 = vmatprep.subr.mxu0 0.0
        %744 = vmatpush1.msra.mxu0 0.0
        %745 = vmatprep.subr.mxu0 0.0
        %746 = vmatpush1.msra.mxu0 0.0
        %747 = vmatprep.subr.mxu0 0.0
        %748 = vmatpush1.msra.mxu0 0.0
        %749 = vmatprep.subr.mxu0 0.0
        %750 = vmatpush1.msra.mxu0 0.0
        %751 = vmatprep.subr.mxu0 0.0
        %752 = vmatpush1.msra.mxu0 0.0
        %753 = vmatprep.subr.mxu0 0.0
        %754 = vmatpush1.msra.mxu0 0.0
        %755 = vmatprep.subr.mxu0 0.0
        %756 = vmatpush1.msra.mxu0 0.0
        %757 = vmatprep.subr.mxu0 0.0
        %758 = vmatpush1.msra.mxu0 0.0
        %759 = vmatprep.subr.mxu0 0.0
        %760 = vmatpush1.msra.mxu0 0.0
        %761 = vmatprep.subr.mxu0 0.0
        %762 = vmatpush1.msra.mxu0 0.0
        %763 = vmatprep.subr.mxu0 0.0
        %764 = vmatpush1.msra.mxu0 0.0
        %765 = vmatprep.subr.mxu0 0.0
        %766 = vmatpush1.msra.mxu0 0.0
        %767 = vmatprep.mubr.f32.mxu0 0.0
        %768 = vmatmul.mubr.f32.gmra.mrb[0].mxu0 %v621
        %v769 = vpop.f32.mrb[0].mxu0
        %v770 = vadd.f32 0.0, %v769
        %v771 = vpop.f32.mrb[0].mxu0
        %772 = vmatprep.mubr.f32.mxu0 0.0
        %773 = vmatmul.mubr.f32.gmra.mrb[0].mxu0 %v624
        %v774 = vpop.f32.mrb[0].mxu0
        %v775 = vadd.f32 0.0, %v774
        %v776 = vpop.f32.mrb[0].mxu0
        %777 = vdwg.mxu0
        %778 = vmatprep.subr.mxu0 0.0
        %779 = vmatpush1.msra.mxu0 %v232
        %780 = vmatprep.subr.mxu0 0.0
        %781 = vmatpush1.msra.mxu0 %v237
        %782 = vmatprep.subr.mxu0 0.0
        %783 = vmatpush1.msra.mxu0 %v242
        %784 = vmatprep.subr.mxu0 0.0
        %785 = vmatpush1.msra.mxu0 %v247
        %786 = vmatprep.subr.mxu0 0.0
        %787 = vmatpush1.msra.mxu0 0.0
        %788 = vmatprep.subr.mxu0 0.0
        %789 = vmatpush1.msra.mxu0 0.0
        %790 = vmatprep.subr.mxu0 0.0
        %791 = vmatpush1.msra.mxu0 0.0
        %792 = vmatprep.subr.mxu0 0.0
        %793 = vmatpush1.msra.mxu0 0.0
        %794 = vmatprep.subr.mxu0 0.0
        %795 = vmatpush1.msra.mxu0 0.0
        %796 = vmatprep.subr.mxu0 0.0
        %797 = vmatpush1.msra.mxu0 0.0
        %798 = vmatprep.subr.mxu0 0.0
        %799 = vmatpush1.msra.mxu0 0.0
        %800 = vmatprep.subr.mxu0 0.0
        %801 = vmatpush1.msra.mxu0 0.0
        %802 = vmatprep.subr.mxu0 0.0
        %803 = vmatpush1.msra.mxu0 0.0
        %804 = vmatprep.subr.mxu0 0.0
        %805 = vmatpush1.msra.mxu0 0.0
        %806 = vmatprep.subr.mxu0 0.0
        %807 = vmatpush1.msra.mxu0 0.0
        %808 = vmatprep.subr.mxu0 0.0
        %809 = vmatpush1.msra.mxu0 0.0
        %810 = vmatprep.subr.mxu0 0.0
        %811 = vmatpush1.msra.mxu0 0.0
        %812 = vmatprep.subr.mxu0 0.0
        %813 = vmatpush1.msra.mxu0 0.0
        %814 = vmatprep.subr.mxu0 0.0
        %815 = vmatpush1.msra.mxu0 0.0
        %816 = vmatprep.subr.mxu0 0.0
        %817 = vmatpush1.msra.mxu0 0.0
        %818 = vmatprep.subr.mxu0 0.0
        %819 = vmatpush1.msra.mxu0 0.0
        %820 = vmatprep.subr.mxu0 0.0
        %821 = vmatpush1.msra.mxu0 0.0
        %822 = vmatprep.subr.mxu0 0.0
        %823 = vmatpush1.msra.mxu0 0.0
        %824 = vmatprep.subr.mxu0 0.0
        %825 = vmatpush1.msra.mxu0 0.0
        %826 = vmatprep.subr.mxu0 0.0
        %827 = vmatpush1.msra.mxu0 0.0
        %828 = vmatprep.subr.mxu0 0.0
        %829 = vmatpush1.msra.mxu0 0.0
        %830 = vmatprep.subr.mxu0 0.0
        %831 = vmatpush1.msra.mxu0 0.0
        %832 = vmatprep.subr.mxu0 0.0
        %833 = vmatpush1.msra.mxu0 0.0
        %834 = vmatprep.subr.mxu0 0.0
        %835 = vmatpush1.msra.mxu0 0.0
        %836 = vmatprep.subr.mxu0 0.0
        %837 = vmatpush1.msra.mxu0 0.0
        %838 = vmatprep.subr.mxu0 0.0
        %839 = vmatpush1.msra.mxu0 0.0
        %840 = vmatprep.subr.mxu0 0.0
        %841 = vmatpush1.msra.mxu0 0.0
        %842 = vmatprep.mubr.f32.mxu0 0.0
        %843 = vmatmul.mubr.f32.gmra.mrb[0].mxu0 %v459
        %v844 = vpop.f32.mrb[0].mxu0
        %v845 = vadd.f32 %v770, %v844
        %v846 = vpop.f32.mrb[0].mxu0
        %847 = vmatprep.mubr.f32.mxu0 0.0
        %848 = vmatmul.mubr.f32.gmra.mrb[0].mxu0 %v462
        %v849 = vpop.f32.mrb[0].mxu0
        %v850 = vadd.f32 %v775, %v849
        %v851 = vpop.f32.mrb[0].mxu0
        %852 = vdwg.mxu0
        %v854 = vsel %vm457, %v455, 0
        %v857 = vsel %vm457, %v456, 0
        %859 = vmatprep.subr.mxu0 0.0
        %860 = vmatpush1.msra.mxu0 %v402
        %861 = vmatprep.subr.mxu0 0.0
        %862 = vmatpush1.msra.mxu0 %v407
        %863 = vmatprep.subr.mxu0 0.0
        %864 = vmatpush1.msra.mxu0 %v412
        %865 = vmatprep.subr.mxu0 0.0
        %866 = vmatpush1.msra.mxu0 %v417
        %867 = vmatprep.subr.mxu0 0.0
        %868 = vmatpush1.msra.mxu0 0.0
        %869 = vmatprep.subr.mxu0 0.0
        %870 = vmatpush1.msra.mxu0 0.0
        %871 = vmatprep.subr.mxu0 0.0
        %872 = vmatpush1.msra.mxu0 0.0
        %873 = vmatprep.subr.mxu0 0.0
        %874 = vmatpush1.msra.mxu0 0.0
        %875 = vmatprep.subr.mxu0 0.0
        %876 = vmatpush1.msra.mxu0 0.0
        %877 = vmatprep.subr.mxu0 0.0
        %878 = vmatpush1.msra.mxu0 0.0
        %879 = vmatprep.subr.mxu0 0.0
        %880 = vmatpush1.msra.mxu0 0.0
        %881 = vmatprep.subr.mxu0 0.0
        %882 = vmatpush1.msra.mxu0 0.0
        %883 = vmatprep.subr.mxu0 0.0
        %884 = vmatpush1.msra.mxu0 0.0
        %885 = vmatprep.subr.mxu0 0.0
        %886 = vmatpush1.msra.mxu0 0.0
        %887 = vmatprep.subr.mxu0 0.0
        %888 = vmatpush1.msra.mxu0 0.0
        %889 = vmatprep.subr.mxu0 0.0
        %890 = vmatpush1.msra.mxu0 0.0
        %891 = vmatprep.subr.mxu0 0.0
        %892 = vmatpush1.msra.mxu0 0.0
        %893 = vmatprep.subr.mxu0 0.0
        %894 = vmatpush1.msra.mxu0 0.0
        %895 = vmatprep.subr.mxu0 0.0
        %896 = vmatpush1.msra.mxu0 0.0
        %897 = vmatprep.subr.mxu0 0.0
        %898 = vmatpush1.msra.mxu0 0.0
        %899 = vmatprep.subr.mxu0 0.0
        %900 = vmatpush1.msra.mxu0 0.0
        %901 = vmatprep.subr.mxu0 0.0
        %902 = vmatpush1.msra.mxu0 0.0
        %903 = vmatprep.subr.mxu0 0.0
        %904 = vmatpush1.msra.mxu0 0.0
        %905 = vmatprep.subr.mxu0 0.0
        %906 = vmatpush1.msra.mxu0 0.0
        %907 = vmatprep.subr.mxu0 0.0
        %908 = vmatpush1.msra.mxu0 0.0
        %909 = vmatprep.subr.mxu0 0.0
        %910 = vmatpush1.msra.mxu0 0.0
        %911 = vmatprep.subr.mxu0 0.0
        %912 = vmatpush1.msra.mxu0 0.0
        %913 = vmatprep.subr.mxu0 0.0
        %914 = vmatpush1.msra.mxu0 0.0
        %915 = vmatprep.subr.mxu0 0.0
        %916 = vmatpush1.msra.mxu0 0.0
        %917 = vmatprep.subr.mxu0 0.0
        %918 = vmatpush1.msra.mxu0 0.0
        %919 = vmatprep.subr.mxu0 0.0
        %920 = vmatpush1.msra.mxu0 0.0
        %921 = vmatprep.subr.mxu0 0.0
        %922 = vmatpush1.msra.mxu0 0.0
        %923 = vmatprep.mubr.f32.mxu0 0.0
        %924 = vmatmul.mubr.f32.gmra.mrb[0].mxu0 %v854
        %v925 = vpop.f32.mrb[0].mxu0
        %v926 = vadd.f32 0.0, %v925
        %v927 = vpop.f32.mrb[0].mxu0
        %928 = vmatprep.mubr.f32.mxu0 0.0
        %929 = vmatmul.mubr.f32.gmra.mrb[0].mxu0 %v857
        %v930 = vpop.f32.mrb[0].mxu0
        %v931 = vadd.f32 0.0, %v930
        %v932 = vpop.f32.mrb[0].mxu0
        %933 = vdwg.mxu0
        %v934 = vadd.f32 %v845, %v926
        %v935 = vadd.f32 %v850, %v931
        %v936 = vmax.f32 %v701, %v934
        %v937 = vmax.f32 %v702, %v935
        %v938 = vlaneseq
        %v939 = vshrl.u32 %v938, 7
        %v940 = vsub.s32 0, %v939
        %v941 = vrot.slane %v151, %v940
        %v942 = vadd.f32 %v936, %v941
        %v943 = vadd.f32 %v937, %v941
        %v944 = vmax.f32 %v942, 0.0
        %v945 = vmax.f32 %v943, 0.0
        %v946 = vld [vmem:[%s1 + $0x38] sm:$0xff]
        %v947 = vld [vmem:[%s1 + $0x40] sm:$0xff]
        %v948 = vld [vmem:[%s1 + $0x48] sm:$0xff]
        %v949 = vld [vmem:[%s1 + $0x50] sm:$0xff]
        %v950 = vld [vmem:[%s1 + $0x58] sm:$0xff]
        %v951 = vld [vmem:[%s1 + $0x60] sm:$0xff]
        %v952 = vld [vmem:[%s1 + $0x68] sm:$0xff]
        %v953 = vld [vmem:[%s1 + $0x70] sm:$0xff]
        %v954 = vld [vmem:[%s1 + $0x78] sm:$0xff]
        %v955 = vld [vmem:[%s1 + $0x80] sm:$0xff]
        %v956 = vld [vmem:[%s1 + $0x88] sm:$0xff]
        %v957 = vld [vmem:[%s1 + $0x90] sm:$0xff]
        %v958 = vld [vmem:[%s1 + $0x98] sm:$0x1]
        %v960 = vsel %vm457, %v944, 0
        %v963 = vsel %vm457, %v945, 0
        %965 = vmatprep.subr.mxu0 0.0
        %966 = vmatpush1.msra.mxu0 %v946
        %967 = vmatprep.subr.mxu0 0.0
        %968 = vmatpush1.msra.mxu0 %v947
        %969 = vmatprep.subr.mxu0 0.0
        %970 = vmatpush1.msra.mxu0 %v948
        %971 = vmatprep.subr.mxu0 0.0
        %972 = vmatpush1.msra.mxu0 %v949
        %973 = vmatprep.subr.mxu0 0.0
        %974 = vmatpush1.msra.mxu0 0.0
        %975 = vmatprep.subr.mxu0 0.0
        %976 = vmatpush1.msra.mxu0 0.0
        %977 = vmatprep.subr.mxu0 0.0
        %978 = vmatpush1.msra.mxu0 0.0
        %979 = vmatprep.subr.mxu0 0.0
        %980 = vmatpush1.msra.mxu0 0.0
        %981 = vmatprep.subr.mxu0 0.0
        %982 = vmatpush1.msra.mxu0 0.0
        %983 = vmatprep.subr.mxu0 0.0
        %984 = vmatpush1.msra.mxu0 0.0
        %985 = vmatprep.subr.mxu0 0.0
        %986 = vmatpush1.msra.mxu0 0.0
        %987 = vmatprep.subr.mxu0 0.0
        %988 = vmatpush1.msra.mxu0 0.0
        %989 = vmatprep.subr.mxu0 0.0
        %990 = vmatpush1.msra.mxu0 0.0
        %991 = vmatprep.subr.mxu0 0.0
        %992 = vmatpush1.msra.mxu0 0.0
        %993 = vmatprep.subr.mxu0 0.0
        %994 = vmatpush1.msra.mxu0 0.0
        %995 = vmatprep.subr.mxu0 0.0
        %996 = vmatpush1.msra.mxu0 0.0
        %997 = vmatprep.subr.mxu0 0.0
        %998 = vmatpush1.msra.mxu0 0.0
        %999 = vmatprep.subr.mxu0 0.0
        %1000 = vmatpush1.msra.mxu0 0.0
        %1001 = vmatprep.subr.mxu0 0.0
        %1002 = vmatpush1.msra.mxu0 0.0
        %1003 = vmatprep.subr.mxu0 0.0
        %1004 = vmatpush1.msra.mxu0 0.0
        %1005 = vmatprep.subr.mxu0 0.0
        %1006 = vmatpush1.msra.mxu0 0.0
        %1007 = vmatprep.subr.mxu0 0.0
        %1008 = vmatpush1.msra.mxu0 0.0
        %1009 = vmatprep.subr.mxu0 0.0
        %1010 = vmatpush1.msra.mxu0 0.0
        %1011 = vmatprep.subr.mxu0 0.0
        %1012 = vmatpush1.msra.mxu0 0.0
        %1013 = vmatprep.subr.mxu0 0.0
        %1014 = vmatpush1.msra.mxu0 0.0
        %1015 = vmatprep.subr.mxu0 0.0
        %1016 = vmatpush1.msra.mxu0 0.0
        %1017 = vmatprep.subr.mxu0 0.0
        %1018 = vmatpush1.msra.mxu0 0.0
        %1019 = vmatprep.subr.mxu0 0.0
        %1020 = vmatpush1.msra.mxu0 0.0
        %1021 = vmatprep.subr.mxu0 0.0
        %1022 = vmatpush1.msra.mxu0 0.0
        %1023 = vmatprep.subr.mxu0 0.0
        %1024 = vmatpush1.msra.mxu0 0.0
        %1025 = vmatprep.subr.mxu0 0.0
        %1026 = vmatpush1.msra.mxu0 0.0
        %1027 = vmatprep.subr.mxu0 0.0
        %1028 = vmatpush1.msra.mxu0 0.0
        %1029 = vmatprep.mubr.f32.mxu0 0.0
        %1030 = vmatmul.mubr.f32.gmra.mrb[0].mxu0 %v960
        %v1031 = vpop.f32.mrb[0].mxu0
        %v1032 = vadd.f32 0.0, %v1031
        %v1033 = vpop.f32.mrb[0].mxu0
        %1034 = vmatprep.mubr.f32.mxu0 0.0
        %1035 = vmatmul.mubr.f32.gmra.mrb[0].mxu0 %v963
        %v1036 = vpop.f32.mrb[0].mxu0
        %v1037 = vadd.f32 0.0, %v1036
        %v1038 = vpop.f32.mrb[0].mxu0
        %1039 = vdwg.mxu0
        %1040 = vmatprep.subr.mxu0 0.0
        %1041 = vmatpush1.msra.mxu0 %v950
        %1042 = vmatprep.subr.mxu0 0.0
        %1043 = vmatpush1.msra.mxu0 %v951
        %1044 = vmatprep.subr.mxu0 0.0
        %1045 = vmatpush1.msra.mxu0 %v952
        %1046 = vmatprep.subr.mxu0 0.0
        %1047 = vmatpush1.msra.mxu0 %v953
        %1048 = vmatprep.subr.mxu0 0.0
        %1049 = vmatpush1.msra.mxu0 0.0
        %1050 = vmatprep.subr.mxu0 0.0
        %1051 = vmatpush1.msra.mxu0 0.0
        %1052 = vmatprep.subr.mxu0 0.0
        %1053 = vmatpush1.msra.mxu0 0.0
        %1054 = vmatprep.subr.mxu0 0.0
        %1055 = vmatpush1.msra.mxu0 0.0
        %1056 = vmatprep.subr.mxu0 0.0
        %1057 = vmatpush1.msra.mxu0 0.0
        %1058 = vmatprep.subr.mxu0 0.0
        %1059 = vmatpush1.msra.mxu0 0.0
        %1060 = vmatprep.subr.mxu0 0.0
        %1061 = vmatpush1.msra.mxu0 0.0
        %1062 = vmatprep.subr.mxu0 0.0
        %1063 = vmatpush1.msra.mxu0 0.0
        %1064 = vmatprep.subr.mxu0 0.0
        %1065 = vmatpush1.msra.mxu0 0.0
        %1066 = vmatprep.subr.mxu0 0.0
        %1067 = vmatpush1.msra.mxu0 0.0
        %1068 = vmatprep.subr.mxu0 0.0
        %1069 = vmatpush1.msra.mxu0 0.0
        %1070 = vmatprep.subr.mxu0 0.0
        %1071 = vmatpush1.msra.mxu0 0.0
        %1072 = vmatprep.subr.mxu0 0.0
        %1073 = vmatpush1.msra.mxu0 0.0
        %1074 = vmatprep.subr.mxu0 0.0
        %1075 = vmatpush1.msra.mxu0 0.0
        %1076 = vmatprep.subr.mxu0 0.0
        %1077 = vmatpush1.msra.mxu0 0.0
        %1078 = vmatprep.subr.mxu0 0.0
        %1079 = vmatpush1.msra.mxu0 0.0
        %1080 = vmatprep.subr.mxu0 0.0
        %1081 = vmatpush1.msra.mxu0 0.0
        %1082 = vmatprep.subr.mxu0 0.0
        %1083 = vmatpush1.msra.mxu0 0.0
        %1084 = vmatprep.subr.mxu0 0.0
        %1085 = vmatpush1.msra.mxu0 0.0
        %1086 = vmatprep.subr.mxu0 0.0
        %1087 = vmatpush1.msra.mxu0 0.0
        %1088 = vmatprep.subr.mxu0 0.0
        %1089 = vmatpush1.msra.mxu0 0.0
        %1090 = vmatprep.subr.mxu0 0.0
        %1091 = vmatpush1.msra.mxu0 0.0
        %1092 = vmatprep.subr.mxu0 0.0
        %1093 = vmatpush1.msra.mxu0 0.0
        %1094 = vmatprep.subr.mxu0 0.0
        %1095 = vmatpush1.msra.mxu0 0.0
        %1096 = vmatprep.subr.mxu0 0.0
        %1097 = vmatpush1.msra.mxu0 0.0
        %1098 = vmatprep.subr.mxu0 0.0
        %1099 = vmatpush1.msra.mxu0 0.0
        %1100 = vmatprep.subr.mxu0 0.0
        %1101 = vmatpush1.msra.mxu0 0.0
        %1102 = vmatprep.subr.mxu0 0.0
        %1103 = vmatpush1.msra.mxu0 0.0
        %1104 = vmatprep.mubr.f32.mxu0 0.0
        %1105 = vmatmul.mubr.f32.gmra.mrb[0].mxu0 %v960
        %v1106 = vpop.f32.mrb[0].mxu0
        %v1107 = vadd.f32 0.0, %v1106
        %v1108 = vpop.f32.mrb[0].mxu0
        %1109 = vmatprep.mubr.f32.mxu0 0.0
        %1110 = vmatmul.mubr.f32.gmra.mrb[0].mxu0 %v963
        %v1111 = vpop.f32.mrb[0].mxu0
        %v1112 = vadd.f32 0.0, %v1111
        %v1113 = vpop.f32.mrb[0].mxu0
        %1114 = vdwg.mxu0
        %1115 = vmatprep.subr.mxu0 0.0
        %1116 = vmatpush1.msra.mxu0 %v954
        %1117 = vmatprep.subr.mxu0 0.0
        %1118 = vmatpush1.msra.mxu0 %v955
        %1119 = vmatprep.subr.mxu0 0.0
        %1120 = vmatpush1.msra.mxu0 %v956
        %1121 = vmatprep.subr.mxu0 0.0
        %1122 = vmatpush1.msra.mxu0 %v957
        %1123 = vmatprep.subr.mxu0 0.0
        %1124 = vmatpush1.msra.mxu0 0.0
        %1125 = vmatprep.subr.mxu0 0.0
        %1126 = vmatpush1.msra.mxu0 0.0
        %1127 = vmatprep.subr.mxu0 0.0
        %1128 = vmatpush1.msra.mxu0 0.0
        %1129 = vmatprep.subr.mxu0 0.0
        %1130 = vmatpush1.msra.mxu0 0.0
        %1131 = vmatprep.subr.mxu0 0.0
        %1132 = vmatpush1.msra.mxu0 0.0
        %1133 = vmatprep.subr.mxu0 0.0
        %1134 = vmatpush1.msra.mxu0 0.0
        %1135 = vmatprep.subr.mxu0 0.0
        %1136 = vmatpush1.msra.mxu0 0.0
        %1137 = vmatprep.subr.mxu0 0.0
        %1138 = vmatpush1.msra.mxu0 0.0
        %1139 = vmatprep.subr.mxu0 0.0
        %1140 = vmatpush1.msra.mxu0 0.0
        %1141 = vmatprep.subr.mxu0 0.0
        %1142 = vmatpush1.msra.mxu0 0.0
        %1143 = vmatprep.subr.mxu0 0.0
        %1144 = vmatpush1.msra.mxu0 0.0
        %1145 = vmatprep.subr.mxu0 0.0
        %1146 = vmatpush1.msra.mxu0 0.0
        %1147 = vmatprep.subr.mxu0 0.0
        %1148 = vmatpush1.msra.mxu0 0.0
        %1149 = vmatprep.subr.mxu0 0.0
        %1150 = vmatpush1.msra.mxu0 0.0
        %1151 = vmatprep.subr.mxu0 0.0
        %1152 = vmatpush1.msra.mxu0 0.0
        %1153 = vmatprep.subr.mxu0 0.0
        %1154 = vmatpush1.msra.mxu0 0.0
        %1155 = vmatprep.subr.mxu0 0.0
        %1156 = vmatpush1.msra.mxu0 0.0
        %1157 = vmatprep.subr.mxu0 0.0
        %1158 = vmatpush1.msra.mxu0 0.0
        %1159 = vmatprep.subr.mxu0 0.0
        %1160 = vmatpush1.msra.mxu0 0.0
        %1161 = vmatprep.subr.mxu0 0.0
        %1162 = vmatpush1.msra.mxu0 0.0
        %1163 = vmatprep.subr.mxu0 0.0
        %1164 = vmatpush1.msra.mxu0 0.0
        %1165 = vmatprep.subr.mxu0 0.0
        %1166 = vmatpush1.msra.mxu0 0.0
        %1167 = vmatprep.subr.mxu0 0.0
        %1168 = vmatpush1.msra.mxu0 0.0
        %1169 = vmatprep.subr.mxu0 0.0
        %1170 = vmatpush1.msra.mxu0 0.0
        %1171 = vmatprep.subr.mxu0 0.0
        %1172 = vmatpush1.msra.mxu0 0.0
        %1173 = vmatprep.subr.mxu0 0.0
        %1174 = vmatpush1.msra.mxu0 0.0
        %1175 = vmatprep.subr.mxu0 0.0
        %1176 = vmatpush1.msra.mxu0 0.0
        %1177 = vmatprep.subr.mxu0 0.0
        %1178 = vmatpush1.msra.mxu0 0.0
        %1179 = vmatprep.mubr.f32.mxu0 0.0
        %1180 = vmatmul.mubr.f32.gmra.mrb[0].mxu0 %v960
        %v1181 = vpop.f32.mrb[0].mxu0
        %v1182 = vadd.f32 0.0, %v1181
        %v1183 = vpop.f32.mrb[0].mxu0
        %1184 = vmatprep.mubr.f32.mxu0 0.0
        %1185 = vmatmul.mubr.f32.gmra.mrb[0].mxu0 %v963
        %v1186 = vpop.f32.mrb[0].mxu0
        %v1187 = vadd.f32 0.0, %v1186
        %v1188 = vpop.f32.mrb[0].mxu0
        %1189 = vdwg.mxu0
        %v1190 = vsel %vm152, %v439, 0
        %1192 = vmatprep.subr.mxu0 0.0
        %1193 = vmatpush1.msra.mxu0 %v1107
        %1194 = vmatprep.subr.mxu0 0.0
        %1195 = vmatpush1.msra.mxu0 %v1112
        %1196 = vmatprep.subr.mxu0 0.0
        %1197 = vmatpush1.msra.mxu0 0.0
        %1198 = vmatprep.subr.mxu0 0.0
        %1199 = vmatpush1.msra.mxu0 0.0
        %1200 = vmatprep.subr.mxu0 0.0
        %1201 = vmatpush1.msra.mxu0 0.0
        %1202 = vmatprep.subr.mxu0 0.0
        %1203 = vmatpush1.msra.mxu0 0.0
        %1204 = vmatprep.subr.mxu0 0.0
        %1205 = vmatpush1.msra.mxu0 0.0
        %1206 = vmatprep.subr.mxu0 0.0
        %1207 = vmatpush1.msra.mxu0 0.0
        %1208 = vmatprep.subr.mxu0 0.0
        %1209 = vmatpush1.msra.mxu0 0.0
        %1210 = vmatprep.subr.mxu0 0.0
        %1211 = vmatpush1.msra.mxu0 0.0
        %1212 = vmatprep.subr.mxu0 0.0
        %1213 = vmatpush1.msra.mxu0 0.0
        %1214 = vmatprep.subr.mxu0 0.0
        %1215 = vmatpush1.msra.mxu0 0.0
        %1216 = vmatprep.subr.mxu0 0.0
        %1217 = vmatpush1.msra.mxu0 0.0
        %1218 = vmatprep.subr.mxu0 0.0
        %1219 = vmatpush1.msra.mxu0 0.0
        %1220 = vmatprep.subr.mxu0 0.0
        %1221 = vmatpush1.msra.mxu0 0.0
        %1222 = vmatprep.subr.mxu0 0.0
        %1223 = vmatpush1.msra.mxu0 0.0
        %1224 = vmatprep.subr.mxu0 0.0
        %1225 = vmatpush1.msra.mxu0 0.0
        %1226 = vmatprep.subr.mxu0 0.0
        %1227 = vmatpush1.msra.mxu0 0.0
        %1228 = vmatprep.subr.mxu0 0.0
        %1229 = vmatpush1.msra.mxu0 0.0
        %1230 = vmatprep.subr.mxu0 0.0
        %1231 = vmatpush1.msra.mxu0 0.0
        %1232 = vmatprep.subr.mxu0 0.0
        %1233 = vmatpush1.msra.mxu0 0.0
        %1234 = vmatprep.subr.mxu0 0.0
        %1235 = vmatpush1.msra.mxu0 0.0
        %1236 = vmatprep.subr.mxu0 0.0
        %1237 = vmatpush1.msra.mxu0 0.0
        %1238 = vmatprep.subr.mxu0 0.0
        %1239 = vmatpush1.msra.mxu0 0.0
        %1240 = vmatprep.subr.mxu0 0.0
        %1241 = vmatpush1.msra.mxu0 0.0
        %1242 = vmatprep.subr.mxu0 0.0
        %1243 = vmatpush1.msra.mxu0 0.0
        %1244 = vmatprep.subr.mxu0 0.0
        %1245 = vmatpush1.msra.mxu0 0.0
        %1246 = vmatprep.subr.mxu0 0.0
        %1247 = vmatpush1.msra.mxu0 0.0
        %1248 = vmatprep.subr.mxu0 0.0
        %1249 = vmatpush1.msra.mxu0 0.0
        %1250 = vmatprep.subr.mxu0 0.0
        %1251 = vmatpush1.msra.mxu0 0.0
        %1252 = vmatprep.subr.mxu0 0.0
        %1253 = vmatpush1.msra.mxu0 0.0
        %1254 = vmatprep.subr.mxu0 0.0
        %1255 = vmatpush1.msra.mxu0 0.0
        %1256 = vmatprep.mubr.f32.mxu0 0.0
        %1257 = vmatmul.mubr.f32.gmra.mrb[0].mxu0 %v1190
        %v1258 = vpop.f32.mrb[0].mxu0
        %v1259 = vadd.f32 0.0, %v1258
        %v1260 = vpop.f32.mrb[0].mxu0
        %1261 = vdwg.mxu0
        %v1262 = vsel %vm152, %v433, 0
        %1264 = vmatprep.subr.mxu0 0.0
        %1265 = vmatpush1.msra.mxu0 %v1032
        %1266 = vmatprep.subr.mxu0 0.0
        %1267 = vmatpush1.msra.mxu0 %v1037
        %1268 = vmatprep.subr.mxu0 0.0
        %1269 = vmatpush1.msra.mxu0 0.0
        %1270 = vmatprep.subr.mxu0 0.0
        %1271 = vmatpush1.msra.mxu0 0.0
        %1272 = vmatprep.subr.mxu0 0.0
        %1273 = vmatpush1.msra.mxu0 0.0
        %1274 = vmatprep.subr.mxu0 0.0
        %1275 = vmatpush1.msra.mxu0 0.0
        %1276 = vmatprep.subr.mxu0 0.0
        %1277 = vmatpush1.msra.mxu0 0.0
        %1278 = vmatprep.subr.mxu0 0.0
        %1279 = vmatpush1.msra.mxu0 0.0
        %1280 = vmatprep.subr.mxu0 0.0
        %1281 = vmatpush1.msra.mxu0 0.0
        %1282 = vmatprep.subr.mxu0 0.0
        %1283 = vmatpush1.msra.mxu0 0.0
        %1284 = vmatprep.subr.mxu0 0.0
        %1285 = vmatpush1.msra.mxu0 0.0
        %1286 = vmatprep.subr.mxu0 0.0
        %1287 = vmatpush1.msra.mxu0 0.0
        %1288 = vmatprep.subr.mxu0 0.0
        %1289 = vmatpush1.msra.mxu0 0.0
        %1290 = vmatprep.subr.mxu0 0.0
        %1291 = vmatpush1.msra.mxu0 0.0
        %1292 = vmatprep.subr.mxu0 0.0
        %1293 = vmatpush1.msra.mxu0 0.0
        %1294 = vmatprep.subr.mxu0 0.0
        %1295 = vmatpush1.msra.mxu0 0.0
        %1296 = vmatprep.subr.mxu0 0.0
        %1297 = vmatpush1.msra.mxu0 0.0
        %1298 = vmatprep.subr.mxu0 0.0
        %1299 = vmatpush1.msra.mxu0 0.0
        %1300 = vmatprep.subr.mxu0 0.0
        %1301 = vmatpush1.msra.mxu0 0.0
        %1302 = vmatprep.subr.mxu0 0.0
        %1303 = vmatpush1.msra.mxu0 0.0
        %1304 = vmatprep.subr.mxu0 0.0
        %1305 = vmatpush1.msra.mxu0 0.0
        %1306 = vmatprep.subr.mxu0 0.0
        %1307 = vmatpush1.msra.mxu0 0.0
        %1308 = vmatprep.subr.mxu0 0.0
        %1309 = vmatpush1.msra.mxu0 0.0
        %1310 = vmatprep.subr.mxu0 0.0
        %1311 = vmatpush1.msra.mxu0 0.0
        %1312 = vmatprep.subr.mxu0 0.0
        %1313 = vmatpush1.msra.mxu0 0.0
        %1314 = vmatprep.subr.mxu0 0.0
        %1315 = vmatpush1.msra.mxu0 0.0
        %1316 = vmatprep.subr.mxu0 0.0
        %1317 = vmatpush1.msra.mxu0 0.0
        %1318 = vmatprep.subr.mxu0 0.0
        %1319 = vmatpush1.msra.mxu0 0.0
        %1320 = vmatprep.subr.mxu0 0.0
        %1321 = vmatpush1.msra.mxu0 0.0
        %1322 = vmatprep.subr.mxu0 0.0
        %1323 = vmatpush1.msra.mxu0 0.0
        %1324 = vmatprep.subr.mxu0 0.0
        %1325 = vmatpush1.msra.mxu0 0.0
        %1326 = vmatprep.subr.mxu0 0.0
        %1327 = vmatpush1.msra.mxu0 0.0
        %1328 = vmatprep.mubr.f32.mxu0 0.0
        %1329 = vmatmul.mubr.f32.gmra.mrb[0].mxu0 %v1262
        %v1330 = vpop.f32.mrb[0].mxu0
        %v1331 = vadd.f32 %v1259, %v1330
        %v1332 = vpop.f32.mrb[0].mxu0
        %1333 = vdwg.mxu0
        %v1334 = vsel %vm152, %v447, 0
        %1336 = vmatprep.subr.mxu0 0.0
        %1337 = vmatpush1.msra.mxu0 %v1182
        %1338 = vmatprep.subr.mxu0 0.0
        %1339 = vmatpush1.msra.mxu0 %v1187
        %1340 = vmatprep.subr.mxu0 0.0
        %1341 = vmatpush1.msra.mxu0 0.0
        %1342 = vmatprep.subr.mxu0 0.0
        %1343 = vmatpush1.msra.mxu0 0.0
        %1344 = vmatprep.subr.mxu0 0.0
        %1345 = vmatpush1.msra.mxu0 0.0
        %1346 = vmatprep.subr.mxu0 0.0
        %1347 = vmatpush1.msra.mxu0 0.0
        %1348 = vmatprep.subr.mxu0 0.0
        %1349 = vmatpush1.msra.mxu0 0.0
        %1350 = vmatprep.subr.mxu0 0.0
        %1351 = vmatpush1.msra.mxu0 0.0
        %1352 = vmatprep.subr.mxu0 0.0
        %1353 = vmatpush1.msra.mxu0 0.0
        %1354 = vmatprep.subr.mxu0 0.0
        %1355 = vmatpush1.msra.mxu0 0.0
        %1356 = vmatprep.subr.mxu0 0.0
        %1357 = vmatpush1.msra.mxu0 0.0
        %1358 = vmatprep.subr.mxu0 0.0
        %1359 = vmatpush1.msra.mxu0 0.0
        %1360 = vmatprep.subr.mxu0 0.0
        %1361 = vmatpush1.msra.mxu0 0.0
        %1362 = vmatprep.subr.mxu0 0.0
        %1363 = vmatpush1.msra.mxu0 0.0
        %1364 = vmatprep.subr.mxu0 0.0
        %1365 = vmatpush1.msra.mxu0 0.0
        %1366 = vmatprep.subr.mxu0 0.0
        %1367 = vmatpush1.msra.mxu0 0.0
        %1368 = vmatprep.subr.mxu0 0.0
        %1369 = vmatpush1.msra.mxu0 0.0
        %1370 = vmatprep.subr.mxu0 0.0
        %1371 = vmatpush1.msra.mxu0 0.0
        %1372 = vmatprep.subr.mxu0 0.0
        %1373 = vmatpush1.msra.mxu0 0.0
        %1374 = vmatprep.subr.mxu0 0.0
        %1375 = vmatpush1.msra.mxu0 0.0
        %1376 = vmatprep.subr.mxu0 0.0
        %1377 = vmatpush1.msra.mxu0 0.0
        %1378 = vmatprep.subr.mxu0 0.0
        %1379 = vmatpush1.msra.mxu0 0.0
        %1380 = vmatprep.subr.mxu0 0.0
        %1381 = vmatpush1.msra.mxu0 0.0
        %1382 = vmatprep.subr.mxu0 0.0
        %1383 = vmatpush1.msra.mxu0 0.0
        %1384 = vmatprep.subr.mxu0 0.0
        %1385 = vmatpush1.msra.mxu0 0.0
        %1386 = vmatprep.subr.mxu0 0.0
        %1387 = vmatpush1.msra.mxu0 0.0
        %1388 = vmatprep.subr.mxu0 0.0
        %1389 = vmatpush1.msra.mxu0 0.0
        %1390 = vmatprep.subr.mxu0 0.0
        %1391 = vmatpush1.msra.mxu0 0.0
        %1392 = vmatprep.subr.mxu0 0.0
        %1393 = vmatpush1.msra.mxu0 0.0
        %1394 = vmatprep.subr.mxu0 0.0
        %1395 = vmatpush1.msra.mxu0 0.0
        %1396 = vmatprep.subr.mxu0 0.0
        %1397 = vmatpush1.msra.mxu0 0.0
        %1398 = vmatprep.subr.mxu0 0.0
        %1399 = vmatpush1.msra.mxu0 0.0
        %1400 = vmatprep.mubr.f32.mxu0 0.0
        %1401 = vmatmul.mubr.f32.gmra.mrb[0].mxu0 %v1334
        %v1402 = vpop.f32.mrb[0].mxu0
        %v1403 = vadd.f32 0.0, %v1402
        %v1404 = vpop.f32.mrb[0].mxu0
        %1405 = vdwg.mxu0
        %v1406 = vadd.f32 %v1331, %v1403
        %1407 = vmatprep.subr.mxu0 0.0
        %1408 = vmatpush1.msra.mxu0 %v1107
        %1409 = vmatprep.subr.mxu0 0.0
        %1410 = vmatpush1.msra.mxu0 %v1112
        %1411 = vmatprep.subr.mxu0 0.0
        %1412 = vmatpush1.msra.mxu0 0.0
        %1413 = vmatprep.subr.mxu0 0.0
        %1414 = vmatpush1.msra.mxu0 0.0
        %1415 = vmatprep.subr.mxu0 0.0
        %1416 = vmatpush1.msra.mxu0 0.0
        %1417 = vmatprep.subr.mxu0 0.0
        %1418 = vmatpush1.msra.mxu0 0.0
        %1419 = vmatprep.subr.mxu0 0.0
        %1420 = vmatpush1.msra.mxu0 0.0
        %1421 = vmatprep.subr.mxu0 0.0
        %1422 = vmatpush1.msra.mxu0 0.0
        %1423 = vmatprep.subr.mxu0 0.0
        %1424 = vmatpush1.msra.mxu0 0.0
        %1425 = vmatprep.subr.mxu0 0.0
        %1426 = vmatpush1.msra.mxu0 0.0
        %1427 = vmatprep.subr.mxu0 0.0
        %1428 = vmatpush1.msra.mxu0 0.0
        %1429 = vmatprep.subr.mxu0 0.0
        %1430 = vmatpush1.msra.mxu0 0.0
        %1431 = vmatprep.subr.mxu0 0.0
        %1432 = vmatpush1.msra.mxu0 0.0
        %1433 = vmatprep.subr.mxu0 0.0
        %1434 = vmatpush1.msra.mxu0 0.0
        %1435 = vmatprep.subr.mxu0 0.0
        %1436 = vmatpush1.msra.mxu0 0.0
        %1437 = vmatprep.subr.mxu0 0.0
        %1438 = vmatpush1.msra.mxu0 0.0
        %1439 = vmatprep.subr.mxu0 0.0
        %1440 = vmatpush1.msra.mxu0 0.0
        %1441 = vmatprep.subr.mxu0 0.0
        %1442 = vmatpush1.msra.mxu0 0.0
        %1443 = vmatprep.subr.mxu0 0.0
        %1444 = vmatpush1.msra.mxu0 0.0
        %1445 = vmatprep.subr.mxu0 0.0
        %1446 = vmatpush1.msra.mxu0 0.0
        %1447 = vmatprep.subr.mxu0 0.0
        %1448 = vmatpush1.msra.mxu0 0.0
        %1449 = vmatprep.subr.mxu0 0.0
        %1450 = vmatpush1.msra.mxu0 0.0
        %1451 = vmatprep.subr.mxu0 0.0
        %1452 = vmatpush1.msra.mxu0 0.0
        %1453 = vmatprep.subr.mxu0 0.0
        %1454 = vmatpush1.msra.mxu0 0.0
        %1455 = vmatprep.subr.mxu0 0.0
        %1456 = vmatpush1.msra.mxu0 0.0
        %1457 = vmatprep.subr.mxu0 0.0
        %1458 = vmatpush1.msra.mxu0 0.0
        %1459 = vmatprep.subr.mxu0 0.0
        %1460 = vmatpush1.msra.mxu0 0.0
        %1461 = vmatprep.subr.mxu0 0.0
        %1462 = vmatpush1.msra.mxu0 0.0
        %1463 = vmatprep.subr.mxu0 0.0
        %1464 = vmatpush1.msra.mxu0 0.0
        %1465 = vmatprep.subr.mxu0 0.0
        %1466 = vmatpush1.msra.mxu0 0.0
        %1467 = vmatprep.subr.mxu0 0.0
        %1468 = vmatpush1.msra.mxu0 0.0
        %1469 = vmatprep.subr.mxu0 0.0
        %1470 = vmatpush1.msra.mxu0 0.0
        %1471 = vmatprep.mubr.f32.mxu0 0.0
        %1472 = vmatmul.mubr.f32.gmra.mrb[0].mxu0 %v1334
        %v1473 = vpop.f32.mrb[0].mxu0
        %v1474 = vadd.f32 0.0, %v1473
        %v1475 = vpop.f32.mrb[0].mxu0
        %1476 = vdwg.mxu0
        %1477 = vmatprep.subr.mxu0 0.0
        %1478 = vmatpush1.msra.mxu0 %v1032
        %1479 = vmatprep.subr.mxu0 0.0
        %1480 = vmatpush1.msra.mxu0 %v1037
        %1481 = vmatprep.subr.mxu0 0.0
        %1482 = vmatpush1.msra.mxu0 0.0
        %1483 = vmatprep.subr.mxu0 0.0
        %1484 = vmatpush1.msra.mxu0 0.0
        %1485 = vmatprep.subr.mxu0 0.0
        %1486 = vmatpush1.msra.mxu0 0.0
        %1487 = vmatprep.subr.mxu0 0.0
        %1488 = vmatpush1.msra.mxu0 0.0
        %1489 = vmatprep.subr.mxu0 0.0
        %1490 = vmatpush1.msra.mxu0 0.0
        %1491 = vmatprep.subr.mxu0 0.0
        %1492 = vmatpush1.msra.mxu0 0.0
        %1493 = vmatprep.subr.mxu0 0.0
        %1494 = vmatpush1.msra.mxu0 0.0
        %1495 = vmatprep.subr.mxu0 0.0
        %1496 = vmatpush1.msra.mxu0 0.0
        %1497 = vmatprep.subr.mxu0 0.0
        %1498 = vmatpush1.msra.mxu0 0.0
        %1499 = vmatprep.subr.mxu0 0.0
        %1500 = vmatpush1.msra.mxu0 0.0
        %1501 = vmatprep.subr.mxu0 0.0
        %1502 = vmatpush1.msra.mxu0 0.0
        %1503 = vmatprep.subr.mxu0 0.0
        %1504 = vmatpush1.msra.mxu0 0.0
        %1505 = vmatprep.subr.mxu0 0.0
        %1506 = vmatpush1.msra.mxu0 0.0
        %1507 = vmatprep.subr.mxu0 0.0
        %1508 = vmatpush1.msra.mxu0 0.0
        %1509 = vmatprep.subr.mxu0 0.0
        %1510 = vmatpush1.msra.mxu0 0.0
        %1511 = vmatprep.subr.mxu0 0.0
        %1512 = vmatpush1.msra.mxu0 0.0
        %1513 = vmatprep.subr.mxu0 0.0
        %1514 = vmatpush1.msra.mxu0 0.0
        %1515 = vmatprep.subr.mxu0 0.0
        %1516 = vmatpush1.msra.mxu0 0.0
        %1517 = vmatprep.subr.mxu0 0.0
        %1518 = vmatpush1.msra.mxu0 0.0
        %1519 = vmatprep.subr.mxu0 0.0
        %1520 = vmatpush1.msra.mxu0 0.0
        %1521 = vmatprep.subr.mxu0 0.0
        %1522 = vmatpush1.msra.mxu0 0.0
        %1523 = vmatprep.subr.mxu0 0.0
        %1524 = vmatpush1.msra.mxu0 0.0
        %1525 = vmatprep.subr.mxu0 0.0
        %1526 = vmatpush1.msra.mxu0 0.0
        %1527 = vmatprep.subr.mxu0 0.0
        %1528 = vmatpush1.msra.mxu0 0.0
        %1529 = vmatprep.subr.mxu0 0.0
        %1530 = vmatpush1.msra.mxu0 0.0
        %1531 = vmatprep.subr.mxu0 0.0
        %1532 = vmatpush1.msra.mxu0 0.0
        %1533 = vmatprep.subr.mxu0 0.0
        %1534 = vmatpush1.msra.mxu0 0.0
        %1535 = vmatprep.subr.mxu0 0.0
        %1536 = vmatpush1.msra.mxu0 0.0
        %1537 = vmatprep.subr.mxu0 0.0
        %1538 = vmatpush1.msra.mxu0 0.0
        %1539 = vmatprep.subr.mxu0 0.0
        %1540 = vmatpush1.msra.mxu0 0.0
        %1541 = vmatprep.mubr.f32.mxu0 0.0
        %1542 = vmatmul.mubr.f32.gmra.mrb[0].mxu0 %v1190
        %v1543 = vpop.f32.mrb[0].mxu0
        %v1544 = vadd.f32 %v1474, %v1543
        %v1545 = vpop.f32.mrb[0].mxu0
        %1546 = vdwg.mxu0
        %v1547 = vsel %vm152, %v455, 0
        %1549 = vmatprep.subr.mxu0 0.0
        %1550 = vmatpush1.msra.mxu0 %v1182
        %1551 = vmatprep.subr.mxu0 0.0
        %1552 = vmatpush1.msra.mxu0 %v1187
        %1553 = vmatprep.subr.mxu0 0.0
        %1554 = vmatpush1.msra.mxu0 0.0
        %1555 = vmatprep.subr.mxu0 0.0
        %1556 = vmatpush1.msra.mxu0 0.0
        %1557 = vmatprep.subr.mxu0 0.0
        %1558 = vmatpush1.msra.mxu0 0.0
        %1559 = vmatprep.subr.mxu0 0.0
        %1560 = vmatpush1.msra.mxu0 0.0
        %1561 = vmatprep.subr.mxu0 0.0
        %1562 = vmatpush1.msra.mxu0 0.0
        %1563 = vmatprep.subr.mxu0 0.0
        %1564 = vmatpush1.msra.mxu0 0.0
        %1565 = vmatprep.subr.mxu0 0.0
        %1566 = vmatpush1.msra.mxu0 0.0
        %1567 = vmatprep.subr.mxu0 0.0
        %1568 = vmatpush1.msra.mxu0 0.0
        %1569 = vmatprep.subr.mxu0 0.0
        %1570 = vmatpush1.msra.mxu0 0.0
        %1571 = vmatprep.subr.mxu0 0.0
        %1572 = vmatpush1.msra.mxu0 0.0
        %1573 = vmatprep.subr.mxu0 0.0
        %1574 = vmatpush1.msra.mxu0 0.0
        %1575 = vmatprep.subr.mxu0 0.0
        %1576 = vmatpush1.msra.mxu0 0.0
        %1577 = vmatprep.subr.mxu0 0.0
        %1578 = vmatpush1.msra.mxu0 0.0
        %1579 = vmatprep.subr.mxu0 0.0
        %1580 = vmatpush1.msra.mxu0 0.0
        %1581 = vmatprep.subr.mxu0 0.0
        %1582 = vmatpush1.msra.mxu0 0.0
        %1583 = vmatprep.subr.mxu0 0.0
        %1584 = vmatpush1.msra.mxu0 0.0
        %1585 = vmatprep.subr.mxu0 0.0
        %1586 = vmatpush1.msra.mxu0 0.0
        %1587 = vmatprep.subr.mxu0 0.0
        %1588 = vmatpush1.msra.mxu0 0.0
        %1589 = vmatprep.subr.mxu0 0.0
        %1590 = vmatpush1.msra.mxu0 0.0
        %1591 = vmatprep.subr.mxu0 0.0
        %1592 = vmatpush1.msra.mxu0 0.0
        %1593 = vmatprep.subr.mxu0 0.0
        %1594 = vmatpush1.msra.mxu0 0.0
        %1595 = vmatprep.subr.mxu0 0.0
        %1596 = vmatpush1.msra.mxu0 0.0
        %1597 = vmatprep.subr.mxu0 0.0
        %1598 = vmatpush1.msra.mxu0 0.0
        %1599 = vmatprep.subr.mxu0 0.0
        %1600 = vmatpush1.msra.mxu0 0.0
        %1601 = vmatprep.subr.mxu0 0.0
        %1602 = vmatpush1.msra.mxu0 0.0
        %1603 = vmatprep.subr.mxu0 0.0
        %1604 = vmatpush1.msra.mxu0 0.0
        %1605 = vmatprep.subr.mxu0 0.0
        %1606 = vmatpush1.msra.mxu0 0.0
        %1607 = vmatprep.subr.mxu0 0.0
        %1608 = vmatpush1.msra.mxu0 0.0
        %1609 = vmatprep.subr.mxu0 0.0
        %1610 = vmatpush1.msra.mxu0 0.0
        %1611 = vmatprep.subr.mxu0 0.0
        %1612 = vmatpush1.msra.mxu0 0.0
        %1613 = vmatprep.mubr.f32.mxu0 0.0
        %1614 = vmatmul.mubr.f32.gmra.mrb[0].mxu0 %v1547
        %v1615 = vpop.f32.mrb[0].mxu0
        %v1616 = vadd.f32 0.0, %v1615
        %v1617 = vpop.f32.mrb[0].mxu0
        %1618 = vdwg.mxu0
        %v1619 = vadd.f32 %v1544, %v1616
        %v1620 = vmax.f32 %v1406, %v1619
        %v1621 = vlaneseq
        %v1622 = vshrl.u32 %v1621, 7
        %v1623 = vsub.s32 0, %v1622
        %v1624 = vrot.slane %v958, %v1623
        %v1625 = vadd.f32 %v1620, %v1624
        %v1626 = vmax.f32 %v1625, 0.0
        %v1627 = vld [vmem:[%s1 + $0xa0] sm:$0xff]
        %v1628 = vld [vmem:[%s1 + $0xa8] sm:$0xff]
        %v1629 = vld [vmem:[%s1 + $0xb0] sm:$0xff]
        %v1630 = vld [vmem:[%s1 + $0xb8] sm:$0xff]
        %v1631 = vld [vmem:[%s1 + $0xc0] sm:$0x1]
        %v1632 = vld [vmem:[%s1 + $0xc8] sm:$0xf]
        %v1633 = vld [vmem:[%s1 + $0xd0] sm:$0x1]
        %v1634 = vld [vmem:[%s1 + $0xd8] sm:$0xff]
        %v1635 = vld [vmem:[%s1 + $0xe0] sm:$0xff]
        %v1636 = vld [vmem:[%s1 + $0xe8] sm:$0xff]
        %v1637 = vld [vmem:[%s1 + $0xf0] sm:$0x1]
        %v1638 = vld [vmem:[%s1 + $0xf8] sm:$0xff]
        %v1639 = vld [vmem:[%s1 + $0x100] sm:$0xff]
        %v1640 = vld [vmem:[%s1 + $0x108] sm:$0x1]
        %v1641 = vld [vmem:[%s1 + $0x110] sm:$0xff]
        %v1642 = vld [vmem:[%s1 + $0x118] sm:$0xff]
        %v1643 = vld [vmem:[%s1 + $0x120] sm:$0x1]
        %v1644 = vld [vmem:[%s1 + $0x128] sm:$0xff]
        %v1645 = vld [vmem:[%s1 + $0x130] sm:$0xff]
        %v1646 = vld [vmem:[%s1 + $0x138] sm:$0xff]
        %v1647 = vld [vmem:[%s1 + $0x140] sm:$0xff]
        %v1648 = vld [vmem:[%s1 + $0x148] sm:$0x1]
        %v1649 = vld [vmem:[%s1 + $0x150] sm:$0xff]
        %v1650 = vld [vmem:[%s1 + $0x158] sm:$0xff]
        %v1651 = vld [vmem:[%s1 + $0x160] sm:$0x1]
        %v1652 = vlaneseq
        %v1653 = vshrl.u32 %v1652, 7
        %v1654 = vsub.s32 0, %v1653
        %v1655 = vrot.slane %v1631, %v1654
        %v1657 = vsel %vm457, %v1626, 0
        %1659 = vmatprep.subr.mxu0 0.0
        %1660 = vmatpush1.msra.mxu0 %v1627
        %1661 = vmatprep.subr.mxu0 0.0
        %1662 = vmatpush1.msra.mxu0 %v1628
        %1663 = vmatprep.subr.mxu0 0.0
        %1664 = vmatpush1.msra.mxu0 %v1629
        %1665 = vmatprep.subr.mxu0 0.0
        %1666 = vmatpush1.msra.mxu0 %v1630
        %1667 = vmatprep.subr.mxu0 0.0
        %1668 = vmatpush1.msra.mxu0 0.0
        %1669 = vmatprep.subr.mxu0 0.0
        %1670 = vmatpush1.msra.mxu0 0.0
        %1671 = vmatprep.subr.mxu0 0.0
        %1672 = vmatpush1.msra.mxu0 0.0
        %1673 = vmatprep.subr.mxu0 0.0
        %1674 = vmatpush1.msra.mxu0 0.0
        %1675 = vmatprep.subr.mxu0 0.0
        %1676 = vmatpush1.msra.mxu0 0.0
        %1677 = vmatprep.subr.mxu0 0.0
        %1678 = vmatpush1.msra.mxu0 0.0
        %1679 = vmatprep.subr.mxu0 0.0
        %1680 = vmatpush1.msra.mxu0 0.0
        %1681 = vmatprep.subr.mxu0 0.0
        %1682 = vmatpush1.msra.mxu0 0.0
        %1683 = vmatprep.subr.mxu0 0.0
        %1684 = vmatpush1.msra.mxu0 0.0
        %1685 = vmatprep.subr.mxu0 0.0
        %1686 = vmatpush1.msra.mxu0 0.0
        %1687 = vmatprep.subr.mxu0 0.0
        %1688 = vmatpush1.msra.mxu0 0.0
        %1689 = vmatprep.subr.mxu0 0.0
        %1690 = vmatpush1.msra.mxu0 0.0
        %1691 = vmatprep.subr.mxu0 0.0
        %1692 = vmatpush1.msra.mxu0 0.0
        %1693 = vmatprep.subr.mxu0 0.0
        %1694 = vmatpush1.msra.mxu0 0.0
        %1695 = vmatprep.subr.mxu0 0.0
        %1696 = vmatpush1.msra.mxu0 0.0
        %1697 = vmatprep.subr.mxu0 0.0
        %1698 = vmatpush1.msra.mxu0 0.0
        %1699 = vmatprep.subr.mxu0 0.0
        %1700 = vmatpush1.msra.mxu0 0.0
        %1701 = vmatprep.subr.mxu0 0.0
        %1702 = vmatpush1.msra.mxu0 0.0
        %1703 = vmatprep.subr.mxu0 0.0
        %1704 = vmatpush1.msra.mxu0 0.0
        %1705 = vmatprep.subr.mxu0 0.0
        %1706 = vmatpush1.msra.mxu0 0.0
        %1707 = vmatprep.subr.mxu0 0.0
        %1708 = vmatpush1.msra.mxu0 0.0
        %1709 = vmatprep.subr.mxu0 0.0
        %1710 = vmatpush1.msra.mxu0 0.0
        %1711 = vmatprep.subr.mxu0 0.0
        %1712 = vmatpush1.msra.mxu0 0.0
        %1713 = vmatprep.subr.mxu0 0.0
        %1714 = vmatpush1.msra.mxu0 0.0
        %1715 = vmatprep.subr.mxu0 0.0
        %1716 = vmatpush1.msra.mxu0 0.0
        %1717 = vmatprep.subr.mxu0 0.0
        %1718 = vmatpush1.msra.mxu0 0.0
        %1719 = vmatprep.subr.mxu0 0.0
        %1720 = vmatpush1.msra.mxu0 0.0
        %1721 = vmatprep.subr.mxu0 0.0
        %1722 = vmatpush1.msra.mxu0 0.0
        %1723 = vmatprep.mubr.f32.mxu0 0.0
        %1724 = vmatmul.mubr.f32.gmra.mrb[0].mxu0 %v1657
        %v1725 = vpop.f32.mrb[0].mxu0
        %v1726 = vadd.f32 %v1655, %v1725
        %v1727 = vpop.f32.mrb[0].mxu0
        %1728 = vdwg.mxu0
        %v1729 = vlaneseq
        %v1730 = vshrl.u32 %v1729, 7
        %v1731 = vsub.s32 0, %v1730
        %v1732 = vrot.slane %v1637, %v1731
        %v1734 = vsel %vm152, %v1726, 0
        %1736 = vmatprep.subr.mxu0 0.0
        %1737 = vmatpush1.msra.mxu0 %v1634
        %1738 = vmatprep.subr.mxu0 0.0
        %1739 = vmatpush1.msra.mxu0 %v1635
        %1740 = vmatprep.subr.mxu0 0.0
        %1741 = vmatpush1.msra.mxu0 0.0
        %1742 = vmatprep.subr.mxu0 0.0
        %1743 = vmatpush1.msra.mxu0 0.0
        %1744 = vmatprep.subr.mxu0 0.0
        %1745 = vmatpush1.msra.mxu0 0.0
        %1746 = vmatprep.subr.mxu0 0.0
        %1747 = vmatpush1.msra.mxu0 0.0
        %1748 = vmatprep.subr.mxu0 0.0
        %1749 = vmatpush1.msra.mxu0 0.0
        %1750 = vmatprep.subr.mxu0 0.0
        %1751 = vmatpush1.msra.mxu0 0.0
        %1752 = vmatprep.subr.mxu0 0.0
        %1753 = vmatpush1.msra.mxu0 0.0
        %1754 = vmatprep.subr.mxu0 0.0
        %1755 = vmatpush1.msra.mxu0 0.0
        %1756 = vmatprep.subr.mxu0 0.0
        %1757 = vmatpush1.msra.mxu0 0.0
        %1758 = vmatprep.subr.mxu0 0.0
        %1759 = vmatpush1.msra.mxu0 0.0
        %1760 = vmatprep.subr.mxu0 0.0
        %1761 = vmatpush1.msra.mxu0 0.0
        %1762 = vmatprep.subr.mxu0 0.0
        %1763 = vmatpush1.msra.mxu0 0.0
        %1764 = vmatprep.subr.mxu0 0.0
        %1765 = vmatpush1.msra.mxu0 0.0
        %1766 = vmatprep.subr.mxu0 0.0
        %1767 = vmatpush1.msra.mxu0 0.0
        %1768 = vmatprep.subr.mxu0 0.0
        %1769 = vmatpush1.msra.mxu0 0.0
        %1770 = vmatprep.subr.mxu0 0.0
        %1771 = vmatpush1.msra.mxu0 0.0
        %1772 = vmatprep.subr.mxu0 0.0
        %1773 = vmatpush1.msra.mxu0 0.0
        %1774 = vmatprep.subr.mxu0 0.0
        %1775 = vmatpush1.msra.mxu0 0.0
        %1776 = vmatprep.subr.mxu0 0.0
        %1777 = vmatpush1.msra.mxu0 0.0
        %1778 = vmatprep.subr.mxu0 0.0
        %1779 = vmatpush1.msra.mxu0 0.0
        %1780 = vmatprep.subr.mxu0 0.0
        %1781 = vmatpush1.msra.mxu0 0.0
        %1782 = vmatprep.subr.mxu0 0.0
        %1783 = vmatpush1.msra.mxu0 0.0
        %1784 = vmatprep.subr.mxu0 0.0
        %1785 = vmatpush1.msra.mxu0 0.0
        %1786 = vmatprep.subr.mxu0 0.0
        %1787 = vmatpush1.msra.mxu0 0.0
        %1788 = vmatprep.subr.mxu0 0.0
        %1789 = vmatpush1.msra.mxu0 0.0
        %1790 = vmatprep.subr.mxu0 0.0
        %1791 = vmatpush1.msra.mxu0 0.0
        %1792 = vmatprep.subr.mxu0 0.0
        %1793 = vmatpush1.msra.mxu0 0.0
        %1794 = vmatprep.subr.mxu0 0.0
        %1795 = vmatpush1.msra.mxu0 0.0
        %1796 = vmatprep.subr.mxu0 0.0
        %1797 = vmatpush1.msra.mxu0 0.0
        %1798 = vmatprep.subr.mxu0 0.0
        %1799 = vmatpush1.msra.mxu0 0.0
        %1800 = vmatprep.mubr.f32.mxu0 0.0
        %1801 = vmatmul.mubr.f32.gmra.mrb[0].mxu0 %v1734
        %v1802 = vpop.f32.mrb[0].mxu0
        %v1803 = vadd.f32 %v1732, %v1802
        %v1804 = vpop.f32.mrb[0].mxu0
        %1805 = vdwg.mxu0
        %v1806 = vld [vmem:[%s1 + $0x168] sm:$0x1]
        %v1807 = vlaneseq
        %v1808 = vshrl.u32 %v1807, 7
        %v1809 = vsub.s32 0, %v1808
        %v1810 = vrot.slane %v1806, %v1809
        %v1811 = vlaneseq
        %v1812 = vshrl.u32 %v1811, 7
        %v1813 = vsub.s32 0, %v1812
        %v1814 = vrot.slane %v1633, %v1813
        %vm1815 = vcmask 31744
        %v1817 = vsel %vm1815, %v1810, 0
        %vm1819 = vcmask 1043456
        %v1821 = vsel %vm1819, %v1632, 0
        %1823 = vmatprep.subr.mxu0 0.0
        %1824 = vmatpush1.msra.mxu0 %v1821
        %1825 = vmatprep.subr.mxu0 0.0
        %1826 = vmatpush1.msra.mxu0 0.0
        %1827 = vmatprep.subr.mxu0 0.0
        %1828 = vmatpush1.msra.mxu0 0.0
        %1829 = vmatprep.subr.mxu0 0.0
        %1830 = vmatpush1.msra.mxu0 0.0
        %1831 = vmatprep.subr.mxu0 0.0
        %1832 = vmatpush1.msra.mxu0 0.0
        %1833 = vmatprep.subr.mxu0 0.0
        %1834 = vmatpush1.msra.mxu0 0.0
        %1835 = vmatprep.subr.mxu0 0.0
        %1836 = vmatpush1.msra.mxu0 0.0
        %1837 = vmatprep.subr.mxu0 0.0
        %1838 = vmatpush1.msra.mxu0 0.0
        %1839 = vmatprep.subr.mxu0 0.0
        %1840 = vmatpush1.msra.mxu0 0.0
        %1841 = vmatprep.subr.mxu0 0.0
        %1842 = vmatpush1.msra.mxu0 0.0
        %1843 = vmatprep.subr.mxu0 0.0
        %1844 = vmatpush1.msra.mxu0 0.0
        %1845 = vmatprep.subr.mxu0 0.0
        %1846 = vmatpush1.msra.mxu0 0.0
        %1847 = vmatprep.subr.mxu0 0.0
        %1848 = vmatpush1.msra.mxu0 0.0
        %1849 = vmatprep.subr.mxu0 0.0
        %1850 = vmatpush1.msra.mxu0 0.0
        %1851 = vmatprep.subr.mxu0 0.0
        %1852 = vmatpush1.msra.mxu0 0.0
        %1853 = vmatprep.subr.mxu0 0.0
        %1854 = vmatpush1.msra.mxu0 0.0
        %1855 = vmatprep.subr.mxu0 0.0
        %1856 = vmatpush1.msra.mxu0 0.0
        %1857 = vmatprep.subr.mxu0 0.0
        %1858 = vmatpush1.msra.mxu0 0.0
        %1859 = vmatprep.subr.mxu0 0.0
        %1860 = vmatpush1.msra.mxu0 0.0
        %1861 = vmatprep.subr.mxu0 0.0
        %1862 = vmatpush1.msra.mxu0 0.0
        %1863 = vmatprep.subr.mxu0 0.0
        %1864 = vmatpush1.msra.mxu0 0.0
        %1865 = vmatprep.subr.mxu0 0.0
        %1866 = vmatpush1.msra.mxu0 0.0
        %1867 = vmatprep.subr.mxu0 0.0
        %1868 = vmatpush1.msra.mxu0 0.0
        %1869 = vmatprep.subr.mxu0 0.0
        %1870 = vmatpush1.msra.mxu0 0.0
        %1871 = vmatprep.subr.mxu0 0.0
        %1872 = vmatpush1.msra.mxu0 0.0
        %1873 = vmatprep.subr.mxu0 0.0
        %1874 = vmatpush1.msra.mxu0 0.0
        %1875 = vmatprep.subr.mxu0 0.0
        %1876 = vmatpush1.msra.mxu0 0.0
        %1877 = vmatprep.subr.mxu0 0.0
        %1878 = vmatpush1.msra.mxu0 0.0
        %1879 = vmatprep.subr.mxu0 0.0
        %1880 = vmatpush1.msra.mxu0 0.0
        %1881 = vmatprep.subr.mxu0 0.0
        %1882 = vmatpush1.msra.mxu0 0.0
        %1883 = vmatprep.subr.mxu0 0.0
        %1884 = vmatpush1.msra.mxu0 0.0
        %1885 = vmatprep.subr.mxu0 0.0
        %1886 = vmatpush1.msra.mxu0 0.0
        %1887 = vmatprep.mubr.f32.mxu0 0.0
        %1888 = vmatmul.mubr.f32.gmra.mrb[0].mxu0 %v1817
        %v1889 = vpop.f32.mrb[0].mxu0
        %v1890 = vadd.f32 %v1814, %v1889
        %v1891 = vpop.f32.mrb[0].mxu0
        %1892 = vdwg.mxu0
        %vm1893 = vcmask 64512
        %v1895 = vsel %vm1893, %v1890, 0
        %1897 = vmatprep.subr.mxu0 0.0
        %1898 = vmatpush1.msra.mxu0 %v1636
        %1899 = vmatprep.subr.mxu0 0.0
        %1900 = vmatpush1.msra.mxu0 0.0
        %1901 = vmatprep.subr.mxu0 0.0
        %1902 = vmatpush1.msra.mxu0 0.0
        %1903 = vmatprep.subr.mxu0 0.0
        %1904 = vmatpush1.msra.mxu0 0.0
        %1905 = vmatprep.subr.mxu0 0.0
        %1906 = vmatpush1.msra.mxu0 0.0
        %1907 = vmatprep.subr.mxu0 0.0
        %1908 = vmatpush1.msra.mxu0 0.0
        %1909 = vmatprep.subr.mxu0 0.0
        %1910 = vmatpush1.msra.mxu0 0.0
        %1911 = vmatprep.subr.mxu0 0.0
        %1912 = vmatpush1.msra.mxu0 0.0
        %1913 = vmatprep.subr.mxu0 0.0
        %1914 = vmatpush1.msra.mxu0 0.0
        %1915 = vmatprep.subr.mxu0 0.0
        %1916 = vmatpush1.msra.mxu0 0.0
        %1917 = vmatprep.subr.mxu0 0.0
        %1918 = vmatpush1.msra.mxu0 0.0
        %1919 = vmatprep.subr.mxu0 0.0
        %1920 = vmatpush1.msra.mxu0 0.0
        %1921 = vmatprep.subr.mxu0 0.0
        %1922 = vmatpush1.msra.mxu0 0.0
        %1923 = vmatprep.subr.mxu0 0.0
        %1924 = vmatpush1.msra.mxu0 0.0
        %1925 = vmatprep.subr.mxu0 0.0
        %1926 = vmatpush1.msra.mxu0 0.0
        %1927 = vmatprep.subr.mxu0 0.0
        %1928 = vmatpush1.msra.mxu0 0.0
        %1929 = vmatprep.subr.mxu0 0.0
        %1930 = vmatpush1.msra.mxu0 0.0
        %1931 = vmatprep.subr.mxu0 0.0
        %1932 = vmatpush1.msra.mxu0 0.0
        %1933 = vmatprep.subr.mxu0 0.0
        %1934 = vmatpush1.msra.mxu0 0.0
        %1935 = vmatprep.subr.mxu0 0.0
        %1936 = vmatpush1.msra.mxu0 0.0
        %1937 = vmatprep.subr.mxu0 0.0
        %1938 = vmatpush1.msra.mxu0 0.0
        %1939 = vmatprep.subr.mxu0 0.0
        %1940 = vmatpush1.msra.mxu0 0.0
        %1941 = vmatprep.subr.mxu0 0.0
        %1942 = vmatpush1.msra.mxu0 0.0
        %1943 = vmatprep.subr.mxu0 0.0
        %1944 = vmatpush1.msra.mxu0 0.0
        %1945 = vmatprep.subr.mxu0 0.0
        %1946 = vmatpush1.msra.mxu0 0.0
        %1947 = vmatprep.subr.mxu0 0.0
        %1948 = vmatpush1.msra.mxu0 0.0
        %1949 = vmatprep.subr.mxu0 0.0
        %1950 = vmatpush1.msra.mxu0 0.0
        %1951 = vmatprep.subr.mxu0 0.0
        %1952 = vmatpush1.msra.mxu0 0.0
        %1953 = vmatprep.subr.mxu0 0.0
        %1954 = vmatpush1.msra.mxu0 0.0
        %1955 = vmatprep.subr.mxu0 0.0
        %1956 = vmatpush1.msra.mxu0 0.0
        %1957 = vmatprep.subr.mxu0 0.0
        %1958 = vmatpush1.msra.mxu0 0.0
        %1959 = vmatprep.subr.mxu0 0.0
        %1960 = vmatpush1.msra.mxu0 0.0
        %1961 = vmatprep.mubr.f32.mxu0 0.0
        %1962 = vmatmul.mubr.f32.gmra.mrb[0].mxu0 %v1895
        %v1963 = vpop.f32.mrb[0].mxu0
        %v1964 = vadd.f32 0.0, %v1963
        %v1965 = vpop.f32.mrb[0].mxu0
        %1966 = vdwg.mxu0
        %v1967 = vadd.f32 %v1803, %v1964
        %v1968 = vtanh.pop %v1967
        %v1969 = vlaneseq
        %v1970 = vshrl.u32 %v1969, 7
        %v1971 = vsub.s32 0, %v1970
        %v1972 = vrot.slane %v1640, %v1971
        %v1974 = vsel %vm152, %v1968, 0
        %1976 = vmatprep.subr.mxu0 0.0
        %1977 = vmatpush1.msra.mxu0 %v1638
        %1978 = vmatprep.subr.mxu0 0.0
        %1979 = vmatpush1.msra.mxu0 %v1639
        %1980 = vmatprep.subr.mxu0 0.0
        %1981 = vmatpush1.msra.mxu0 0.0
        %1982 = vmatprep.subr.mxu0 0.0
        %1983 = vmatpush1.msra.mxu0 0.0
        %1984 = vmatprep.subr.mxu0 0.0
        %1985 = vmatpush1.msra.mxu0 0.0
        %1986 = vmatprep.subr.mxu0 0.0
        %1987 = vmatpush1.msra.mxu0 0.0
        %1988 = vmatprep.subr.mxu0 0.0
        %1989 = vmatpush1.msra.mxu0 0.0
        %1990 = vmatprep.subr.mxu0 0.0
        %1991 = vmatpush1.msra.mxu0 0.0
        %1992 = vmatprep.subr.mxu0 0.0
        %1993 = vmatpush1.msra.mxu0 0.0
        %1994 = vmatprep.subr.mxu0 0.0
        %1995 = vmatpush1.msra.mxu0 0.0
        %1996 = vmatprep.subr.mxu0 0.0
        %1997 = vmatpush1.msra.mxu0 0.0
        %1998 = vmatprep.subr.mxu0 0.0
        %1999 = vmatpush1.msra.mxu0 0.0
        %2000 = vmatprep.subr.mxu0 0.0
        %2001 = vmatpush1.msra.mxu0 0.0
        %2002 = vmatprep.subr.mxu0 0.0
        %2003 = vmatpush1.msra.mxu0 0.0
        %2004 = vmatprep.subr.mxu0 0.0
        %2005 = vmatpush1.msra.mxu0 0.0
        %2006 = vmatprep.subr.mxu0 0.0
        %2007 = vmatpush1.msra.mxu0 0.0
        %2008 = vmatprep.subr.mxu0 0.0
        %2009 = vmatpush1.msra.mxu0 0.0
        %2010 = vmatprep.subr.mxu0 0.0
        %2011 = vmatpush1.msra.mxu0 0.0
        %2012 = vmatprep.subr.mxu0 0.0
        %2013 = vmatpush1.msra.mxu0 0.0
        %2014 = vmatprep.subr.mxu0 0.0
        %2015 = vmatpush1.msra.mxu0 0.0
        %2016 = vmatprep.subr.mxu0 0.0
        %2017 = vmatpush1.msra.mxu0 0.0
        %2018 = vmatprep.subr.mxu0 0.0
        %2019 = vmatpush1.msra.mxu0 0.0
        %2020 = vmatprep.subr.mxu0 0.0
        %2021 = vmatpush1.msra.mxu0 0.0
        %2022 = vmatprep.subr.mxu0 0.0
        %2023 = vmatpush1.msra.mxu0 0.0
        %2024 = vmatprep.subr.mxu0 0.0
        %2025 = vmatpush1.msra.mxu0 0.0
        %2026 = vmatprep.subr.mxu0 0.0
        %2027 = vmatpush1.msra.mxu0 0.0
        %2028 = vmatprep.subr.mxu0 0.0
        %2029 = vmatpush1.msra.mxu0 0.0
        %2030 = vmatprep.subr.mxu0 0.0
        %2031 = vmatpush1.msra.mxu0 0.0
        %2032 = vmatprep.subr.mxu0 0.0
        %2033 = vmatpush1.msra.mxu0 0.0
        %2034 = vmatprep.subr.mxu0 0.0
        %2035 = vmatpush1.msra.mxu0 0.0
        %2036 = vmatprep.subr.mxu0 0.0
        %2037 = vmatpush1.msra.mxu0 0.0
        %2038 = vmatprep.subr.mxu0 0.0
        %2039 = vmatpush1.msra.mxu0 0.0
        %2040 = vmatprep.mubr.f32.mxu0 0.0
        %2041 = vmatmul.mubr.f32.gmra.mrb[0].mxu0 %v1974
        %v2042 = vpop.f32.mrb[0].mxu0
        %v2043 = vadd.f32 %v1972, %v2042
        %v2044 = vpop.f32.mrb[0].mxu0
        %2045 = vdwg.mxu0
        %v2046 = vtanh.pop %v2043
        %v2047 = vlaneseq
        %v2048 = vshrl.u32 %v2047, 7
        %v2049 = vsub.s32 0, %v2048
        %v2050 = vrot.slane %v1643, %v2049
        %v2052 = vsel %vm152, %v2046, 0
        %2054 = vmatprep.subr.mxu0 0.0
        %2055 = vmatpush1.msra.mxu0 %v1641
        %2056 = vmatprep.subr.mxu0 0.0
        %2057 = vmatpush1.msra.mxu0 %v1642
        %2058 = vmatprep.subr.mxu0 0.0
        %2059 = vmatpush1.msra.mxu0 0.0
        %2060 = vmatprep.subr.mxu0 0.0
        %2061 = vmatpush1.msra.mxu0 0.0
        %2062 = vmatprep.subr.mxu0 0.0
        %2063 = vmatpush1.msra.mxu0 0.0
        %2064 = vmatprep.subr.mxu0 0.0
        %2065 = vmatpush1.msra.mxu0 0.0
        %2066 = vmatprep.subr.mxu0 0.0
        %2067 = vmatpush1.msra.mxu0 0.0
        %2068 = vmatprep.subr.mxu0 0.0
        %2069 = vmatpush1.msra.mxu0 0.0
        %2070 = vmatprep.subr.mxu0 0.0
        %2071 = vmatpush1.msra.mxu0 0.0
        %2072 = vmatprep.subr.mxu0 0.0
        %2073 = vmatpush1.msra.mxu0 0.0
        %2074 = vmatprep.subr.mxu0 0.0
        %2075 = vmatpush1.msra.mxu0 0.0
        %2076 = vmatprep.subr.mxu0 0.0
        %2077 = vmatpush1.msra.mxu0 0.0
        %2078 = vmatprep.subr.mxu0 0.0
        %2079 = vmatpush1.msra.mxu0 0.0
        %2080 = vmatprep.subr.mxu0 0.0
        %2081 = vmatpush1.msra.mxu0 0.0
        %2082 = vmatprep.subr.mxu0 0.0
        %2083 = vmatpush1.msra.mxu0 0.0
        %2084 = vmatprep.subr.mxu0 0.0
        %2085 = vmatpush1.msra.mxu0 0.0
        %2086 = vmatprep.subr.mxu0 0.0
        %2087 = vmatpush1.msra.mxu0 0.0
        %2088 = vmatprep.subr.mxu0 0.0
        %2089 = vmatpush1.msra.mxu0 0.0
        %2090 = vmatprep.subr.mxu0 0.0
        %2091 = vmatpush1.msra.mxu0 0.0
        %2092 = vmatprep.subr.mxu0 0.0
        %2093 = vmatpush1.msra.mxu0 0.0
        %2094 = vmatprep.subr.mxu0 0.0
        %2095 = vmatpush1.msra.mxu0 0.0
        %2096 = vmatprep.subr.mxu0 0.0
        %2097 = vmatpush1.msra.mxu0 0.0
        %2098 = vmatprep.subr.mxu0 0.0
        %2099 = vmatpush1.msra.mxu0 0.0
        %2100 = vmatprep.subr.mxu0 0.0
        %2101 = vmatpush1.msra.mxu0 0.0
        %2102 = vmatprep.subr.mxu0 0.0
        %2103 = vmatpush1.msra.mxu0 0.0
        %2104 = vmatprep.subr.mxu0 0.0
        %2105 = vmatpush1.msra.mxu0 0.0
        %2106 = vmatprep.subr.mxu0 0.0
        %2107 = vmatpush1.msra.mxu0 0.0
        %2108 = vmatprep.subr.mxu0 0.0
        %2109 = vmatpush1.msra.mxu0 0.0
        %2110 = vmatprep.subr.mxu0 0.0
        %2111 = vmatpush1.msra.mxu0 0.0
        %2112 = vmatprep.subr.mxu0 0.0
        %2113 = vmatpush1.msra.mxu0 0.0
        %2114 = vmatprep.subr.mxu0 0.0
        %2115 = vmatpush1.msra.mxu0 0.0
        %2116 = vmatprep.subr.mxu0 0.0
        %2117 = vmatpush1.msra.mxu0 0.0
        %2118 = vmatprep.mubr.f32.mxu0 0.0
        %2119 = vmatmul.mubr.f32.gmra.mrb[0].mxu0 %v2052
        %v2120 = vpop.f32.mrb[0].mxu0
        %v2121 = vadd.f32 %v2050, %v2120
        %v2122 = vpop.f32.mrb[0].mxu0
        %2123 = vdwg.mxu0
        %v2124 = vtanh.pop %v2121
        %v2125 = vmul.f32 %v2124, 0.5
        %v2126 = vadd.f32 %v2125, 1.0
        %v2127 = vmul.f32 %v1626, %v2126
        %v2128 = vlaneseq
        %v2129 = vshrl.u32 %v2128, 7
        %v2130 = vsub.s32 0, %v2129
        %v2131 = vrot.slane %v1648, %v2130
        %v2133 = vsel %vm457, %v2127, 0
        %2135 = vmatprep.subr.mxu0 0.0
        %2136 = vmatpush1.msra.mxu0 %v1644
        %2137 = vmatprep.subr.mxu0 0.0
        %2138 = vmatpush1.msra.mxu0 %v1645
        %2139 = vmatprep.subr.mxu0 0.0
        %2140 = vmatpush1.msra.mxu0 %v1646
        %2141 = vmatprep.subr.mxu0 0.0
        %2142 = vmatpush1.msra.mxu0 %v1647
        %2143 = vmatprep.subr.mxu0 0.0
        %2144 = vmatpush1.msra.mxu0 0.0
        %2145 = vmatprep.subr.mxu0 0.0
        %2146 = vmatpush1.msra.mxu0 0.0
        %2147 = vmatprep.subr.mxu0 0.0
        %2148 = vmatpush1.msra.mxu0 0.0
        %2149 = vmatprep.subr.mxu0 0.0
        %2150 = vmatpush1.msra.mxu0 0.0
        %2151 = vmatprep.subr.mxu0 0.0
        %2152 = vmatpush1.msra.mxu0 0.0
        %2153 = vmatprep.subr.mxu0 0.0
        %2154 = vmatpush1.msra.mxu0 0.0
        %2155 = vmatprep.subr.mxu0 0.0
        %2156 = vmatpush1.msra.mxu0 0.0
        %2157 = vmatprep.subr.mxu0 0.0
        %2158 = vmatpush1.msra.mxu0 0.0
        %2159 = vmatprep.subr.mxu0 0.0
        %2160 = vmatpush1.msra.mxu0 0.0
        %2161 = vmatprep.subr.mxu0 0.0
        %2162 = vmatpush1.msra.mxu0 0.0
        %2163 = vmatprep.subr.mxu0 0.0
        %2164 = vmatpush1.msra.mxu0 0.0
        %2165 = vmatprep.subr.mxu0 0.0
        %2166 = vmatpush1.msra.mxu0 0.0
        %2167 = vmatprep.subr.mxu0 0.0
        %2168 = vmatpush1.msra.mxu0 0.0
        %2169 = vmatprep.subr.mxu0 0.0
        %2170 = vmatpush1.msra.mxu0 0.0
        %2171 = vmatprep.subr.mxu0 0.0
        %2172 = vmatpush1.msra.mxu0 0.0
        %2173 = vmatprep.subr.mxu0 0.0
        %2174 = vmatpush1.msra.mxu0 0.0
        %2175 = vmatprep.subr.mxu0 0.0
        %2176 = vmatpush1.msra.mxu0 0.0
        %2177 = vmatprep.subr.mxu0 0.0
        %2178 = vmatpush1.msra.mxu0 0.0
        %2179 = vmatprep.subr.mxu0 0.0
        %2180 = vmatpush1.msra.mxu0 0.0
        %2181 = vmatprep.subr.mxu0 0.0
        %2182 = vmatpush1.msra.mxu0 0.0
        %2183 = vmatprep.subr.mxu0 0.0
        %2184 = vmatpush1.msra.mxu0 0.0
        %2185 = vmatprep.subr.mxu0 0.0
        %2186 = vmatpush1.msra.mxu0 0.0
        %2187 = vmatprep.subr.mxu0 0.0
        %2188 = vmatpush1.msra.mxu0 0.0
        %2189 = vmatprep.subr.mxu0 0.0
        %2190 = vmatpush1.msra.mxu0 0.0
        %2191 = vmatprep.subr.mxu0 0.0
        %2192 = vmatpush1.msra.mxu0 0.0
        %2193 = vmatprep.subr.mxu0 0.0
        %2194 = vmatpush1.msra.mxu0 0.0
        %2195 = vmatprep.subr.mxu0 0.0
        %2196 = vmatpush1.msra.mxu0 0.0
        %2197 = vmatprep.subr.mxu0 0.0
        %2198 = vmatpush1.msra.mxu0 0.0
        %2199 = vmatprep.mubr.f32.mxu0 0.0
        %2200 = vmatmul.mubr.f32.gmra.mrb[0].mxu0 %v2133
        %v2201 = vpop.f32.mrb[0].mxu0
        %v2202 = vadd.f32 %v2131, %v2201
        %v2203 = vpop.f32.mrb[0].mxu0
        %2204 = vdwg.mxu0
        %v2205 = vmax.f32 %v2202, 0.0
        %v2206 = vlaneseq
        %v2207 = vshrl.u32 %v2206, 7
        %v2208 = vsub.s32 0, %v2207
        %v2209 = vrot.slane %v1651, %v2208
        %v2211 = vsel %vm152, %v2205, 0
        %2213 = vmatprep.subr.mxu0 0.0
        %2214 = vmatpush1.msra.mxu0 %v1649
        %2215 = vmatprep.subr.mxu0 0.0
        %2216 = vmatpush1.msra.mxu0 %v1650
        %2217 = vmatprep.subr.mxu0 0.0
        %2218 = vmatpush1.msra.mxu0 0.0
        %2219 = vmatprep.subr.mxu0 0.0
        %2220 = vmatpush1.msra.mxu0 0.0
        %2221 = vmatprep.subr.mxu0 0.0
        %2222 = vmatpush1.msra.mxu0 0.0
        %2223 = vmatprep.subr.mxu0 0.0
        %2224 = vmatpush1.msra.mxu0 0.0
        %2225 = vmatprep.subr.mxu0 0.0
        %2226 = vmatpush1.msra.mxu0 0.0
        %2227 = vmatprep.subr.mxu0 0.0
        %2228 = vmatpush1.msra.mxu0 0.0
        %2229 = vmatprep.subr.mxu0 0.0
        %2230 = vmatpush1.msra.mxu0 0.0
        %2231 = vmatprep.subr.mxu0 0.0
        %2232 = vmatpush1.msra.mxu0 0.0
        %2233 = vmatprep.subr.mxu0 0.0
        %2234 = vmatpush1.msra.mxu0 0.0
        %2235 = vmatprep.subr.mxu0 0.0
        %2236 = vmatpush1.msra.mxu0 0.0
        %2237 = vmatprep.subr.mxu0 0.0
        %2238 = vmatpush1.msra.mxu0 0.0
        %2239 = vmatprep.subr.mxu0 0.0
        %2240 = vmatpush1.msra.mxu0 0.0
        %2241 = vmatprep.subr.mxu0 0.0
        %2242 = vmatpush1.msra.mxu0 0.0
        %2243 = vmatprep.subr.mxu0 0.0
        %2244 = vmatpush1.msra.mxu0 0.0
        %2245 = vmatprep.subr.mxu0 0.0
        %2246 = vmatpush1.msra.mxu0 0.0
        %2247 = vmatprep.subr.mxu0 0.0
        %2248 = vmatpush1.msra.mxu0 0.0
        %2249 = vmatprep.subr.mxu0 0.0
        %2250 = vmatpush1.msra.mxu0 0.0
        %2251 = vmatprep.subr.mxu0 0.0
        %2252 = vmatpush1.msra.mxu0 0.0
        %2253 = vmatprep.subr.mxu0 0.0
        %2254 = vmatpush1.msra.mxu0 0.0
        %2255 = vmatprep.subr.mxu0 0.0
        %2256 = vmatpush1.msra.mxu0 0.0
        %2257 = vmatprep.subr.mxu0 0.0
        %2258 = vmatpush1.msra.mxu0 0.0
        %2259 = vmatprep.subr.mxu0 0.0
        %2260 = vmatpush1.msra.mxu0 0.0
        %2261 = vmatprep.subr.mxu0 0.0
        %2262 = vmatpush1.msra.mxu0 0.0
        %2263 = vmatprep.subr.mxu0 0.0
        %2264 = vmatpush1.msra.mxu0 0.0
        %2265 = vmatprep.subr.mxu0 0.0
        %2266 = vmatpush1.msra.mxu0 0.0
        %2267 = vmatprep.subr.mxu0 0.0
        %2268 = vmatpush1.msra.mxu0 0.0
        %2269 = vmatprep.subr.mxu0 0.0
        %2270 = vmatpush1.msra.mxu0 0.0
        %2271 = vmatprep.subr.mxu0 0.0
        %2272 = vmatpush1.msra.mxu0 0.0
        %2273 = vmatprep.subr.mxu0 0.0
        %2274 = vmatpush1.msra.mxu0 0.0
        %2275 = vmatprep.subr.mxu0 0.0
        %2276 = vmatpush1.msra.mxu0 0.0
        %2277 = vmatprep.mubr.f32.mxu0 0.0
        %2278 = vmatmul.mubr.f32.gmra.mrb[0].mxu0 %v2211
        %v2279 = vpop.f32.mrb[0].mxu0
        %v2280 = vadd.f32 %v2209, %v2279
        %v2281 = vpop.f32.mrb[0].mxu0
        %2282 = vdwg.mxu0
        %v2283 = vsel %vm1815, %v2280, -inf
        %v2284 = vrot.slane %v2283, 4
        %v2285 = vmax.f32 %v2283, %v2284
        %v2286 = vrot.slane %v2285, 2
        %v2287 = vmax.f32 %v2285, %v2286
        %v2288 = vrot.slane %v2287, 1
        %v2289 = vmax.f32 %v2287, %v2288
        %v2290 = vsub.f32 %v2280, %v2289
        %v2291 = vmul.f32 %v2290, 1.442695
        %v2292 = vpow.pop %v2291
        %v2293 = vsel %vm1815, %v2292, 0.0
        %v2294 = vrot.slane %v2293, 4
        %v2295 = vadd.f32 %v2293, %v2294
        %v2296 = vrot.slane %v2295, 2
        %v2297 = vadd.f32 %v2295, %v2296
        %v2298 = vrot.slane %v2297, 1
        %v2299 = vadd.f32 %v2297, %v2298
        %v2300 = vrcp.pop %v2299
        %v2301 = vmul.f32 %v2292, %v2300
        %v2303 = vsel %vm1815, %v2301, 0
        %2305 = vmatprep.subr.mxu0 0.0
        %2306 = vmatpush1.msra.mxu0 %v1821
        %2307 = vmatprep.subr.mxu0 0.0
        %2308 = vmatpush1.msra.mxu0 0.0
        %2309 = vmatprep.subr.mxu0 0.0
        %2310 = vmatpush1.msra.mxu0 0.0
        %2311 = vmatprep.subr.mxu0 0.0
        %2312 = vmatpush1.msra.mxu0 0.0
        %2313 = vmatprep.subr.mxu0 0.0
        %2314 = vmatpush1.msra.mxu0 0.0
        %2315 = vmatprep.subr.mxu0 0.0
        %2316 = vmatpush1.msra.mxu0 0.0
        %2317 = vmatprep.subr.mxu0 0.0
        %2318 = vmatpush1.msra.mxu0 0.0
        %2319 = vmatprep.subr.mxu0 0.0
        %2320 = vmatpush1.msra.mxu0 0.0
        %2321 = vmatprep.subr.mxu0 0.0
        %2322 = vmatpush1.msra.mxu0 0.0
        %2323 = vmatprep.subr.mxu0 0.0
        %2324 = vmatpush1.msra.mxu0 0.0
        %2325 = vmatprep.subr.mxu0 0.0
        %2326 = vmatpush1.msra.mxu0 0.0
        %2327 = vmatprep.subr.mxu0 0.0
        %2328 = vmatpush1.msra.mxu0 0.0
        %2329 = vmatprep.subr.mxu0 0.0
        %2330 = vmatpush1.msra.mxu0 0.0
        %2331 = vmatprep.subr.mxu0 0.0
        %2332 = vmatpush1.msra.mxu0 0.0
        %2333 = vmatprep.subr.mxu0 0.0
        %2334 = vmatpush1.msra.mxu0 0.0
        %2335 = vmatprep.subr.mxu0 0.0
        %2336 = vmatpush1.msra.mxu0 0.0
        %2337 = vmatprep.subr.mxu0 0.0
        %2338 = vmatpush1.msra.mxu0 0.0
        %2339 = vmatprep.subr.mxu0 0.0
        %2340 = vmatpush1.msra.mxu0 0.0
        %2341 = vmatprep.subr.mxu0 0.0
        %2342 = vmatpush1.msra.mxu0 0.0
        %2343 = vmatprep.subr.mxu0 0.0
        %2344 = vmatpush1.msra.mxu0 0.0
        %2345 = vmatprep.subr.mxu0 0.0
        %2346 = vmatpush1.msra.mxu0 0.0
        %2347 = vmatprep.subr.mxu0 0.0
        %2348 = vmatpush1.msra.mxu0 0.0
        %2349 = vmatprep.subr.mxu0 0.0
        %2350 = vmatpush1.msra.mxu0 0.0
        %2351 = vmatprep.subr.mxu0 0.0
        %2352 = vmatpush1.msra.mxu0 0.0
        %2353 = vmatprep.subr.mxu0 0.0
        %2354 = vmatpush1.msra.mxu0 0.0
        %2355 = vmatprep.subr.mxu0 0.0
        %2356 = vmatpush1.msra.mxu0 0.0
        %2357 = vmatprep.subr.mxu0 0.0
        %2358 = vmatpush1.msra.mxu0 0.0
        %2359 = vmatprep.subr.mxu0 0.0
        %2360 = vmatpush1.msra.mxu0 0.0
        %2361 = vmatprep.subr.mxu0 0.0
        %2362 = vmatpush1.msra.mxu0 0.0
        %2363 = vmatprep.subr.mxu0 0.0
        %2364 = vmatpush1.msra.mxu0 0.0
        %2365 = vmatprep.subr.mxu0 0.0
        %2366 = vmatpush1.msra.mxu0 0.0
        %2367 = vmatprep.subr.mxu0 0.0
        %2368 = vmatpush1.msra.mxu0 0.0
        %2369 = vmatprep.mubr.f32.mxu0 0.0
        %2370 = vmatmul.mubr.f32.gmra.mrb[0].mxu0 %v2303
        %v2371 = vpop.f32.mrb[0].mxu0
        %v2372 = vadd.f32 %v1814, %v2371
        %v2373 = vpop.f32.mrb[0].mxu0
        %2374 = vdwg.mxu0
        %v2376 = vsel %vm1893, %v2372, 0
        %2378 = vmatprep.subr.mxu0 0.0
        %2379 = vmatpush1.msra.mxu0 %v1636
        %2380 = vmatprep.subr.mxu0 0.0
        %2381 = vmatpush1.msra.mxu0 0.0
        %2382 = vmatprep.subr.mxu0 0.0
        %2383 = vmatpush1.msra.mxu0 0.0
        %2384 = vmatprep.subr.mxu0 0.0
        %2385 = vmatpush1.msra.mxu0 0.0
        %2386 = vmatprep.subr.mxu0 0.0
        %2387 = vmatpush1.msra.mxu0 0.0
        %2388 = vmatprep.subr.mxu0 0.0
        %2389 = vmatpush1.msra.mxu0 0.0
        %2390 = vmatprep.subr.mxu0 0.0
        %2391 = vmatpush1.msra.mxu0 0.0
        %2392 = vmatprep.subr.mxu0 0.0
        %2393 = vmatpush1.msra.mxu0 0.0
        %2394 = vmatprep.subr.mxu0 0.0
        %2395 = vmatpush1.msra.mxu0 0.0
        %2396 = vmatprep.subr.mxu0 0.0
        %2397 = vmatpush1.msra.mxu0 0.0
        %2398 = vmatprep.subr.mxu0 0.0
        %2399 = vmatpush1.msra.mxu0 0.0
        %2400 = vmatprep.subr.mxu0 0.0
        %2401 = vmatpush1.msra.mxu0 0.0
        %2402 = vmatprep.subr.mxu0 0.0
        %2403 = vmatpush1.msra.mxu0 0.0
        %2404 = vmatprep.subr.mxu0 0.0
        %2405 = vmatpush1.msra.mxu0 0.0
        %2406 = vmatprep.subr.mxu0 0.0
        %2407 = vmatpush1.msra.mxu0 0.0
        %2408 = vmatprep.subr.mxu0 0.0
        %2409 = vmatpush1.msra.mxu0 0.0
        %2410 = vmatprep.subr.mxu0 0.0
        %2411 = vmatpush1.msra.mxu0 0.0
        %2412 = vmatprep.subr.mxu0 0.0
        %2413 = vmatpush1.msra.mxu0 0.0
        %2414 = vmatprep.subr.mxu0 0.0
        %2415 = vmatpush1.msra.mxu0 0.0
        %2416 = vmatprep.subr.mxu0 0.0
        %2417 = vmatpush1.msra.mxu0 0.0
        %2418 = vmatprep.subr.mxu0 0.0
        %2419 = vmatpush1.msra.mxu0 0.0
        %2420 = vmatprep.subr.mxu0 0.0
        %2421 = vmatpush1.msra.mxu0 0.0
        %2422 = vmatprep.subr.mxu0 0.0
        %2423 = vmatpush1.msra.mxu0 0.0
        %2424 = vmatprep.subr.mxu0 0.0
        %2425 = vmatpush1.msra.mxu0 0.0
        %2426 = vmatprep.subr.mxu0 0.0
        %2427 = vmatpush1.msra.mxu0 0.0
        %2428 = vmatprep.subr.mxu0 0.0
        %2429 = vmatpush1.msra.mxu0 0.0
        %2430 = vmatprep.subr.mxu0 0.0
        %2431 = vmatpush1.msra.mxu0 0.0
        %2432 = vmatprep.subr.mxu0 0.0
        %2433 = vmatpush1.msra.mxu0 0.0
        %2434 = vmatprep.subr.mxu0 0.0
        %2435 = vmatpush1.msra.mxu0 0.0
        %2436 = vmatprep.subr.mxu0 0.0
        %2437 = vmatpush1.msra.mxu0 0.0
        %2438 = vmatprep.subr.mxu0 0.0
        %2439 = vmatpush1.msra.mxu0 0.0
        %2440 = vmatprep.subr.mxu0 0.0
        %2441 = vmatpush1.msra.mxu0 0.0
        %2442 = vmatprep.mubr.f32.mxu0 0.0
        %2443 = vmatmul.mubr.f32.gmra.mrb[0].mxu0 %v2376
        %v2444 = vpop.f32.mrb[0].mxu0
        %v2445 = vadd.f32 0.0, %v2444
        %v2446 = vpop.f32.mrb[0].mxu0
        %2447 = vdwg.mxu0
        %v2448 = vadd.f32 %v1803, %v2445
        %v2449 = vtanh.pop %v2448
        %v2451 = vsel %vm152, %v2449, 0
        %2453 = vmatprep.subr.mxu0 0.0
        %2454 = vmatpush1.msra.mxu0 %v1638
        %2455 = vmatprep.subr.mxu0 0.0
        %2456 = vmatpush1.msra.mxu0 %v1639
        %2457 = vmatprep.subr.mxu0 0.0
        %2458 = vmatpush1.msra.mxu0 0.0
        %2459 = vmatprep.subr.mxu0 0.0
        %2460 = vmatpush1.msra.mxu0 0.0
        %2461 = vmatprep.subr.mxu0 0.0
        %2462 = vmatpush1.msra.mxu0 0.0
        %2463 = vmatprep.subr.mxu0 0.0
        %2464 = vmatpush1.msra.mxu0 0.0
        %2465 = vmatprep.subr.mxu0 0.0
        %2466 = vmatpush1.msra.mxu0 0.0
        %2467 = vmatprep.subr.mxu0 0.0
        %2468 = vmatpush1.msra.mxu0 0.0
        %2469 = vmatprep.subr.mxu0 0.0
        %2470 = vmatpush1.msra.mxu0 0.0
        %2471 = vmatprep.subr.mxu0 0.0
        %2472 = vmatpush1.msra.mxu0 0.0
        %2473 = vmatprep.subr.mxu0 0.0
        %2474 = vmatpush1.msra.mxu0 0.0
        %2475 = vmatprep.subr.mxu0 0.0
        %2476 = vmatpush1.msra.mxu0 0.0
        %2477 = vmatprep.subr.mxu0 0.0
        %2478 = vmatpush1.msra.mxu0 0.0
        %2479 = vmatprep.subr.mxu0 0.0
        %2480 = vmatpush1.msra.mxu0 0.0
        %2481 = vmatprep.subr.mxu0 0.0
        %2482 = vmatpush1.msra.mxu0 0.0
        %2483 = vmatprep.subr.mxu0 0.0
        %2484 = vmatpush1.msra.mxu0 0.0
        %2485 = vmatprep.subr.mxu0 0.0
        %2486 = vmatpush1.msra.mxu0 0.0
        %2487 = vmatprep.subr.mxu0 0.0
        %2488 = vmatpush1.msra.mxu0 0.0
        %2489 = vmatprep.subr.mxu0 0.0
        %2490 = vmatpush1.msra.mxu0 0.0
        %2491 = vmatprep.subr.mxu0 0.0
        %2492 = vmatpush1.msra.mxu0 0.0
        %2493 = vmatprep.subr.mxu0 0.0
        %2494 = vmatpush1.msra.mxu0 0.0
        %2495 = vmatprep.subr.mxu0 0.0
        %2496 = vmatpush1.msra.mxu0 0.0
        %2497 = vmatprep.subr.mxu0 0.0
        %2498 = vmatpush1.msra.mxu0 0.0
        %2499 = vmatprep.subr.mxu0 0.0
        %2500 = vmatpush1.msra.mxu0 0.0
        %2501 = vmatprep.subr.mxu0 0.0
        %2502 = vmatpush1.msra.mxu0 0.0
        %2503 = vmatprep.subr.mxu0 0.0
        %2504 = vmatpush1.msra.mxu0 0.0
        %2505 = vmatprep.subr.mxu0 0.0
        %2506 = vmatpush1.msra.mxu0 0.0
        %2507 = vmatprep.subr.mxu0 0.0
        %2508 = vmatpush1.msra.mxu0 0.0
        %2509 = vmatprep.subr.mxu0 0.0
        %2510 = vmatpush1.msra.mxu0 0.0
        %2511 = vmatprep.subr.mxu0 0.0
        %2512 = vmatpush1.msra.mxu0 0.0
        %2513 = vmatprep.subr.mxu0 0.0
        %2514 = vmatpush1.msra.mxu0 0.0
        %2515 = vmatprep.subr.mxu0 0.0
        %2516 = vmatpush1.msra.mxu0 0.0
        %2517 = vmatprep.mubr.f32.mxu0 0.0
        %2518 = vmatmul.mubr.f32.gmra.mrb[0].mxu0 %v2451
        %v2519 = vpop.f32.mrb[0].mxu0
        %v2520 = vadd.f32 %v1972, %v2519
        %v2521 = vpop.f32.mrb[0].mxu0
        %2522 = vdwg.mxu0
        %v2523 = vtanh.pop %v2520
        %v2525 = vsel %vm152, %v2523, 0
        %2527 = vmatprep.subr.mxu0 0.0
        %2528 = vmatpush1.msra.mxu0 %v1641
        %2529 = vmatprep.subr.mxu0 0.0
        %2530 = vmatpush1.msra.mxu0 %v1642
        %2531 = vmatprep.subr.mxu0 0.0
        %2532 = vmatpush1.msra.mxu0 0.0
        %2533 = vmatprep.subr.mxu0 0.0
        %2534 = vmatpush1.msra.mxu0 0.0
        %2535 = vmatprep.subr.mxu0 0.0
        %2536 = vmatpush1.msra.mxu0 0.0
        %2537 = vmatprep.subr.mxu0 0.0
        %2538 = vmatpush1.msra.mxu0 0.0
        %2539 = vmatprep.subr.mxu0 0.0
        %2540 = vmatpush1.msra.mxu0 0.0
        %2541 = vmatprep.subr.mxu0 0.0
        %2542 = vmatpush1.msra.mxu0 0.0
        %2543 = vmatprep.subr.mxu0 0.0
        %2544 = vmatpush1.msra.mxu0 0.0
        %2545 = vmatprep.subr.mxu0 0.0
        %2546 = vmatpush1.msra.mxu0 0.0
        %2547 = vmatprep.subr.mxu0 0.0
        %2548 = vmatpush1.msra.mxu0 0.0
        %2549 = vmatprep.subr.mxu0 0.0
        %2550 = vmatpush1.msra.mxu0 0.0
        %2551 = vmatprep.subr.mxu0 0.0
        %2552 = vmatpush1.msra.mxu0 0.0
        %2553 = vmatprep.subr.mxu0 0.0
        %2554 = vmatpush1.msra.mxu0 0.0
        %2555 = vmatprep.subr.mxu0 0.0
        %2556 = vmatpush1.msra.mxu0 0.0
        %2557 = vmatprep.subr.mxu0 0.0
        %2558 = vmatpush1.msra.mxu0 0.0
        %2559 = vmatprep.subr.mxu0 0.0
        %2560 = vmatpush1.msra.mxu0 0.0
        %2561 = vmatprep.subr.mxu0 0.0
        %2562 = vmatpush1.msra.mxu0 0.0
        %2563 = vmatprep.subr.mxu0 0.0
        %2564 = vmatpush1.msra.mxu0 0.0
        %2565 = vmatprep.subr.mxu0 0.0
        %2566 = vmatpush1.msra.mxu0 0.0
        %2567 = vmatprep.subr.mxu0 0.0
        %2568 = vmatpush1.msra.mxu0 0.0
        %2569 = vmatprep.subr.mxu0 0.0
        %2570 = vmatpush1.msra.mxu0 0.0
        %2571 = vmatprep.subr.mxu0 0.0
        %2572 = vmatpush1.msra.mxu0 0.0
        %2573 = vmatprep.subr.mxu0 0.0
        %2574 = vmatpush1.msra.mxu0 0.0
        %2575 = vmatprep.subr.mxu0 0.0
        %2576 = vmatpush1.msra.mxu0 0.0
        %2577 = vmatprep.subr.mxu0 0.0
        %2578 = vmatpush1.msra.mxu0 0.0
        %2579 = vmatprep.subr.mxu0 0.0
        %2580 = vmatpush1.msra.mxu0 0.0
        %2581 = vmatprep.subr.mxu0 0.0
        %2582 = vmatpush1.msra.mxu0 0.0
        %2583 = vmatprep.subr.mxu0 0.0
        %2584 = vmatpush1.msra.mxu0 0.0
        %2585 = vmatprep.subr.mxu0 0.0
        %2586 = vmatpush1.msra.mxu0 0.0
        %2587 = vmatprep.subr.mxu0 0.0
        %2588 = vmatpush1.msra.mxu0 0.0
        %2589 = vmatprep.subr.mxu0 0.0
        %2590 = vmatpush1.msra.mxu0 0.0
        %2591 = vmatprep.mubr.f32.mxu0 0.0
        %2592 = vmatmul.mubr.f32.gmra.mrb[0].mxu0 %v2525
        %v2593 = vpop.f32.mrb[0].mxu0
        %v2594 = vadd.f32 %v2050, %v2593
        %v2595 = vpop.f32.mrb[0].mxu0
        %2596 = vdwg.mxu0
        %v2597 = vtanh.pop %v2594
        %v2598 = vmul.f32 %v2597, 0.5
        %v2599 = vadd.f32 %v2598, 1.0
        %v2600 = vmul.f32 %v1626, %v2599
        %v2602 = vsel %vm457, %v2600, 0
        %2604 = vmatprep.subr.mxu0 0.0
        %2605 = vmatpush1.msra.mxu0 %v1644
        %2606 = vmatprep.subr.mxu0 0.0
        %2607 = vmatpush1.msra.mxu0 %v1645
        %2608 = vmatprep.subr.mxu0 0.0
        %2609 = vmatpush1.msra.mxu0 %v1646
        %2610 = vmatprep.subr.mxu0 0.0
        %2611 = vmatpush1.msra.mxu0 %v1647
        %2612 = vmatprep.subr.mxu0 0.0
        %2613 = vmatpush1.msra.mxu0 0.0
        %2614 = vmatprep.subr.mxu0 0.0
        %2615 = vmatpush1.msra.mxu0 0.0
        %2616 = vmatprep.subr.mxu0 0.0
        %2617 = vmatpush1.msra.mxu0 0.0
        %2618 = vmatprep.subr.mxu0 0.0
        %2619 = vmatpush1.msra.mxu0 0.0
        %2620 = vmatprep.subr.mxu0 0.0
        %2621 = vmatpush1.msra.mxu0 0.0
        %2622 = vmatprep.subr.mxu0 0.0
        %2623 = vmatpush1.msra.mxu0 0.0
        %2624 = vmatprep.subr.mxu0 0.0
        %2625 = vmatpush1.msra.mxu0 0.0
        %2626 = vmatprep.subr.mxu0 0.0
        %2627 = vmatpush1.msra.mxu0 0.0
        %2628 = vmatprep.subr.mxu0 0.0
        %2629 = vmatpush1.msra.mxu0 0.0
        %2630 = vmatprep.subr.mxu0 0.0
        %2631 = vmatpush1.msra.mxu0 0.0
        %2632 = vmatprep.subr.mxu0 0.0
        %2633 = vmatpush1.msra.mxu0 0.0
        %2634 = vmatprep.subr.mxu0 0.0
        %2635 = vmatpush1.msra.mxu0 0.0
        %2636 = vmatprep.subr.mxu0 0.0
        %2637 = vmatpush1.msra.mxu0 0.0
        %2638 = vmatprep.subr.mxu0 0.0
        %2639 = vmatpush1.msra.mxu0 0.0
        %2640 = vmatprep.subr.mxu0 0.0
        %2641 = vmatpush1.msra.mxu0 0.0
        %2642 = vmatprep.subr.mxu0 0.0
        %2643 = vmatpush1.msra.mxu0 0.0
        %2644 = vmatprep.subr.mxu0 0.0
        %2645 = vmatpush1.msra.mxu0 0.0
        %2646 = vmatprep.subr.mxu0 0.0
        %2647 = vmatpush1.msra.mxu0 0.0
        %2648 = vmatprep.subr.mxu0 0.0
        %2649 = vmatpush1.msra.mxu0 0.0
        %2650 = vmatprep.subr.mxu0 0.0
        %2651 = vmatpush1.msra.mxu0 0.0
        %2652 = vmatprep.subr.mxu0 0.0
        %2653 = vmatpush1.msra.mxu0 0.0
        %2654 = vmatprep.subr.mxu0 0.0
        %2655 = vmatpush1.msra.mxu0 0.0
        %2656 = vmatprep.subr.mxu0 0.0
        %2657 = vmatpush1.msra.mxu0 0.0
        %2658 = vmatprep.subr.mxu0 0.0
        %2659 = vmatpush1.msra.mxu0 0.0
        %2660 = vmatprep.subr.mxu0 0.0
        %2661 = vmatpush1.msra.mxu0 0.0
        %2662 = vmatprep.subr.mxu0 0.0
        %2663 = vmatpush1.msra.mxu0 0.0
        %2664 = vmatprep.subr.mxu0 0.0
        %2665 = vmatpush1.msra.mxu0 0.0
        %2666 = vmatprep.subr.mxu0 0.0
        %2667 = vmatpush1.msra.mxu0 0.0
        %2668 = vmatprep.mubr.f32.mxu0 0.0
        %2669 = vmatmul.mubr.f32.gmra.mrb[0].mxu0 %v2602
        %v2670 = vpop.f32.mrb[0].mxu0
        %v2671 = vadd.f32 %v2131, %v2670
        %v2672 = vpop.f32.mrb[0].mxu0
        %2673 = vdwg.mxu0
        %v2674 = vmax.f32 %v2671, 0.0
        %v2676 = vsel %vm152, %v2674, 0
        %2678 = vmatprep.subr.mxu0 0.0
        %2679 = vmatpush1.msra.mxu0 %v1649
        %2680 = vmatprep.subr.mxu0 0.0
        %2681 = vmatpush1.msra.mxu0 %v1650
        %2682 = vmatprep.subr.mxu0 0.0
        %2683 = vmatpush1.msra.mxu0 0.0
        %2684 = vmatprep.subr.mxu0 0.0
        %2685 = vmatpush1.msra.mxu0 0.0
        %2686 = vmatprep.subr.mxu0 0.0
        %2687 = vmatpush1.msra.mxu0 0.0
        %2688 = vmatprep.subr.mxu0 0.0
        %2689 = vmatpush1.msra.mxu0 0.0
        %2690 = vmatprep.subr.mxu0 0.0
        %2691 = vmatpush1.msra.mxu0 0.0
        %2692 = vmatprep.subr.mxu0 0.0
        %2693 = vmatpush1.msra.mxu0 0.0
        %2694 = vmatprep.subr.mxu0 0.0
        %2695 = vmatpush1.msra.mxu0 0.0
        %2696 = vmatprep.subr.mxu0 0.0
        %2697 = vmatpush1.msra.mxu0 0.0
        %2698 = vmatprep.subr.mxu0 0.0
        %2699 = vmatpush1.msra.mxu0 0.0
        %2700 = vmatprep.subr.mxu0 0.0
        %2701 = vmatpush1.msra.mxu0 0.0
        %2702 = vmatprep.subr.mxu0 0.0
        %2703 = vmatpush1.msra.mxu0 0.0
        %2704 = vmatprep.subr.mxu0 0.0
        %2705 = vmatpush1.msra.mxu0 0.0
        %2706 = vmatprep.subr.mxu0 0.0
        %2707 = vmatpush1.msra.mxu0 0.0
        %2708 = vmatprep.subr.mxu0 0.0
        %2709 = vmatpush1.msra.mxu0 0.0
        %2710 = vmatprep.subr.mxu0 0.0
        %2711 = vmatpush1.msra.mxu0 0.0
        %2712 = vmatprep.subr.mxu0 0.0
        %2713 = vmatpush1.msra.mxu0 0.0
        %2714 = vmatprep.subr.mxu0 0.0
        %2715 = vmatpush1.msra.mxu0 0.0
        %2716 = vmatprep.subr.mxu0 0.0
        %2717 = vmatpush1.msra.mxu0 0.0
        %2718 = vmatprep.subr.mxu0 0.0
        %2719 = vmatpush1.msra.mxu0 0.0
        %2720 = vmatprep.subr.mxu0 0.0
        %2721 = vmatpush1.msra.mxu0 0.0
        %2722 = vmatprep.subr.mxu0 0.0
        %2723 = vmatpush1.msra.mxu0 0.0
        %2724 = vmatprep.subr.mxu0 0.0
        %2725 = vmatpush1.msra.mxu0 0.0
        %2726 = vmatprep.subr.mxu0 0.0
        %2727 = vmatpush1.msra.mxu0 0.0
        %2728 = vmatprep.subr.mxu0 0.0
        %2729 = vmatpush1.msra.mxu0 0.0
        %2730 = vmatprep.subr.mxu0 0.0
        %2731 = vmatpush1.msra.mxu0 0.0
        %2732 = vmatprep.subr.mxu0 0.0
        %2733 = vmatpush1.msra.mxu0 0.0
        %2734 = vmatprep.subr.mxu0 0.0
        %2735 = vmatpush1.msra.mxu0 0.0
        %2736 = vmatprep.subr.mxu0 0.0
        %2737 = vmatpush1.msra.mxu0 0.0
        %2738 = vmatprep.subr.mxu0 0.0
        %2739 = vmatpush1.msra.mxu0 0.0
        %2740 = vmatprep.subr.mxu0 0.0
        %2741 = vmatpush1.msra.mxu0 0.0
        %2742 = vmatprep.mubr.f32.mxu0 0.0
        %2743 = vmatmul.mubr.f32.gmra.mrb[0].mxu0 %v2676
        %v2744 = vpop.f32.mrb[0].mxu0
        %v2745 = vadd.f32 %v2209, %v2744
        %v2746 = vpop.f32.mrb[0].mxu0
        %2747 = vdwg.mxu0
        %v2748 = vsel %vm1815, %v2745, 0.0
        %v2749 = vrot.slane %v2748, 4
        %v2750 = vadd.f32 %v2748, %v2749
        %v2751 = vrot.slane %v2750, 2
        %v2752 = vadd.f32 %v2750, %v2751
        %v2753 = vrot.slane %v2752, 1
        %v2754 = vadd.f32 %v2752, %v2753
        %v2755 = vmul.f32 %v2754, 0.125
        %vm2756 = vcmask 24576
        %2757 = vst.msk [vmem:[%s135] sm:$0x1] %vm2756, %v2755
        %s2758 = sand.u32 %s71, 1
        %s2759 = scalar_lea.sflag [#allocation3], %s2758
        %s2760 = sand.u32 %s71, 1
        %s2761 = scalar_lea.vmem [#allocation2], %s2760
        // Predicated region
        $region29: #{bert_conv_att_forward.1} parent=27 // pred_check
          %p2762 = pneg %p81
        $region30: #{bert_conv_att_forward.1} parent=27 // pred_check_branch
          %2764 = sbr.rel (%p2762) target = $region32
        $region31: #{bert_conv_att_forward.1} parent=27 // pred_region
          %s2766 = ssub.s32 16, 16
          %2767 = vsyncadd %s2759, %s2766
          %s2768 = smul.addr %s16, 16
          %s2769 = scalar_lea.hbm %s2, %s2768
          %s2771 = sshll.u32 %s2761, 4
          %s2772 = int_to_ptr.vmem [resolvable:$true] %s2771
          %2774 = dma.vmem_to_hbm [thread:$0]  %s2772, 16, %s2769, %s2759
        $region32: #{bert_conv_att_forward.1} parent=27 // pred_fallthru
          _
      $region28: #{bert_conv_att_forward.1} parent=5 // pred_fallthru
        _
      %p2775 = scmp.le.s32.totalorder 2, %s11
      // Predicated region
      $region33: #{bert_conv_att_forward.1} parent=5 // pred_check
        %p2776 = pneg %p2775
      $region34: #{bert_conv_att_forward.1} parent=5 // pred_check_branch
        %2778 = sbr.rel (%p2776) target = $region36
      $region35: #{bert_conv_att_forward.1} parent=5 // pred_region
        %s2779 = ssub.s32 %s11, 2
        // Predicated region
        $region37: #{bert_conv_att_forward.1} parent=35 // pred_check
          %p2780 = pneg %p87
        $region38: #{bert_conv_att_forward.1} parent=35 // pred_check_branch
          %2782 = sbr.rel (%p2780) target = $region40
        $region39: #{bert_conv_att_forward.1} parent=35 // pred_region
          %s2783 = sand.u32 %s72, 1
          %s2784 = scalar_lea.sflag [#allocation3], %s2783
          %s2785 = sand.u32 %s72, 1
          %s2786 = scalar_lea.vmem [#allocation2], %s2785
          %2787 = dma.done %s2784, 16
        $region40: #{bert_conv_att_forward.1} parent=35 // pred_fallthru
          _
      $region36: #{bert_conv_att_forward.1} parent=5 // pred_fallthru
        _
    $region6: #{bert_conv_att_forward.1} parent=1 // loop_footer
      %s15 = sadd.s32 1, %s11
    $region7: #{bert_conv_att_forward.1} parent=1 // loop_footer_branch
      %10 = sbr.rel target = $region3
    $region8: #{bert_conv_att_forward.1} parent=1 // loop_exit
      _
    %2788 = vsyncpa [#allocation3], 1
    %s2789 = scalar_lea.sflag [#allocation3], 1
    %2790 = vsyncpa %s2789, 1

</llo_original>
